<compile_context>
chip_gen: v7x
topology: tpu7x:2x2x1
jax: 0.10.0
libtpu: 0.0.40
codegen_flags: <defaults>
</compile_context>

<pallas_src>
import jax
import jax.numpy as jnp
from jax.experimental import pallas as pl
from jax.experimental.pallas import tpu as pltpu

SAMPLE_WIDTH = 55
IN_FEATURES = 2 * SAMPLE_WIDTH     # 110
INNER = 100                        # dim that gets mean-reduced
FLAT = IN_FEATURES * INNER         # 11000
H1 = 100
H2 = 50
OUT = 1


def bias_model_kernel(x_ref, w1_ref, b1_ref, w2_ref, b2_ref, w3_ref, b3_ref,
                      o_ref):
    # x_ref: (TB, 11000) in the caller's dtype; upcast after the DMA.
    x = x_ref[...].astype(jnp.float32)

    # linear1 (mean over INNER already folded into w1) + relu -> (TB, 100)
    h1 = jnp.dot(x, w1_ref[...], preferred_element_type=jnp.float32) + b1_ref[...]
    h1 = jnp.maximum(h1, 0.0)

    # linear2 + relu -> (TB, 50)
    h2 = jnp.dot(h1, w2_ref[...], preferred_element_type=jnp.float32) + b2_ref[...]
    h2 = jnp.maximum(h2, 0.0)

    # linear3 + sigmoid -> (TB, 1)
    z = jnp.dot(h2, w3_ref[...], preferred_element_type=jnp.float32) + b3_ref[...]
    o_ref[...] = jax.nn.sigmoid(z)


def _round_up(a, m):
    return ((a + m - 1) // m) * m


def bias_model_forward(x, params, *, block_b=256):
    """x: anything reshapeable to (-1, 110, 100). Returns (B,) f32 probabilities."""
    w1, b1, w2, b2, w3, b3 = params

    # Flatten exactly like torch's reshape(-1, 110, 100) followed by mean(dim=2):
    # fold the 1/100 mean into W1 so the kernel is a single lane-dense matmul.
    x_flat = x.reshape(-1, FLAT)                      # keep native dtype (bf16 stays bf16)
    B = x_flat.shape[0]
    w1_folded = jnp.repeat(w1.astype(jnp.float32) / float(INNER), INNER, axis=0)  # (11000, 100)

    # Batch tiling: TB multiple of 8; pad B up to a multiple of TB.
    TB = min(block_b, _round_up(B, 8))
    B_pad = _round_up(B, TB)
    if B_pad != B:
        x_flat = jnp.pad(x_flat, ((0, B_pad - B), (0, 0)))
    grid = (B_pad // TB,)

    itemsize = jnp.dtype(x_flat.dtype).itemsize
    param_bytes = 4 * (FLAT * H1 + H1 + H1 * H2 + H2 + H2 * OUT + OUT)
    cost = pl.CostEstimate(
        flops=2 * B_pad * (FLAT * H1 + H1 * H2 + H2 * OUT),
        transcendentals=B_pad,
        bytes_accessed=B_pad * FLAT * itemsize + param_bytes + B_pad * OUT * 4,
    )

    def resident(shape):
        # Full-shape block, constant index map -> DMA'd once, stays in VMEM.
        return pl.BlockSpec(shape, lambda i: (0, 0))

    out = pl.pallas_call(
        bias_model_kernel,
        out_shape=jax.ShapeDtypeStruct((B_pad, OUT), jnp.float32),
        grid=grid,
        in_specs=[
            pl.BlockSpec((TB, FLAT), lambda i: (i, 0)),   # x: streamed + double-buffered
            resident((FLAT, H1)),                         # folded W1
            resident((1, H1)),
            resident((H1, H2)),
            resident((1, H2)),
            resident((H2, OUT)),
            resident((1, OUT)),
        ],
        out_specs=pl.BlockSpec((TB, OUT), lambda i: (i, 0)),
        compiler_params=pltpu.CompilerParams(
            dimension_semantics=("parallel",),        # megacore split on v7x; no-op on v5e/v6e
            vmem_limit_bytes=48 * 1024 * 1024,        # explicit: fits v7x's 64 MiB part
        ),
        cost_estimate=cost,
    )(x_flat, w1_folded, b1, w2, b2, w3, b3)
    return out[:B, 0]


def init_params(key):
    """Deterministic params. Weights are stored (in, out); biases are (1, out)."""
    k1, k2, k3, k4, k5, k6 = jax.random.split(key, 6)

    def uniform(k, shape, fan_in):
        bound = 1.0 / jnp.sqrt(fan_in)
        return jax.random.uniform(k, shape, jnp.float32, -bound, bound)

    w1 = uniform(k1, (IN_FEATURES, H1), IN_FEATURES)
    b1 = uniform(k2, (1, H1), IN_FEATURES)
    w2 = uniform(k3, (H1, H2), H1)
    b2 = uniform(k4, (1, H2), H1)
    w3 = uniform(k5, (H2, OUT), H2)
    b3 = uniform(k6, (1, OUT), H2)
    return (w1, b1, w2, b2, w3, b3)


if __name__ == "__main__":
    key = jax.random.PRNGKey(0)
    pkey, xkey = jax.random.split(key)

    params = init_params(pkey)

    B = 8
    x = jax.random.normal(xkey, (B, IN_FEATURES, INNER), dtype=jnp.float32)

    y = bias_model_forward(x, params)
    jax.block_until_ready(y)

    # Sanity: reference in plain JAX following the original (un-folded) math.
    xm = jnp.mean(x, axis=2)
    h1 = jnp.maximum(xm @ params[0] + params[1], 0.0)
    h2 = jnp.maximum(h1 @ params[2] + params[3], 0.0)
    ref = jax.nn.sigmoid((h2 @ params[4] + params[5]).reshape(-1))
    assert y.shape == (B,)
    # Tolerance covers the changed f32 summation order from folding the mean
    # into W1 plus MXU f32-pass differences vs. the XLA reference dot.
    assert jnp.allclose(y, ref, atol=2e-3, rtol=2e-3), (y, ref)

    print("KERNEL_OK")
</pallas_src>

<mosaic_0001>
module attributes {stable_mosaic.version = 11 : i64} {
  func.func @bias_model_kernel(%arg0: i32, %arg1: memref<8x11000xf32, #tpu.memory_space<vmem>>, %arg2: memref<11000x100xf32, #tpu.memory_space<vmem>>, %arg3: memref<1x100xf32, #tpu.memory_space<vmem>>, %arg4: memref<100x50xf32, #tpu.memory_space<vmem>>, %arg5: memref<1x50xf32, #tpu.memory_space<vmem>>, %arg6: memref<50x1xf32, #tpu.memory_space<vmem>>, %arg7: memref<1x1xf32, #tpu.memory_space<vmem>>, %arg8: memref<8x1xf32, #tpu.memory_space<vmem>>) attributes {dimension_semantics = [#tpu.dimension_semantics<parallel>], iteration_bounds = array<i64: 1>, scalar_prefetch = 0 : i64, scratch_operands = 0 : i64, tpu.core_type = #tpu.core_type<tc>, window_params = [{transform_indices = @transform_0, window_bounds = array<i64: 8, 11000>}, {pipeline_mode = #tpu.pipeline_mode<synchronous>, transform_indices = @transform_1, window_bounds = array<i64: 11000, 100>}, {pipeline_mode = #tpu.pipeline_mode<synchronous>, transform_indices = @transform_2, window_bounds = array<i64: 1, 100>}, {pipeline_mode = #tpu.pipeline_mode<synchronous>, transform_indices = @transform_3, window_bounds = array<i64: 100, 50>}, {pipeline_mode = #tpu.pipeline_mode<synchronous>, transform_indices = @transform_4, window_bounds = array<i64: 1, 50>}, {pipeline_mode = #tpu.pipeline_mode<synchronous>, transform_indices = @transform_5, window_bounds = array<i64: 50, 1>}, {pipeline_mode = #tpu.pipeline_mode<synchronous>, transform_indices = @transform_6, window_bounds = array<i64: 1, 1>}, {transform_indices = @transform_7, window_bounds = array<i64: 8, 1>}]} {
    %c0 = arith.constant 0 : index
    %c0_0 = arith.constant 0 : index
    %0 = vector.load %arg1[%c0, %c0_0] : memref<8x11000xf32, #tpu.memory_space<vmem>>, vector<8x11000xf32>
    %c0_1 = arith.constant 0 : index
    %c0_2 = arith.constant 0 : index
    %1 = vector.load %arg2[%c0_1, %c0_2] : memref<11000x100xf32, #tpu.memory_space<vmem>>, vector<11000x100xf32>
    %cst = arith.constant dense<0.000000e+00> : vector<8x100xf32>
    %2 = tpu.matmul %0, %1, %cst {dimension_numbers = #tpu.dot_dimension_numbers<[1], [0], [0], [1], [0, 0, 1, 1], [], []>} : vector<8x11000xf32>, vector<11000x100xf32>, vector<8x100xf32> -> vector<8x100xf32>
    %c0_3 = arith.constant 0 : index
    %c0_4 = arith.constant 0 : index
    %3 = vector.load %arg3[%c0_3, %c0_4] : memref<1x100xf32, #tpu.memory_space<vmem>>, vector<1x100xf32>
    %4 = vector.broadcast %3 : vector<1x100xf32> to vector<8x100xf32>
    %5 = arith.addf %2, %4 : vector<8x100xf32>
    %cst_5 = arith.constant 0.000000e+00 : f32
    %6 = vector.broadcast %cst_5 : f32 to vector<8x100xf32>
    %7 = arith.maximumf %5, %6 : vector<8x100xf32>
    %c0_6 = arith.constant 0 : index
    %c0_7 = arith.constant 0 : index
    %8 = vector.load %arg4[%c0_6, %c0_7] : memref<100x50xf32, #tpu.memory_space<vmem>>, vector<100x50xf32>
    %cst_8 = arith.constant dense<0.000000e+00> : vector<8x50xf32>
    %9 = tpu.matmul %7, %8, %cst_8 {dimension_numbers = #tpu.dot_dimension_numbers<[1], [0], [0], [1], [0, 0, 1, 1], [], []>} : vector<8x100xf32>, vector<100x50xf32>, vector<8x50xf32> -> vector<8x50xf32>
    %c0_9 = arith.constant 0 : index
    %c0_10 = arith.constant 0 : index
    %10 = vector.load %arg5[%c0_9, %c0_10] : memref<1x50xf32, #tpu.memory_space<vmem>>, vector<1x50xf32>
    %11 = vector.broadcast %10 : vector<1x50xf32> to vector<8x50xf32>
    %12 = arith.addf %9, %11 : vector<8x50xf32>
    %cst_11 = arith.constant 0.000000e+00 : f32
    %13 = vector.broadcast %cst_11 : f32 to vector<8x50xf32>
    %14 = arith.maximumf %12, %13 : vector<8x50xf32>
    %c0_12 = arith.constant 0 : index
    %c0_13 = arith.constant 0 : index
    %15 = vector.load %arg6[%c0_12, %c0_13] : memref<50x1xf32, #tpu.memory_space<vmem>>, vector<50x1xf32>
    %cst_14 = arith.constant dense<0.000000e+00> : vector<8x1xf32>
    %16 = tpu.matmul %14, %15, %cst_14 {dimension_numbers = #tpu.dot_dimension_numbers<[1], [0], [0], [1], [0, 0, 1, 1], [], []>} : vector<8x50xf32>, vector<50x1xf32>, vector<8x1xf32> -> vector<8x1xf32>
    %c0_15 = arith.constant 0 : index
    %c0_16 = arith.constant 0 : index
    %17 = vector.load %arg7[%c0_15, %c0_16] : memref<1x1xf32, #tpu.memory_space<vmem>>, vector<1x1xf32>
    %18 = vector.broadcast %17 : vector<1x1xf32> to vector<8x1xf32>
    %19 = arith.addf %16, %18 : vector<8x1xf32>
    %20 = arith.negf %19 : vector<8x1xf32>
    %21 = math.exp %20 : vector<8x1xf32>
    %cst_17 = arith.constant 1.000000e+00 : f32
    %22 = vector.broadcast %cst_17 : f32 to vector<8x1xf32>
    %23 = arith.addf %22, %21 : vector<8x1xf32>
    %24 = arith.divf %22, %23 : vector<8x1xf32>
    %c0_18 = arith.constant 0 : index
    %c0_19 = arith.constant 0 : index
    %25 = vector.load %arg8[%c0_18, %c0_19] : memref<8x1xf32, #tpu.memory_space<vmem>>, vector<8x1xf32>
    tpu.vector_store %arg8[%c0_18, %c0_19], %24 {strides = array<i32>} : memref<8x1xf32, #tpu.memory_space<vmem>>, vector<8x1xf32>,
    return
  }
  func.func @transform_0(%arg0: i32) -> (i32, i32) {
    %c0_i32 = arith.constant 0 : i32
    %c0_i32_0 = arith.constant 0 : i32
    return %arg0, %c0_i32 : i32, i32
  }
  func.func @transform_1(%arg0: i32) -> (i32, i32) {
    %c0_i32 = arith.constant 0 : i32
    %c0_i32_0 = arith.constant 0 : i32
    %c0_i32_1 = arith.constant 0 : i32
    return %c0_i32, %c0_i32_0 : i32, i32
  }
  func.func @transform_2(%arg0: i32) -> (i32, i32) {
    %c0_i32 = arith.constant 0 : i32
    %c0_i32_0 = arith.constant 0 : i32
    %c0_i32_1 = arith.constant 0 : i32
    return %c0_i32, %c0_i32_0 : i32, i32
  }
  func.func @transform_3(%arg0: i32) -> (i32, i32) {
    %c0_i32 = arith.constant 0 : i32
    %c0_i32_0 = arith.constant 0 : i32
    %c0_i32_1 = arith.constant 0 : i32
    return %c0_i32, %c0_i32_0 : i32, i32
  }
  func.func @transform_4(%arg0: i32) -> (i32, i32) {
    %c0_i32 = arith.constant 0 : i32
    %c0_i32_0 = arith.constant 0 : i32
    %c0_i32_1 = arith.constant 0 : i32
    return %c0_i32, %c0_i32_0 : i32, i32
  }
  func.func @transform_5(%arg0: i32) -> (i32, i32) {
    %c0_i32 = arith.constant 0 : i32
    %c0_i32_0 = arith.constant 0 : i32
    %c0_i32_1 = arith.constant 0 : i32
    return %c0_i32, %c0_i32_0 : i32, i32
  }
  func.func @transform_6(%arg0: i32) -> (i32, i32) {
    %c0_i32 = arith.constant 0 : i32
    %c0_i32_0 = arith.constant 0 : i32
    %c0_i32_1 = arith.constant 0 : i32
    return %c0_i32, %c0_i32_0 : i32, i32
  }
  func.func @transform_7(%arg0: i32) -> (i32, i32) {
    %c0_i32 = arith.constant 0 : i32
    %c0_i32_0 = arith.constant 0 : i32
    return %arg0, %c0_i32 : i32, i32
  }
}

</mosaic_0001>

<llo_original>
// kernel: tpu_custom_call.1
$region0: #{tpu_custom_call.1}
  #allocation0 [shape = 'u32[]', space=smem, size = 0x4, offset = 0x4, fixed_abs, tag = 'smem constant byte address 0x4 - core index']
  #allocation1 [shape = 'u32[144,128]{1,0:T(1,128)}', space=vmem, size = 0x12000, scoped, tag = 'internal scratch']
  #allocation2 [shape = 'f32[1,1]{1,0:T(1,128)S(1)}', space=vmem, size = 0x200, scoped, tag = 'scoped memory for tpu_custom_call.1']
  %s0 = inlined_call_operand.vmem [shape: f32[8,11000], index: 0, kind: input, shape index: {}]
  %s1 = inlined_call_operand.vmem [shape: f32[11000,100], index: 1, kind: input, shape index: {}]
  %s2 = inlined_call_operand.vmem [shape: f32[1,100], index: 2, kind: input, shape index: {}]
  %s3 = inlined_call_operand.vmem [shape: f32[100,50], index: 3, kind: input, shape index: {}]
  %s4 = inlined_call_operand.vmem [shape: f32[1,50], index: 4, kind: input, shape index: {}]
  %s5 = inlined_call_operand.vmem [shape: f32[50,1], index: 5, kind: input, shape index: {}]
  %s6 = inlined_call_operand.<no memory space> [shape: f32[1,1], index: 6, kind: input, shape index: {}]
  %s7 = inlined_call_operand.vmem [shape: f32[8,1], index: 7, kind: output, shape index: {}]
  %s8 = sld [smem:[#allocation0]]
  $region38: #{tpu_custom_call.1} parent=0
    _
  %s10 = ssub.s32 1, %s8
  %s11 = scalar_select 0, %s10, %s8
  %v12 = vstv %s6
  %13 = vst [vmem:[#allocation2] sm:$0x1] %v12
  // Predicated region
  $region2: #{tpu_custom_call.1} parent=0 // pred_check
    _
  $region3: #{tpu_custom_call.1} parent=0 // pred_check_branch
    %15 = sbr.rel (0) target = $region5
  $region4: #{tpu_custom_call.1} parent=0 // pred_region
    _
  $region5: #{tpu_custom_call.1} parent=0 // pred_fallthru
    _
  // Predicated region
  $region6: #{tpu_custom_call.1} parent=0 // pred_check
    _
  $region7: #{tpu_custom_call.1} parent=0 // pred_check_branch
    %17 = sbr.rel (0) target = $region9
  $region8: #{tpu_custom_call.1} parent=0 // pred_region
    _
  $region9: #{tpu_custom_call.1} parent=0 // pred_fallthru
    _
  // Predicated region
  $region10: #{tpu_custom_call.1} parent=0 // pred_check
    _
  $region11: #{tpu_custom_call.1} parent=0 // pred_check_branch
    %19 = sbr.rel (0) target = $region13
  $region12: #{tpu_custom_call.1} parent=0 // pred_region
    _
  $region13: #{tpu_custom_call.1} parent=0 // pred_fallthru
    _
  // Predicated region
  $region14: #{tpu_custom_call.1} parent=0 // pred_check
    _
  $region15: #{tpu_custom_call.1} parent=0 // pred_check_branch
    %21 = sbr.rel (0) target = $region17
  $region16: #{tpu_custom_call.1} parent=0 // pred_region
    _
  $region17: #{tpu_custom_call.1} parent=0 // pred_fallthru
    _
  // Predicated region
  $region18: #{tpu_custom_call.1} parent=0 // pred_check
    _
  $region19: #{tpu_custom_call.1} parent=0 // pred_check_branch
    %23 = sbr.rel (0) target = $region21
  $region20: #{tpu_custom_call.1} parent=0 // pred_region
    _
  $region21: #{tpu_custom_call.1} parent=0 // pred_fallthru
    _
  // Predicated region
  $region22: #{tpu_custom_call.1} parent=0 // pred_check
    _
  $region23: #{tpu_custom_call.1} parent=0 // pred_check_branch
    %25 = sbr.rel (0) target = $region25
  $region24: #{tpu_custom_call.1} parent=0 // pred_region
    _
  $region25: #{tpu_custom_call.1} parent=0 // pred_fallthru
    _
  // Predicated region
  $region26: #{tpu_custom_call.1} parent=0 // pred_check
    _
  $region27: #{tpu_custom_call.1} parent=0 // pred_check_branch
    %27 = sbr.rel (0) target = $region29
  $region28: #{tpu_custom_call.1} parent=0 // pred_region
    _
  $region29: #{tpu_custom_call.1} parent=0 // pred_fallthru
    _
  %v28 = vld [vmem:[%s0] sm:$0xff]
  %v29 = vld [vmem:[%s0 + $0x8] sm:$0xff]
  %v30 = vld [vmem:[%s0 + $0x10] sm:$0xff]
  %v31 = vld [vmem:[%s0 + $0x18] sm:$0xff]
  %v32 = vld [vmem:[%s0 + $0x20] sm:$0xff]
  %v33 = vld [vmem:[%s0 + $0x28] sm:$0xff]
  %v34 = vld [vmem:[%s0 + $0x30] sm:$0xff]
  %v35 = vld [vmem:[%s0 + $0x38] sm:$0xff]
  %v36 = vld [vmem:[%s0 + $0x40] sm:$0xff]
  %v37 = vld [vmem:[%s0 + $0x48] sm:$0xff]
  %v38 = vld [vmem:[%s0 + $0x50] sm:$0xff]
  %v39 = vld [vmem:[%s0 + $0x58] sm:$0xff]
  %v40 = vld [vmem:[%s0 + $0x60] sm:$0xff]
  %v41 = vld [vmem:[%s0 + $0x68] sm:$0xff]
  %v42 = vld [vmem:[%s0 + $0x70] sm:$0xff]
  %v43 = vld [vmem:[%s0 + $0x78] sm:$0xff]
  %v44 = vld [vmem:[%s0 + $0x80] sm:$0xff]
  %v45 = vld [vmem:[%s0 + $0x88] sm:$0xff]
  %v46 = vld [vmem:[%s0 + $0x90] sm:$0xff]
  %v47 = vld [vmem:[%s0 + $0x98] sm:$0xff]
  %v48 = vld [vmem:[%s0 + $0xa0] sm:$0xff]
  %v49 = vld [vmem:[%s0 + $0xa8] sm:$0xff]
  %v50 = vld [vmem:[%s0 + $0xb0] sm:$0xff]
  %v51 = vld [vmem:[%s0 + $0xb8] sm:$0xff]
  %v52 = vld [vmem:[%s0 + $0xc0] sm:$0xff]
  %v53 = vld [vmem:[%s0 + $0xc8] sm:$0xff]
  %v54 = vld [vmem:[%s0 + $0xd0] sm:$0xff]
  %v55 = vld [vmem:[%s0 + $0xd8] sm:$0xff]
  %v56 = vld [vmem:[%s0 + $0xe0] sm:$0xff]
  %v57 = vld [vmem:[%s0 + $0xe8] sm:$0xff]
  %v58 = vld [vmem:[%s0 + $0xf0] sm:$0xff]
  %v59 = vld [vmem:[%s0 + $0xf8] sm:$0xff]
  %v60 = vld [vmem:[%s0 + $0x100] sm:$0xff]
  %v61 = vld [vmem:[%s0 + $0x108] sm:$0xff]
  %v62 = vld [vmem:[%s0 + $0x110] sm:$0xff]
  %v63 = vld [vmem:[%s0 + $0x118] sm:$0xff]
  %v64 = vld [vmem:[%s0 + $0x120] sm:$0xff]
  %v65 = vld [vmem:[%s0 + $0x128] sm:$0xff]
  %v66 = vld [vmem:[%s0 + $0x130] sm:$0xff]
  %v67 = vld [vmem:[%s0 + $0x138] sm:$0xff]
  %v68 = vld [vmem:[%s0 + $0x140] sm:$0xff]
  %v69 = vld [vmem:[%s0 + $0x148] sm:$0xff]
  %v70 = vld [vmem:[%s0 + $0x150] sm:$0xff]
  %v71 = vld [vmem:[%s0 + $0x158] sm:$0xff]
  %v72 = vld [vmem:[%s0 + $0x160] sm:$0xff]
  %v73 = vld [vmem:[%s0 + $0x168] sm:$0xff]
  %v74 = vld [vmem:[%s0 + $0x170] sm:$0xff]
  %v75 = vld [vmem:[%s0 + $0x178] sm:$0xff]
  %v76 = vld [vmem:[%s0 + $0x180] sm:$0xff]
  %v77 = vld [vmem:[%s0 + $0x188] sm:$0xff]
  %v78 = vld [vmem:[%s0 + $0x190] sm:$0xff]
  %v79 = vld [vmem:[%s0 + $0x198] sm:$0xff]
  %v80 = vld [vmem:[%s0 + $0x1a0] sm:$0xff]
  %v81 = vld [vmem:[%s0 + $0x1a8] sm:$0xff]
  %v82 = vld [vmem:[%s0 + $0x1b0] sm:$0xff]
  %v83 = vld [vmem:[%s0 + $0x1b8] sm:$0xff]
  %v84 = vld [vmem:[%s0 + $0x1c0] sm:$0xff]
  %v85 = vld [vmem:[%s0 + $0x1c8] sm:$0xff]
  %v86 = vld [vmem:[%s0 + $0x1d0] sm:$0xff]
  %v87 = vld [vmem:[%s0 + $0x1d8] sm:$0xff]
  %v88 = vld [vmem:[%s0 + $0x1e0] sm:$0xff]
  %v89 = vld [vmem:[%s0 + $0x1e8] sm:$0xff]
  %v90 = vld [vmem:[%s0 + $0x1f0] sm:$0xff]
  %v91 = vld [vmem:[%s0 + $0x1f8] sm:$0xff]
  %v92 = vld [vmem:[%s0 + $0x200] sm:$0xff]
  %v93 = vld [vmem:[%s0 + $0x208] sm:$0xff]
  %v94 = vld [vmem:[%s0 + $0x210] sm:$0xff]
  %v95 = vld [vmem:[%s0 + $0x218] sm:$0xff]
  %v96 = vld [vmem:[%s0 + $0x220] sm:$0xff]
  %v97 = vld [vmem:[%s0 + $0x228] sm:$0xff]
  %v98 = vld [vmem:[%s0 + $0x230] sm:$0xff]
  %v99 = vld [vmem:[%s0 + $0x238] sm:$0xff]
  %v100 = vld [vmem:[%s0 + $0x240] sm:$0xff]
  %v101 = vld [vmem:[%s0 + $0x248] sm:$0xff]
  %v102 = vld [vmem:[%s0 + $0x250] sm:$0xff]
  %v103 = vld [vmem:[%s0 + $0x258] sm:$0xff]
  %v104 = vld [vmem:[%s0 + $0x260] sm:$0xff]
  %v105 = vld [vmem:[%s0 + $0x268] sm:$0xff]
  %v106 = vld [vmem:[%s0 + $0x270] sm:$0xff]
  %v107 = vld [vmem:[%s0 + $0x278] sm:$0xff]
  %v108 = vld [vmem:[%s0 + $0x280] sm:$0xff]
  %v109 = vld [vmem:[%s0 + $0x288] sm:$0xff]
  %v110 = vld [vmem:[%s0 + $0x290] sm:$0xff]
  %v111 = vld [vmem:[%s0 + $0x298] sm:$0xff]
  %v112 = vld [vmem:[%s0 + $0x2a0] sm:$0xff]
  %v113 = vld [vmem:[%s0 + $0x2a8] sm:$0xff]
  %v114 = vld [vmem:[%s1] sm:$0xff]
  %v115 = vld [vmem:[%s1 + $0x8] sm:$0xff]
  %v116 = vld [vmem:[%s1 + $0x10] sm:$0xff]
  %v117 = vld [vmem:[%s1 + $0x18] sm:$0xff]
  %v118 = vld [vmem:[%s1 + $0x20] sm:$0xff]
  %v119 = vld [vmem:[%s1 + $0x28] sm:$0xff]
  %v120 = vld [vmem:[%s1 + $0x30] sm:$0xff]
  %v121 = vld [vmem:[%s1 + $0x38] sm:$0xff]
  %v122 = vld [vmem:[%s1 + $0x40] sm:$0xff]
  %v123 = vld [vmem:[%s1 + $0x48] sm:$0xff]
  %v124 = vld [vmem:[%s1 + $0x50] sm:$0xff]
  %v125 = vld [vmem:[%s1 + $0x58] sm:$0xff]
  %v126 = vld [vmem:[%s1 + $0x60] sm:$0xff]
  %v127 = vld [vmem:[%s1 + $0x68] sm:$0xff]
  %v128 = vld [vmem:[%s1 + $0x70] sm:$0xff]
  %v129 = vld [vmem:[%s1 + $0x78] sm:$0xff]
  %v130 = vld [vmem:[%s1 + $0x80] sm:$0xff]
  %v131 = vld [vmem:[%s1 + $0x88] sm:$0xff]
  %v132 = vld [vmem:[%s1 + $0x90] sm:$0xff]
  %v133 = vld [vmem:[%s1 + $0x98] sm:$0xff]
  %v134 = vld [vmem:[%s1 + $0xa0] sm:$0xff]
  %v135 = vld [vmem:[%s1 + $0xa8] sm:$0xff]
  %v136 = vld [vmem:[%s1 + $0xb0] sm:$0xff]
  %v137 = vld [vmem:[%s1 + $0xb8] sm:$0xff]
  %v138 = vld [vmem:[%s1 + $0xc0] sm:$0xff]
  %v139 = vld [vmem:[%s1 + $0xc8] sm:$0xff]
  %v140 = vld [vmem:[%s1 + $0xd0] sm:$0xff]
  %v141 = vld [vmem:[%s1 + $0xd8] sm:$0xff]
  %v142 = vld [vmem:[%s1 + $0xe0] sm:$0xff]
  %v143 = vld [vmem:[%s1 + $0xe8] sm:$0xff]
  %v144 = vld [vmem:[%s1 + $0xf0] sm:$0xff]
  %v145 = vld [vmem:[%s1 + $0xf8] sm:$0xff]
  %v146 = vld [vmem:[%s1 + $0x100] sm:$0xff]
  %v147 = vld [vmem:[%s1 + $0x108] sm:$0xff]
  %v148 = vld [vmem:[%s1 + $0x110] sm:$0xff]
  %v149 = vld [vmem:[%s1 + $0x118] sm:$0xff]
  %v150 = vld [vmem:[%s1 + $0x120] sm:$0xff]
  %v151 = vld [vmem:[%s1 + $0x128] sm:$0xff]
  %v152 = vld [vmem:[%s1 + $0x130] sm:$0xff]
  %v153 = vld [vmem:[%s1 + $0x138] sm:$0xff]
  %v154 = vld [vmem:[%s1 + $0x140] sm:$0xff]
  %v155 = vld [vmem:[%s1 + $0x148] sm:$0xff]
  %v156 = vld [vmem:[%s1 + $0x150] sm:$0xff]
  %v157 = vld [vmem:[%s1 + $0x158] sm:$0xff]
  %v158 = vld [vmem:[%s1 + $0x160] sm:$0xff]
  %v159 = vld [vmem:[%s1 + $0x168] sm:$0xff]
  %v160 = vld [vmem:[%s1 + $0x170] sm:$0xff]
  %v161 = vld [vmem:[%s1 + $0x178] sm:$0xff]
  %v162 = vld [vmem:[%s1 + $0x180] sm:$0xff]
  %v163 = vld [vmem:[%s1 + $0x188] sm:$0xff]
  %v164 = vld [vmem:[%s1 + $0x190] sm:$0xff]
  %v165 = vld [vmem:[%s1 + $0x198] sm:$0xff]
  %v166 = vld [vmem:[%s1 + $0x1a0] sm:$0xff]
  %v167 = vld [vmem:[%s1 + $0x1a8] sm:$0xff]
  %v168 = vld [vmem:[%s1 + $0x1b0] sm:$0xff]
  %v169 = vld [vmem:[%s1 + $0x1b8] sm:$0xff]
  %v170 = vld [vmem:[%s1 + $0x1c0] sm:$0xff]
  %v171 = vld [vmem:[%s1 + $0x1c8] sm:$0xff]
  %v172 = vld [vmem:[%s1 + $0x1d0] sm:$0xff]
  %v173 = vld [vmem:[%s1 + $0x1d8] sm:$0xff]
  %v174 = vld [vmem:[%s1 + $0x1e0] sm:$0xff]
  %v175 = vld [vmem:[%s1 + $0x1e8] sm:$0xff]
  %v176 = vld [vmem:[%s1 + $0x1f0] sm:$0xff]
  %v177 = vld [vmem:[%s1 + $0x1f8] sm:$0xff]
  %v178 = vld [vmem:[%s1 + $0x200] sm:$0xff]
  %v179 = vld [vmem:[%s1 + $0x208] sm:$0xff]
  %v180 = vld [vmem:[%s1 + $0x210] sm:$0xff]
  %v181 = vld [vmem:[%s1 + $0x218] sm:$0xff]
  %v182 = vld [vmem:[%s1 + $0x220] sm:$0xff]
  %v183 = vld [vmem:[%s1 + $0x228] sm:$0xff]
  %v184 = vld [vmem:[%s1 + $0x230] sm:$0xff]
  %v185 = vld [vmem:[%s1 + $0x238] sm:$0xff]
  %v186 = vld [vmem:[%s1 + $0x240] sm:$0xff]
  %v187 = vld [vmem:[%s1 + $0x248] sm:$0xff]
  %v188 = vld [vmem:[%s1 + $0x250] sm:$0xff]
  %v189 = vld [vmem:[%s1 + $0x258] sm:$0xff]
  %v190 = vld [vmem:[%s1 + $0x260] sm:$0xff]
  %v191 = vld [vmem:[%s1 + $0x268] sm:$0xff]
  %v192 = vld [vmem:[%s1 + $0x270] sm:$0xff]
  %v193 = vld [vmem:[%s1 + $0x278] sm:$0xff]
  %v194 = vld [vmem:[%s1 + $0x280] sm:$0xff]
  %v195 = vld [vmem:[%s1 + $0x288] sm:$0xff]
  %v196 = vld [vmem:[%s1 + $0x290] sm:$0xff]
  %v197 = vld [vmem:[%s1 + $0x298] sm:$0xff]
  %v198 = vld [vmem:[%s1 + $0x2a0] sm:$0xff]
  %v199 = vld [vmem:[%s1 + $0x2a8] sm:$0xff]
  %v200 = vld [vmem:[%s1 + $0x2b0] sm:$0xff]
  %v201 = vld [vmem:[%s1 + $0x2b8] sm:$0xff]
  %v202 = vld [vmem:[%s1 + $0x2c0] sm:$0xff]
  %v203 = vld [vmem:[%s1 + $0x2c8] sm:$0xff]
  %v204 = vld [vmem:[%s1 + $0x2d0] sm:$0xff]
  %v205 = vld [vmem:[%s1 + $0x2d8] sm:$0xff]
  %v206 = vld [vmem:[%s1 + $0x2e0] sm:$0xff]
  %v207 = vld [vmem:[%s1 + $0x2e8] sm:$0xff]
  %v208 = vld [vmem:[%s1 + $0x2f0] sm:$0xff]
  %v209 = vld [vmem:[%s1 + $0x2f8] sm:$0xff]
  %v210 = vld [vmem:[%s1 + $0x300] sm:$0xff]
  %v211 = vld [vmem:[%s1 + $0x308] sm:$0xff]
  %v212 = vld [vmem:[%s1 + $0x310] sm:$0xff]
  %v213 = vld [vmem:[%s1 + $0x318] sm:$0xff]
  %v214 = vld [vmem:[%s1 + $0x320] sm:$0xff]
  %v215 = vld [vmem:[%s1 + $0x328] sm:$0xff]
  %v216 = vld [vmem:[%s1 + $0x330] sm:$0xff]
  %v217 = vld [vmem:[%s1 + $0x338] sm:$0xff]
  %v218 = vld [vmem:[%s1 + $0x340] sm:$0xff]
  %v219 = vld [vmem:[%s1 + $0x348] sm:$0xff]
  %v220 = vld [vmem:[%s1 + $0x350] sm:$0xff]
  %v221 = vld [vmem:[%s1 + $0x358] sm:$0xff]
  %v222 = vld [vmem:[%s1 + $0x360] sm:$0xff]
  %v223 = vld [vmem:[%s1 + $0x368] sm:$0xff]
  %v224 = vld [vmem:[%s1 + $0x370] sm:$0xff]
  %v225 = vld [vmem:[%s1 + $0x378] sm:$0xff]
  %v226 = vld [vmem:[%s1 + $0x380] sm:$0xff]
  %v227 = vld [vmem:[%s1 + $0x388] sm:$0xff]
  %v228 = vld [vmem:[%s1 + $0x390] sm:$0xff]
  %v229 = vld [vmem:[%s1 + $0x398] sm:$0xff]
  %v230 = vld [vmem:[%s1 + $0x3a0] sm:$0xff]
  %v231 = vld [vmem:[%s1 + $0x3a8] sm:$0xff]
  %v232 = vld [vmem:[%s1 + $0x3b0] sm:$0xff]
  %v233 = vld [vmem:[%s1 + $0x3b8] sm:$0xff]
  %v234 = vld [vmem:[%s1 + $0x3c0] sm:$0xff]
  %v235 = vld [vmem:[%s1 + $0x3c8] sm:$0xff]
  %v236 = vld [vmem:[%s1 + $0x3d0] sm:$0xff]
  %v237 = vld [vmem:[%s1 + $0x3d8] sm:$0xff]
  %v238 = vld [vmem:[%s1 + $0x3e0] sm:$0xff]
  %v239 = vld [vmem:[%s1 + $0x3e8] sm:$0xff]
  %v240 = vld [vmem:[%s1 + $0x3f0] sm:$0xff]
  %v241 = vld [vmem:[%s1 + $0x3f8] sm:$0xff]
  %v242 = vld [vmem:[%s1 + $0x400] sm:$0xff]
  %v243 = vld [vmem:[%s1 + $0x408] sm:$0xff]
  %v244 = vld [vmem:[%s1 + $0x410] sm:$0xff]
  %v245 = vld [vmem:[%s1 + $0x418] sm:$0xff]
  %v246 = vld [vmem:[%s1 + $0x420] sm:$0xff]
  %v247 = vld [vmem:[%s1 + $0x428] sm:$0xff]
  %v248 = vld [vmem:[%s1 + $0x430] sm:$0xff]
  %v249 = vld [vmem:[%s1 + $0x438] sm:$0xff]
  %v250 = vld [vmem:[%s1 + $0x440] sm:$0xff]
  %v251 = vld [vmem:[%s1 + $0x448] sm:$0xff]
  %v252 = vld [vmem:[%s1 + $0x450] sm:$0xff]
  %v253 = vld [vmem:[%s1 + $0x458] sm:$0xff]
  %v254 = vld [vmem:[%s1 + $0x460] sm:$0xff]
  %v255 = vld [vmem:[%s1 + $0x468] sm:$0xff]
  %v256 = vld [vmem:[%s1 + $0x470] sm:$0xff]
  %v257 = vld [vmem:[%s1 + $0x478] sm:$0xff]
  %v258 = vld [vmem:[%s1 + $0x480] sm:$0xff]
  %v259 = vld [vmem:[%s1 + $0x488] sm:$0xff]
  %v260 = vld [vmem:[%s1 + $0x490] sm:$0xff]
  %v261 = vld [vmem:[%s1 + $0x498] sm:$0xff]
  %v262 = vld [vmem:[%s1 + $0x4a0] sm:$0xff]
  %v263 = vld [vmem:[%s1 + $0x4a8] sm:$0xff]
  %v264 = vld [vmem:[%s1 + $0x4b0] sm:$0xff]
  %v265 = vld [vmem:[%s1 + $0x4b8] sm:$0xff]
  %v266 = vld [vmem:[%s1 + $0x4c0] sm:$0xff]
  %v267 = vld [vmem:[%s1 + $0x4c8] sm:$0xff]
  %v268 = vld [vmem:[%s1 + $0x4d0] sm:$0xff]
  %v269 = vld [vmem:[%s1 + $0x4d8] sm:$0xff]
  %v270 = vld [vmem:[%s1 + $0x4e0] sm:$0xff]
  %v271 = vld [vmem:[%s1 + $0x4e8] sm:$0xff]
  %v272 = vld [vmem:[%s1 + $0x4f0] sm:$0xff]
  %v273 = vld [vmem:[%s1 + $0x4f8] sm:$0xff]
  %v274 = vld [vmem:[%s1 + $0x500] sm:$0xff]
  %v275 = vld [vmem:[%s1 + $0x508] sm:$0xff]
  %v276 = vld [vmem:[%s1 + $0x510] sm:$0xff]
  %v277 = vld [vmem:[%s1 + $0x518] sm:$0xff]
  %v278 = vld [vmem:[%s1 + $0x520] sm:$0xff]
  %v279 = vld [vmem:[%s1 + $0x528] sm:$0xff]
  %v280 = vld [vmem:[%s1 + $0x530] sm:$0xff]
  %v281 = vld [vmem:[%s1 + $0x538] sm:$0xff]
  %v282 = vld [vmem:[%s1 + $0x540] sm:$0xff]
  %v283 = vld [vmem:[%s1 + $0x548] sm:$0xff]
  %v284 = vld [vmem:[%s1 + $0x550] sm:$0xff]
  %v285 = vld [vmem:[%s1 + $0x558] sm:$0xff]
  %v286 = vld [vmem:[%s1 + $0x560] sm:$0xff]
  %v287 = vld [vmem:[%s1 + $0x568] sm:$0xff]
  %v288 = vld [vmem:[%s1 + $0x570] sm:$0xff]
  %v289 = vld [vmem:[%s1 + $0x578] sm:$0xff]
  %v290 = vld [vmem:[%s1 + $0x580] sm:$0xff]
  %v291 = vld [vmem:[%s1 + $0x588] sm:$0xff]
  %v292 = vld [vmem:[%s1 + $0x590] sm:$0xff]
  %v293 = vld [vmem:[%s1 + $0x598] sm:$0xff]
  %v294 = vld [vmem:[%s1 + $0x5a0] sm:$0xff]
  %v295 = vld [vmem:[%s1 + $0x5a8] sm:$0xff]
  %v296 = vld [vmem:[%s1 + $0x5b0] sm:$0xff]
  %v297 = vld [vmem:[%s1 + $0x5b8] sm:$0xff]
  %v298 = vld [vmem:[%s1 + $0x5c0] sm:$0xff]
  %v299 = vld [vmem:[%s1 + $0x5c8] sm:$0xff]
  %v300 = vld [vmem:[%s1 + $0x5d0] sm:$0xff]
  %v301 = vld [vmem:[%s1 + $0x5d8] sm:$0xff]
  %v302 = vld [vmem:[%s1 + $0x5e0] sm:$0xff]
  %v303 = vld [vmem:[%s1 + $0x5e8] sm:$0xff]
  %v304 = vld [vmem:[%s1 + $0x5f0] sm:$0xff]
  %v305 = vld [vmem:[%s1 + $0x5f8] sm:$0xff]
  %v306 = vld [vmem:[%s1 + $0x600] sm:$0xff]
  %v307 = vld [vmem:[%s1 + $0x608] sm:$0xff]
  %v308 = vld [vmem:[%s1 + $0x610] sm:$0xff]
  %v309 = vld [vmem:[%s1 + $0x618] sm:$0xff]
  %v310 = vld [vmem:[%s1 + $0x620] sm:$0xff]
  %v311 = vld [vmem:[%s1 + $0x628] sm:$0xff]
  %v312 = vld [vmem:[%s1 + $0x630] sm:$0xff]
  %v313 = vld [vmem:[%s1 + $0x638] sm:$0xff]
  %v314 = vld [vmem:[%s1 + $0x640] sm:$0xff]
  %v315 = vld [vmem:[%s1 + $0x648] sm:$0xff]
  %v316 = vld [vmem:[%s1 + $0x650] sm:$0xff]
  %v317 = vld [vmem:[%s1 + $0x658] sm:$0xff]
  %v318 = vld [vmem:[%s1 + $0x660] sm:$0xff]
  %v319 = vld [vmem:[%s1 + $0x668] sm:$0xff]
  %v320 = vld [vmem:[%s1 + $0x670] sm:$0xff]
  %v321 = vld [vmem:[%s1 + $0x678] sm:$0xff]
  %v322 = vld [vmem:[%s1 + $0x680] sm:$0xff]
  %v323 = vld [vmem:[%s1 + $0x688] sm:$0xff]
  %v324 = vld [vmem:[%s1 + $0x690] sm:$0xff]
  %v325 = vld [vmem:[%s1 + $0x698] sm:$0xff]
  %v326 = vld [vmem:[%s1 + $0x6a0] sm:$0xff]
  %v327 = vld [vmem:[%s1 + $0x6a8] sm:$0xff]
  %v328 = vld [vmem:[%s1 + $0x6b0] sm:$0xff]
  %v329 = vld [vmem:[%s1 + $0x6b8] sm:$0xff]
  %v330 = vld [vmem:[%s1 + $0x6c0] sm:$0xff]
  %v331 = vld [vmem:[%s1 + $0x6c8] sm:$0xff]
  %v332 = vld [vmem:[%s1 + $0x6d0] sm:$0xff]
  %v333 = vld [vmem:[%s1 + $0x6d8] sm:$0xff]
  %v334 = vld [vmem:[%s1 + $0x6e0] sm:$0xff]
  %v335 = vld [vmem:[%s1 + $0x6e8] sm:$0xff]
  %v336 = vld [vmem:[%s1 + $0x6f0] sm:$0xff]
  %v337 = vld [vmem:[%s1 + $0x6f8] sm:$0xff]
  %v338 = vld [vmem:[%s1 + $0x700] sm:$0xff]
  %v339 = vld [vmem:[%s1 + $0x708] sm:$0xff]
  %v340 = vld [vmem:[%s1 + $0x710] sm:$0xff]
  %v341 = vld [vmem:[%s1 + $0x718] sm:$0xff]
  %v342 = vld [vmem:[%s1 + $0x720] sm:$0xff]
  %v343 = vld [vmem:[%s1 + $0x728] sm:$0xff]
  %v344 = vld [vmem:[%s1 + $0x730] sm:$0xff]
  %v345 = vld [vmem:[%s1 + $0x738] sm:$0xff]
  %v346 = vld [vmem:[%s1 + $0x740] sm:$0xff]
  %v347 = vld [vmem:[%s1 + $0x748] sm:$0xff]
  %v348 = vld [vmem:[%s1 + $0x750] sm:$0xff]
  %v349 = vld [vmem:[%s1 + $0x758] sm:$0xff]
  %v350 = vld [vmem:[%s1 + $0x760] sm:$0xff]
  %v351 = vld [vmem:[%s1 + $0x768] sm:$0xff]
  %v352 = vld [vmem:[%s1 + $0x770] sm:$0xff]
  %v353 = vld [vmem:[%s1 + $0x778] sm:$0xff]
  %v354 = vld [vmem:[%s1 + $0x780] sm:$0xff]
  %v355 = vld [vmem:[%s1 + $0x788] sm:$0xff]
  %v356 = vld [vmem:[%s1 + $0x790] sm:$0xff]
  %v357 = vld [vmem:[%s1 + $0x798] sm:$0xff]
  %v358 = vld [vmem:[%s1 + $0x7a0] sm:$0xff]
  %v359 = vld [vmem:[%s1 + $0x7a8] sm:$0xff]
  %v360 = vld [vmem:[%s1 + $0x7b0] sm:$0xff]
  %v361 = vld [vmem:[%s1 + $0x7b8] sm:$0xff]
  %v362 = vld [vmem:[%s1 + $0x7c0] sm:$0xff]
  %v363 = vld [vmem:[%s1 + $0x7c8] sm:$0xff]
  %v364 = vld [vmem:[%s1 + $0x7d0] sm:$0xff]
  %v365 = vld [vmem:[%s1 + $0x7d8] sm:$0xff]
  %v366 = vld [vmem:[%s1 + $0x7e0] sm:$0xff]
  %v367 = vld [vmem:[%s1 + $0x7e8] sm:$0xff]
  %v368 = vld [vmem:[%s1 + $0x7f0] sm:$0xff]
  %v369 = vld [vmem:[%s1 + $0x7f8] sm:$0xff]
  %v370 = vld [vmem:[%s1 + $0x800] sm:$0xff]
  %v371 = vld [vmem:[%s1 + $0x808] sm:$0xff]
  %v372 = vld [vmem:[%s1 + $0x810] sm:$0xff]
  %v373 = vld [vmem:[%s1 + $0x818] sm:$0xff]
  %v374 = vld [vmem:[%s1 + $0x820] sm:$0xff]
  %v375 = vld [vmem:[%s1 + $0x828] sm:$0xff]
  %v376 = vld [vmem:[%s1 + $0x830] sm:$0xff]
  %v377 = vld [vmem:[%s1 + $0x838] sm:$0xff]
  %v378 = vld [vmem:[%s1 + $0x840] sm:$0xff]
  %v379 = vld [vmem:[%s1 + $0x848] sm:$0xff]
  %v380 = vld [vmem:[%s1 + $0x850] sm:$0xff]
  %v381 = vld [vmem:[%s1 + $0x858] sm:$0xff]
  %v382 = vld [vmem:[%s1 + $0x860] sm:$0xff]
  %v383 = vld [vmem:[%s1 + $0x868] sm:$0xff]
  %v384 = vld [vmem:[%s1 + $0x870] sm:$0xff]
  %v385 = vld [vmem:[%s1 + $0x878] sm:$0xff]
  %v386 = vld [vmem:[%s1 + $0x880] sm:$0xff]
  %v387 = vld [vmem:[%s1 + $0x888] sm:$0xff]
  %v388 = vld [vmem:[%s1 + $0x890] sm:$0xff]
  %v389 = vld [vmem:[%s1 + $0x898] sm:$0xff]
  %v390 = vld [vmem:[%s1 + $0x8a0] sm:$0xff]
  %v391 = vld [vmem:[%s1 + $0x8a8] sm:$0xff]
  %v392 = vld [vmem:[%s1 + $0x8b0] sm:$0xff]
  %v393 = vld [vmem:[%s1 + $0x8b8] sm:$0xff]
  %v394 = vld [vmem:[%s1 + $0x8c0] sm:$0xff]
  %v395 = vld [vmem:[%s1 + $0x8c8] sm:$0xff]
  %v396 = vld [vmem:[%s1 + $0x8d0] sm:$0xff]
  %v397 = vld [vmem:[%s1 + $0x8d8] sm:$0xff]
  %v398 = vld [vmem:[%s1 + $0x8e0] sm:$0xff]
  %v399 = vld [vmem:[%s1 + $0x8e8] sm:$0xff]
  %v400 = vld [vmem:[%s1 + $0x8f0] sm:$0xff]
  %v401 = vld [vmem:[%s1 + $0x8f8] sm:$0xff]
  %v402 = vld [vmem:[%s1 + $0x900] sm:$0xff]
  %v403 = vld [vmem:[%s1 + $0x908] sm:$0xff]
  %v404 = vld [vmem:[%s1 + $0x910] sm:$0xff]
  %v405 = vld [vmem:[%s1 + $0x918] sm:$0xff]
  %v406 = vld [vmem:[%s1 + $0x920] sm:$0xff]
  %v407 = vld [vmem:[%s1 + $0x928] sm:$0xff]
  %v408 = vld [vmem:[%s1 + $0x930] sm:$0xff]
  %v409 = vld [vmem:[%s1 + $0x938] sm:$0xff]
  %v410 = vld [vmem:[%s1 + $0x940] sm:$0xff]
  %v411 = vld [vmem:[%s1 + $0x948] sm:$0xff]
  %v412 = vld [vmem:[%s1 + $0x950] sm:$0xff]
  %v413 = vld [vmem:[%s1 + $0x958] sm:$0xff]
  %v414 = vld [vmem:[%s1 + $0x960] sm:$0xff]
  %v415 = vld [vmem:[%s1 + $0x968] sm:$0xff]
  %v416 = vld [vmem:[%s1 + $0x970] sm:$0xff]
  %v417 = vld [vmem:[%s1 + $0x978] sm:$0xff]
  %v418 = vld [vmem:[%s1 + $0x980] sm:$0xff]
  %v419 = vld [vmem:[%s1 + $0x988] sm:$0xff]
  %v420 = vld [vmem:[%s1 + $0x990] sm:$0xff]
  %v421 = vld [vmem:[%s1 + $0x998] sm:$0xff]
  %v422 = vld [vmem:[%s1 + $0x9a0] sm:$0xff]
  %v423 = vld [vmem:[%s1 + $0x9a8] sm:$0xff]
  %v424 = vld [vmem:[%s1 + $0x9b0] sm:$0xff]
  %v425 = vld [vmem:[%s1 + $0x9b8] sm:$0xff]
  %v426 = vld [vmem:[%s1 + $0x9c0] sm:$0xff]
  %v427 = vld [vmem:[%s1 + $0x9c8] sm:$0xff]
  %v428 = vld [vmem:[%s1 + $0x9d0] sm:$0xff]
  %v429 = vld [vmem:[%s1 + $0x9d8] sm:$0xff]
  %v430 = vld [vmem:[%s1 + $0x9e0] sm:$0xff]
  %v431 = vld [vmem:[%s1 + $0x9e8] sm:$0xff]
  %v432 = vld [vmem:[%s1 + $0x9f0] sm:$0xff]
  %v433 = vld [vmem:[%s1 + $0x9f8] sm:$0xff]
  %v434 = vld [vmem:[%s1 + $0xa00] sm:$0xff]
  %v435 = vld [vmem:[%s1 + $0xa08] sm:$0xff]
  %v436 = vld [vmem:[%s1 + $0xa10] sm:$0xff]
  %v437 = vld [vmem:[%s1 + $0xa18] sm:$0xff]
  %v438 = vld [vmem:[%s1 + $0xa20] sm:$0xff]
  %v439 = vld [vmem:[%s1 + $0xa28] sm:$0xff]
  %v440 = vld [vmem:[%s1 + $0xa30] sm:$0xff]
  %v441 = vld [vmem:[%s1 + $0xa38] sm:$0xff]
  %v442 = vld [vmem:[%s1 + $0xa40] sm:$0xff]
  %v443 = vld [vmem:[%s1 + $0xa48] sm:$0xff]
  %v444 = vld [vmem:[%s1 + $0xa50] sm:$0xff]
  %v445 = vld [vmem:[%s1 + $0xa58] sm:$0xff]
  %v446 = vld [vmem:[%s1 + $0xa60] sm:$0xff]
  %v447 = vld [vmem:[%s1 + $0xa68] sm:$0xff]
  %v448 = vld [vmem:[%s1 + $0xa70] sm:$0xff]
  %v449 = vld [vmem:[%s1 + $0xa78] sm:$0xff]
  %v450 = vld [vmem:[%s1 + $0xa80] sm:$0xff]
  %v451 = vld [vmem:[%s1 + $0xa88] sm:$0xff]
  %v452 = vld [vmem:[%s1 + $0xa90] sm:$0xff]
  %v453 = vld [vmem:[%s1 + $0xa98] sm:$0xff]
  %v454 = vld [vmem:[%s1 + $0xaa0] sm:$0xff]
  %v455 = vld [vmem:[%s1 + $0xaa8] sm:$0xff]
  %v456 = vld [vmem:[%s1 + $0xab0] sm:$0xff]
  %v457 = vld [vmem:[%s1 + $0xab8] sm:$0xff]
  %v458 = vld [vmem:[%s1 + $0xac0] sm:$0xff]
  %v459 = vld [vmem:[%s1 + $0xac8] sm:$0xff]
  %v460 = vld [vmem:[%s1 + $0xad0] sm:$0xff]
  %v461 = vld [vmem:[%s1 + $0xad8] sm:$0xff]
  %v462 = vld [vmem:[%s1 + $0xae0] sm:$0xff]
  %v463 = vld [vmem:[%s1 + $0xae8] sm:$0xff]
  %v464 = vld [vmem:[%s1 + $0xaf0] sm:$0xff]
  %v465 = vld [vmem:[%s1 + $0xaf8] sm:$0xff]
  %v466 = vld [vmem:[%s1 + $0xb00] sm:$0xff]
  %v467 = vld [vmem:[%s1 + $0xb08] sm:$0xff]
  %v468 = vld [vmem:[%s1 + $0xb10] sm:$0xff]
  %v469 = vld [vmem:[%s1 + $0xb18] sm:$0xff]
  %v470 = vld [vmem:[%s1 + $0xb20] sm:$0xff]
  %v471 = vld [vmem:[%s1 + $0xb28] sm:$0xff]
  %v472 = vld [vmem:[%s1 + $0xb30] sm:$0xff]
  %v473 = vld [vmem:[%s1 + $0xb38] sm:$0xff]
  %v474 = vld [vmem:[%s1 + $0xb40] sm:$0xff]
  %v475 = vld [vmem:[%s1 + $0xb48] sm:$0xff]
  %v476 = vld [vmem:[%s1 + $0xb50] sm:$0xff]
  %v477 = vld [vmem:[%s1 + $0xb58] sm:$0xff]
  %v478 = vld [vmem:[%s1 + $0xb60] sm:$0xff]
  %v479 = vld [vmem:[%s1 + $0xb68] sm:$0xff]
  %v480 = vld [vmem:[%s1 + $0xb70] sm:$0xff]
  %v481 = vld [vmem:[%s1 + $0xb78] sm:$0xff]
  %v482 = vld [vmem:[%s1 + $0xb80] sm:$0xff]
  %v483 = vld [vmem:[%s1 + $0xb88] sm:$0xff]
  %v484 = vld [vmem:[%s1 + $0xb90] sm:$0xff]
  %v485 = vld [vmem:[%s1 + $0xb98] sm:$0xff]
  %v486 = vld [vmem:[%s1 + $0xba0] sm:$0xff]
  %v487 = vld [vmem:[%s1 + $0xba8] sm:$0xff]
  %v488 = vld [vmem:[%s1 + $0xbb0] sm:$0xff]
  %v489 = vld [vmem:[%s1 + $0xbb8] sm:$0xff]
  %v490 = vld [vmem:[%s1 + $0xbc0] sm:$0xff]
  %v491 = vld [vmem:[%s1 + $0xbc8] sm:$0xff]
  %v492 = vld [vmem:[%s1 + $0xbd0] sm:$0xff]
  %v493 = vld [vmem:[%s1 + $0xbd8] sm:$0xff]
  %v494 = vld [vmem:[%s1 + $0xbe0] sm:$0xff]
  %v495 = vld [vmem:[%s1 + $0xbe8] sm:$0xff]
  %v496 = vld [vmem:[%s1 + $0xbf0] sm:$0xff]
  %v497 = vld [vmem:[%s1 + $0xbf8] sm:$0xff]
  %v498 = vld [vmem:[%s1 + $0xc00] sm:$0xff]
  %v499 = vld [vmem:[%s1 + $0xc08] sm:$0xff]
  %v500 = vld [vmem:[%s1 + $0xc10] sm:$0xff]
  %v501 = vld [vmem:[%s1 + $0xc18] sm:$0xff]
  %v502 = vld [vmem:[%s1 + $0xc20] sm:$0xff]
  %v503 = vld [vmem:[%s1 + $0xc28] sm:$0xff]
  %v504 = vld [vmem:[%s1 + $0xc30] sm:$0xff]
  %v505 = vld [vmem:[%s1 + $0xc38] sm:$0xff]
  %v506 = vld [vmem:[%s1 + $0xc40] sm:$0xff]
  %v507 = vld [vmem:[%s1 + $0xc48] sm:$0xff]
  %v508 = vld [vmem:[%s1 + $0xc50] sm:$0xff]
  %v509 = vld [vmem:[%s1 + $0xc58] sm:$0xff]
  %v510 = vld [vmem:[%s1 + $0xc60] sm:$0xff]
  %v511 = vld [vmem:[%s1 + $0xc68] sm:$0xff]
  %v512 = vld [vmem:[%s1 + $0xc70] sm:$0xff]
  %v513 = vld [vmem:[%s1 + $0xc78] sm:$0xff]
  %v514 = vld [vmem:[%s1 + $0xc80] sm:$0xff]
  %v515 = vld [vmem:[%s1 + $0xc88] sm:$0xff]
  %v516 = vld [vmem:[%s1 + $0xc90] sm:$0xff]
  %v517 = vld [vmem:[%s1 + $0xc98] sm:$0xff]
  %v518 = vld [vmem:[%s1 + $0xca0] sm:$0xff]
  %v519 = vld [vmem:[%s1 + $0xca8] sm:$0xff]
  %v520 = vld [vmem:[%s1 + $0xcb0] sm:$0xff]
  %v521 = vld [vmem:[%s1 + $0xcb8] sm:$0xff]
  %v522 = vld [vmem:[%s1 + $0xcc0] sm:$0xff]
  %v523 = vld [vmem:[%s1 + $0xcc8] sm:$0xff]
  %v524 = vld [vmem:[%s1 + $0xcd0] sm:$0xff]
  %v525 = vld [vmem:[%s1 + $0xcd8] sm:$0xff]
  %v526 = vld [vmem:[%s1 + $0xce0] sm:$0xff]
  %v527 = vld [vmem:[%s1 + $0xce8] sm:$0xff]
  %v528 = vld [vmem:[%s1 + $0xcf0] sm:$0xff]
  %v529 = vld [vmem:[%s1 + $0xcf8] sm:$0xff]
  %v530 = vld [vmem:[%s1 + $0xd00] sm:$0xff]
  %v531 = vld [vmem:[%s1 + $0xd08] sm:$0xff]
  %v532 = vld [vmem:[%s1 + $0xd10] sm:$0xff]
  %v533 = vld [vmem:[%s1 + $0xd18] sm:$0xff]
  %v534 = vld [vmem:[%s1 + $0xd20] sm:$0xff]
  %v535 = vld [vmem:[%s1 + $0xd28] sm:$0xff]
  %v536 = vld [vmem:[%s1 + $0xd30] sm:$0xff]
  %v537 = vld [vmem:[%s1 + $0xd38] sm:$0xff]
  %v538 = vld [vmem:[%s1 + $0xd40] sm:$0xff]
  %v539 = vld [vmem:[%s1 + $0xd48] sm:$0xff]
  %v540 = vld [vmem:[%s1 + $0xd50] sm:$0xff]
  %v541 = vld [vmem:[%s1 + $0xd58] sm:$0xff]
  %v542 = vld [vmem:[%s1 + $0xd60] sm:$0xff]
  %v543 = vld [vmem:[%s1 + $0xd68] sm:$0xff]
  %v544 = vld [vmem:[%s1 + $0xd70] sm:$0xff]
  %v545 = vld [vmem:[%s1 + $0xd78] sm:$0xff]
  %v546 = vld [vmem:[%s1 + $0xd80] sm:$0xff]
  %v547 = vld [vmem:[%s1 + $0xd88] sm:$0xff]
  %v548 = vld [vmem:[%s1 + $0xd90] sm:$0xff]
  %v549 = vld [vmem:[%s1 + $0xd98] sm:$0xff]
  %v550 = vld [vmem:[%s1 + $0xda0] sm:$0xff]
  %v551 = vld [vmem:[%s1 + $0xda8] sm:$0xff]
  %v552 = vld [vmem:[%s1 + $0xdb0] sm:$0xff]
  %v553 = vld [vmem:[%s1 + $0xdb8] sm:$0xff]
  %v554 = vld [vmem:[%s1 + $0xdc0] sm:$0xff]
  %v555 = vld [vmem:[%s1 + $0xdc8] sm:$0xff]
  %v556 = vld [vmem:[%s1 + $0xdd0] sm:$0xff]
  %v557 = vld [vmem:[%s1 + $0xdd8] sm:$0xff]
  %v558 = vld [vmem:[%s1 + $0xde0] sm:$0xff]
  %v559 = vld [vmem:[%s1 + $0xde8] sm:$0xff]
  %v560 = vld [vmem:[%s1 + $0xdf0] sm:$0xff]
  %v561 = vld [vmem:[%s1 + $0xdf8] sm:$0xff]
  %v562 = vld [vmem:[%s1 + $0xe00] sm:$0xff]
  %v563 = vld [vmem:[%s1 + $0xe08] sm:$0xff]
  %v564 = vld [vmem:[%s1 + $0xe10] sm:$0xff]
  %v565 = vld [vmem:[%s1 + $0xe18] sm:$0xff]
  %v566 = vld [vmem:[%s1 + $0xe20] sm:$0xff]
  %v567 = vld [vmem:[%s1 + $0xe28] sm:$0xff]
  %v568 = vld [vmem:[%s1 + $0xe30] sm:$0xff]
  %v569 = vld [vmem:[%s1 + $0xe38] sm:$0xff]
  %v570 = vld [vmem:[%s1 + $0xe40] sm:$0xff]
  %v571 = vld [vmem:[%s1 + $0xe48] sm:$0xff]
  %v572 = vld [vmem:[%s1 + $0xe50] sm:$0xff]
  %v573 = vld [vmem:[%s1 + $0xe58] sm:$0xff]
  %v574 = vld [vmem:[%s1 + $0xe60] sm:$0xff]
  %v575 = vld [vmem:[%s1 + $0xe68] sm:$0xff]
  %v576 = vld [vmem:[%s1 + $0xe70] sm:$0xff]
  %v577 = vld [vmem:[%s1 + $0xe78] sm:$0xff]
  %v578 = vld [vmem:[%s1 + $0xe80] sm:$0xff]
  %v579 = vld [vmem:[%s1 + $0xe88] sm:$0xff]
  %v580 = vld [vmem:[%s1 + $0xe90] sm:$0xff]
  %v581 = vld [vmem:[%s1 + $0xe98] sm:$0xff]
  %v582 = vld [vmem:[%s1 + $0xea0] sm:$0xff]
  %v583 = vld [vmem:[%s1 + $0xea8] sm:$0xff]
  %v584 = vld [vmem:[%s1 + $0xeb0] sm:$0xff]
  %v585 = vld [vmem:[%s1 + $0xeb8] sm:$0xff]
  %v586 = vld [vmem:[%s1 + $0xec0] sm:$0xff]
  %v587 = vld [vmem:[%s1 + $0xec8] sm:$0xff]
  %v588 = vld [vmem:[%s1 + $0xed0] sm:$0xff]
  %v589 = vld [vmem:[%s1 + $0xed8] sm:$0xff]
  %v590 = vld [vmem:[%s1 + $0xee0] sm:$0xff]
  %v591 = vld [vmem:[%s1 + $0xee8] sm:$0xff]
  %v592 = vld [vmem:[%s1 + $0xef0] sm:$0xff]
  %v593 = vld [vmem:[%s1 + $0xef8] sm:$0xff]
  %v594 = vld [vmem:[%s1 + $0xf00] sm:$0xff]
  %v595 = vld [vmem:[%s1 + $0xf08] sm:$0xff]
  %v596 = vld [vmem:[%s1 + $0xf10] sm:$0xff]
  %v597 = vld [vmem:[%s1 + $0xf18] sm:$0xff]
  %v598 = vld [vmem:[%s1 + $0xf20] sm:$0xff]
  %v599 = vld [vmem:[%s1 + $0xf28] sm:$0xff]
  %v600 = vld [vmem:[%s1 + $0xf30] sm:$0xff]
  %v601 = vld [vmem:[%s1 + $0xf38] sm:$0xff]
  %v602 = vld [vmem:[%s1 + $0xf40] sm:$0xff]
  %v603 = vld [vmem:[%s1 + $0xf48] sm:$0xff]
  %v604 = vld [vmem:[%s1 + $0xf50] sm:$0xff]
  %v605 = vld [vmem:[%s1 + $0xf58] sm:$0xff]
  %v606 = vld [vmem:[%s1 + $0xf60] sm:$0xff]
  %v607 = vld [vmem:[%s1 + $0xf68] sm:$0xff]
  %v608 = vld [vmem:[%s1 + $0xf70] sm:$0xff]
  %v609 = vld [vmem:[%s1 + $0xf78] sm:$0xff]
  %v610 = vld [vmem:[%s1 + $0xf80] sm:$0xff]
  %v611 = vld [vmem:[%s1 + $0xf88] sm:$0xff]
  %v612 = vld [vmem:[%s1 + $0xf90] sm:$0xff]
  %v613 = vld [vmem:[%s1 + $0xf98] sm:$0xff]
  %v614 = vld [vmem:[%s1 + $0xfa0] sm:$0xff]
  %v615 = vld [vmem:[%s1 + $0xfa8] sm:$0xff]
  %v616 = vld [vmem:[%s1 + $0xfb0] sm:$0xff]
  %v617 = vld [vmem:[%s1 + $0xfb8] sm:$0xff]
  %v618 = vld [vmem:[%s1 + $0xfc0] sm:$0xff]
  %v619 = vld [vmem:[%s1 + $0xfc8] sm:$0xff]
  %v620 = vld [vmem:[%s1 + $0xfd0] sm:$0xff]
  %v621 = vld [vmem:[%s1 + $0xfd8] sm:$0xff]
  %v622 = vld [vmem:[%s1 + $0xfe0] sm:$0xff]
  %v623 = vld [vmem:[%s1 + $0xfe8] sm:$0xff]
  %v624 = vld [vmem:[%s1 + $0xff0] sm:$0xff]
  %v625 = vld [vmem:[%s1 + $0xff8] sm:$0xff]
  %v626 = vld [vmem:[%s1 + $0x1000] sm:$0xff]
  %v627 = vld [vmem:[%s1 + $0x1008] sm:$0xff]
  %v628 = vld [vmem:[%s1 + $0x1010] sm:$0xff]
  %v629 = vld [vmem:[%s1 + $0x1018] sm:$0xff]
  %v630 = vld [vmem:[%s1 + $0x1020] sm:$0xff]
  %v631 = vld [vmem:[%s1 + $0x1028] sm:$0xff]
  %v632 = vld [vmem:[%s1 + $0x1030] sm:$0xff]
  %v633 = vld [vmem:[%s1 + $0x1038] sm:$0xff]
  %v634 = vld [vmem:[%s1 + $0x1040] sm:$0xff]
  %v635 = vld [vmem:[%s1 + $0x1048] sm:$0xff]
  %v636 = vld [vmem:[%s1 + $0x1050] sm:$0xff]
  %v637 = vld [vmem:[%s1 + $0x1058] sm:$0xff]
  %v638 = vld [vmem:[%s1 + $0x1060] sm:$0xff]
  %v639 = vld [vmem:[%s1 + $0x1068] sm:$0xff]
  %v640 = vld [vmem:[%s1 + $0x1070] sm:$0xff]
  %v641 = vld [vmem:[%s1 + $0x1078] sm:$0xff]
  %v642 = vld [vmem:[%s1 + $0x1080] sm:$0xff]
  %v643 = vld [vmem:[%s1 + $0x1088] sm:$0xff]
  %v644 = vld [vmem:[%s1 + $0x1090] sm:$0xff]
  %v645 = vld [vmem:[%s1 + $0x1098] sm:$0xff]
  %v646 = vld [vmem:[%s1 + $0x10a0] sm:$0xff]
  %v647 = vld [vmem:[%s1 + $0x10a8] sm:$0xff]
  %v648 = vld [vmem:[%s1 + $0x10b0] sm:$0xff]
  %v649 = vld [vmem:[%s1 + $0x10b8] sm:$0xff]
  %v650 = vld [vmem:[%s1 + $0x10c0] sm:$0xff]
  %v651 = vld [vmem:[%s1 + $0x10c8] sm:$0xff]
  %v652 = vld [vmem:[%s1 + $0x10d0] sm:$0xff]
  %v653 = vld [vmem:[%s1 + $0x10d8] sm:$0xff]
  %v654 = vld [vmem:[%s1 + $0x10e0] sm:$0xff]
  %v655 = vld [vmem:[%s1 + $0x10e8] sm:$0xff]
  %v656 = vld [vmem:[%s1 + $0x10f0] sm:$0xff]
  %v657 = vld [vmem:[%s1 + $0x10f8] sm:$0xff]
  %v658 = vld [vmem:[%s1 + $0x1100] sm:$0xff]
  %v659 = vld [vmem:[%s1 + $0x1108] sm:$0xff]
  %v660 = vld [vmem:[%s1 + $0x1110] sm:$0xff]
  %v661 = vld [vmem:[%s1 + $0x1118] sm:$0xff]
  %v662 = vld [vmem:[%s1 + $0x1120] sm:$0xff]
  %v663 = vld [vmem:[%s1 + $0x1128] sm:$0xff]
  %v664 = vld [vmem:[%s1 + $0x1130] sm:$0xff]
  %v665 = vld [vmem:[%s1 + $0x1138] sm:$0xff]
  %v666 = vld [vmem:[%s1 + $0x1140] sm:$0xff]
  %v667 = vld [vmem:[%s1 + $0x1148] sm:$0xff]
  %v668 = vld [vmem:[%s1 + $0x1150] sm:$0xff]
  %v669 = vld [vmem:[%s1 + $0x1158] sm:$0xff]
  %v670 = vld [vmem:[%s1 + $0x1160] sm:$0xff]
  %v671 = vld [vmem:[%s1 + $0x1168] sm:$0xff]
  %v672 = vld [vmem:[%s1 + $0x1170] sm:$0xff]
  %v673 = vld [vmem:[%s1 + $0x1178] sm:$0xff]
  %v674 = vld [vmem:[%s1 + $0x1180] sm:$0xff]
  %v675 = vld [vmem:[%s1 + $0x1188] sm:$0xff]
  %v676 = vld [vmem:[%s1 + $0x1190] sm:$0xff]
  %v677 = vld [vmem:[%s1 + $0x1198] sm:$0xff]
  %v678 = vld [vmem:[%s1 + $0x11a0] sm:$0xff]
  %v679 = vld [vmem:[%s1 + $0x11a8] sm:$0xff]
  %v680 = vld [vmem:[%s1 + $0x11b0] sm:$0xff]
  %v681 = vld [vmem:[%s1 + $0x11b8] sm:$0xff]
  %v682 = vld [vmem:[%s1 + $0x11c0] sm:$0xff]
  %v683 = vld [vmem:[%s1 + $0x11c8] sm:$0xff]
  %v684 = vld [vmem:[%s1 + $0x11d0] sm:$0xff]
  %v685 = vld [vmem:[%s1 + $0x11d8] sm:$0xff]
  %v686 = vld [vmem:[%s1 + $0x11e0] sm:$0xff]
  %v687 = vld [vmem:[%s1 + $0x11e8] sm:$0xff]
  %v688 = vld [vmem:[%s1 + $0x11f0] sm:$0xff]
  %v689 = vld [vmem:[%s1 + $0x11f8] sm:$0xff]
  %v690 = vld [vmem:[%s1 + $0x1200] sm:$0xff]
  %v691 = vld [vmem:[%s1 + $0x1208] sm:$0xff]
  %v692 = vld [vmem:[%s1 + $0x1210] sm:$0xff]
  %v693 = vld [vmem:[%s1 + $0x1218] sm:$0xff]
  %v694 = vld [vmem:[%s1 + $0x1220] sm:$0xff]
  %v695 = vld [vmem:[%s1 + $0x1228] sm:$0xff]
  %v696 = vld [vmem:[%s1 + $0x1230] sm:$0xff]
  %v697 = vld [vmem:[%s1 + $0x1238] sm:$0xff]
  %v698 = vld [vmem:[%s1 + $0x1240] sm:$0xff]
  %v699 = vld [vmem:[%s1 + $0x1248] sm:$0xff]
  %v700 = vld [vmem:[%s1 + $0x1250] sm:$0xff]
  %v701 = vld [vmem:[%s1 + $0x1258] sm:$0xff]
  %v702 = vld [vmem:[%s1 + $0x1260] sm:$0xff]
  %v703 = vld [vmem:[%s1 + $0x1268] sm:$0xff]
  %v704 = vld [vmem:[%s1 + $0x1270] sm:$0xff]
  %v705 = vld [vmem:[%s1 + $0x1278] sm:$0xff]
  %v706 = vld [vmem:[%s1 + $0x1280] sm:$0xff]
  %v707 = vld [vmem:[%s1 + $0x1288] sm:$0xff]
  %v708 = vld [vmem:[%s1 + $0x1290] sm:$0xff]
  %v709 = vld [vmem:[%s1 + $0x1298] sm:$0xff]
  %v710 = vld [vmem:[%s1 + $0x12a0] sm:$0xff]
  %v711 = vld [vmem:[%s1 + $0x12a8] sm:$0xff]
  %v712 = vld [vmem:[%s1 + $0x12b0] sm:$0xff]
  %v713 = vld [vmem:[%s1 + $0x12b8] sm:$0xff]
  %v714 = vld [vmem:[%s1 + $0x12c0] sm:$0xff]
  %v715 = vld [vmem:[%s1 + $0x12c8] sm:$0xff]
  %v716 = vld [vmem:[%s1 + $0x12d0] sm:$0xff]
  %v717 = vld [vmem:[%s1 + $0x12d8] sm:$0xff]
  %v718 = vld [vmem:[%s1 + $0x12e0] sm:$0xff]
  %v719 = vld [vmem:[%s1 + $0x12e8] sm:$0xff]
  %v720 = vld [vmem:[%s1 + $0x12f0] sm:$0xff]
  %v721 = vld [vmem:[%s1 + $0x12f8] sm:$0xff]
  %v722 = vld [vmem:[%s1 + $0x1300] sm:$0xff]
  %v723 = vld [vmem:[%s1 + $0x1308] sm:$0xff]
  %v724 = vld [vmem:[%s1 + $0x1310] sm:$0xff]
  %v725 = vld [vmem:[%s1 + $0x1318] sm:$0xff]
  %v726 = vld [vmem:[%s1 + $0x1320] sm:$0xff]
  %v727 = vld [vmem:[%s1 + $0x1328] sm:$0xff]
  %v728 = vld [vmem:[%s1 + $0x1330] sm:$0xff]
  %v729 = vld [vmem:[%s1 + $0x1338] sm:$0xff]
  %v730 = vld [vmem:[%s1 + $0x1340] sm:$0xff]
  %v731 = vld [vmem:[%s1 + $0x1348] sm:$0xff]
  %v732 = vld [vmem:[%s1 + $0x1350] sm:$0xff]
  %v733 = vld [vmem:[%s1 + $0x1358] sm:$0xff]
  %v734 = vld [vmem:[%s1 + $0x1360] sm:$0xff]
  %v735 = vld [vmem:[%s1 + $0x1368] sm:$0xff]
  %v736 = vld [vmem:[%s1 + $0x1370] sm:$0xff]
  %v737 = vld [vmem:[%s1 + $0x1378] sm:$0xff]
  %v738 = vld [vmem:[%s1 + $0x1380] sm:$0xff]
  %v739 = vld [vmem:[%s1 + $0x1388] sm:$0xff]
  %v740 = vld [vmem:[%s1 + $0x1390] sm:$0xff]
  %v741 = vld [vmem:[%s1 + $0x1398] sm:$0xff]
  %v742 = vld [vmem:[%s1 + $0x13a0] sm:$0xff]
  %v743 = vld [vmem:[%s1 + $0x13a8] sm:$0xff]
  %v744 = vld [vmem:[%s1 + $0x13b0] sm:$0xff]
  %v745 = vld [vmem:[%s1 + $0x13b8] sm:$0xff]
  %v746 = vld [vmem:[%s1 + $0x13c0] sm:$0xff]
  %v747 = vld [vmem:[%s1 + $0x13c8] sm:$0xff]
  %v748 = vld [vmem:[%s1 + $0x13d0] sm:$0xff]
  %v749 = vld [vmem:[%s1 + $0x13d8] sm:$0xff]
  %v750 = vld [vmem:[%s1 + $0x13e0] sm:$0xff]
  %v751 = vld [vmem:[%s1 + $0x13e8] sm:$0xff]
  %v752 = vld [vmem:[%s1 + $0x13f0] sm:$0xff]
  %v753 = vld [vmem:[%s1 + $0x13f8] sm:$0xff]
  %v754 = vld [vmem:[%s1 + $0x1400] sm:$0xff]
  %v755 = vld [vmem:[%s1 + $0x1408] sm:$0xff]
  %v756 = vld [vmem:[%s1 + $0x1410] sm:$0xff]
  %v757 = vld [vmem:[%s1 + $0x1418] sm:$0xff]
  %v758 = vld [vmem:[%s1 + $0x1420] sm:$0xff]
  %v759 = vld [vmem:[%s1 + $0x1428] sm:$0xff]
  %v760 = vld [vmem:[%s1 + $0x1430] sm:$0xff]
  %v761 = vld [vmem:[%s1 + $0x1438] sm:$0xff]
  %v762 = vld [vmem:[%s1 + $0x1440] sm:$0xff]
  %v763 = vld [vmem:[%s1 + $0x1448] sm:$0xff]
  %v764 = vld [vmem:[%s1 + $0x1450] sm:$0xff]
  %v765 = vld [vmem:[%s1 + $0x1458] sm:$0xff]
  %v766 = vld [vmem:[%s1 + $0x1460] sm:$0xff]
  %v767 = vld [vmem:[%s1 + $0x1468] sm:$0xff]
  %v768 = vld [vmem:[%s1 + $0x1470] sm:$0xff]
  %v769 = vld [vmem:[%s1 + $0x1478] sm:$0xff]
  %v770 = vld [vmem:[%s1 + $0x1480] sm:$0xff]
  %v771 = vld [vmem:[%s1 + $0x1488] sm:$0xff]
  %v772 = vld [vmem:[%s1 + $0x1490] sm:$0xff]
  %v773 = vld [vmem:[%s1 + $0x1498] sm:$0xff]
  %v774 = vld [vmem:[%s1 + $0x14a0] sm:$0xff]
  %v775 = vld [vmem:[%s1 + $0x14a8] sm:$0xff]
  %v776 = vld [vmem:[%s1 + $0x14b0] sm:$0xff]
  %v777 = vld [vmem:[%s1 + $0x14b8] sm:$0xff]
  %v778 = vld [vmem:[%s1 + $0x14c0] sm:$0xff]
  %v779 = vld [vmem:[%s1 + $0x14c8] sm:$0xff]
  %v780 = vld [vmem:[%s1 + $0x14d0] sm:$0xff]
  %v781 = vld [vmem:[%s1 + $0x14d8] sm:$0xff]
  %v782 = vld [vmem:[%s1 + $0x14e0] sm:$0xff]
  %v783 = vld [vmem:[%s1 + $0x14e8] sm:$0xff]
  %v784 = vld [vmem:[%s1 + $0x14f0] sm:$0xff]
  %v785 = vld [vmem:[%s1 + $0x14f8] sm:$0xff]
  %v786 = vld [vmem:[%s1 + $0x1500] sm:$0xff]
  %v787 = vld [vmem:[%s1 + $0x1508] sm:$0xff]
  %v788 = vld [vmem:[%s1 + $0x1510] sm:$0xff]
  %v789 = vld [vmem:[%s1 + $0x1518] sm:$0xff]
  %v790 = vld [vmem:[%s1 + $0x1520] sm:$0xff]
  %v791 = vld [vmem:[%s1 + $0x1528] sm:$0xff]
  %v792 = vld [vmem:[%s1 + $0x1530] sm:$0xff]
  %v793 = vld [vmem:[%s1 + $0x1538] sm:$0xff]
  %v794 = vld [vmem:[%s1 + $0x1540] sm:$0xff]
  %v795 = vld [vmem:[%s1 + $0x1548] sm:$0xff]
  %v796 = vld [vmem:[%s1 + $0x1550] sm:$0xff]
  %v797 = vld [vmem:[%s1 + $0x1558] sm:$0xff]
  %v798 = vld [vmem:[%s1 + $0x1560] sm:$0xff]
  %v799 = vld [vmem:[%s1 + $0x1568] sm:$0xff]
  %v800 = vld [vmem:[%s1 + $0x1570] sm:$0xff]
  %v801 = vld [vmem:[%s1 + $0x1578] sm:$0xff]
  %v802 = vld [vmem:[%s1 + $0x1580] sm:$0xff]
  %v803 = vld [vmem:[%s1 + $0x1588] sm:$0xff]
  %v804 = vld [vmem:[%s1 + $0x1590] sm:$0xff]
  %v805 = vld [vmem:[%s1 + $0x1598] sm:$0xff]
  %v806 = vld [vmem:[%s1 + $0x15a0] sm:$0xff]
  %v807 = vld [vmem:[%s1 + $0x15a8] sm:$0xff]
  %v808 = vld [vmem:[%s1 + $0x15b0] sm:$0xff]
  %v809 = vld [vmem:[%s1 + $0x15b8] sm:$0xff]
  %v810 = vld [vmem:[%s1 + $0x15c0] sm:$0xff]
  %v811 = vld [vmem:[%s1 + $0x15c8] sm:$0xff]
  %v812 = vld [vmem:[%s1 + $0x15d0] sm:$0xff]
  %v813 = vld [vmem:[%s1 + $0x15d8] sm:$0xff]
  %v814 = vld [vmem:[%s1 + $0x15e0] sm:$0xff]
  %v815 = vld [vmem:[%s1 + $0x15e8] sm:$0xff]
  %v816 = vld [vmem:[%s1 + $0x15f0] sm:$0xff]
  %v817 = vld [vmem:[%s1 + $0x15f8] sm:$0xff]
  %v818 = vld [vmem:[%s1 + $0x1600] sm:$0xff]
  %v819 = vld [vmem:[%s1 + $0x1608] sm:$0xff]
  %v820 = vld [vmem:[%s1 + $0x1610] sm:$0xff]
  %v821 = vld [vmem:[%s1 + $0x1618] sm:$0xff]
  %v822 = vld [vmem:[%s1 + $0x1620] sm:$0xff]
  %v823 = vld [vmem:[%s1 + $0x1628] sm:$0xff]
  %v824 = vld [vmem:[%s1 + $0x1630] sm:$0xff]
  %v825 = vld [vmem:[%s1 + $0x1638] sm:$0xff]
  %v826 = vld [vmem:[%s1 + $0x1640] sm:$0xff]
  %v827 = vld [vmem:[%s1 + $0x1648] sm:$0xff]
  %v828 = vld [vmem:[%s1 + $0x1650] sm:$0xff]
  %v829 = vld [vmem:[%s1 + $0x1658] sm:$0xff]
  %v830 = vld [vmem:[%s1 + $0x1660] sm:$0xff]
  %v831 = vld [vmem:[%s1 + $0x1668] sm:$0xff]
  %v832 = vld [vmem:[%s1 + $0x1670] sm:$0xff]
  %v833 = vld [vmem:[%s1 + $0x1678] sm:$0xff]
  %v834 = vld [vmem:[%s1 + $0x1680] sm:$0xff]
  %v835 = vld [vmem:[%s1 + $0x1688] sm:$0xff]
  %v836 = vld [vmem:[%s1 + $0x1690] sm:$0xff]
  %v837 = vld [vmem:[%s1 + $0x1698] sm:$0xff]
  %v838 = vld [vmem:[%s1 + $0x16a0] sm:$0xff]
  %v839 = vld [vmem:[%s1 + $0x16a8] sm:$0xff]
  %v840 = vld [vmem:[%s1 + $0x16b0] sm:$0xff]
  %v841 = vld [vmem:[%s1 + $0x16b8] sm:$0xff]
  %v842 = vld [vmem:[%s1 + $0x16c0] sm:$0xff]
  %v843 = vld [vmem:[%s1 + $0x16c8] sm:$0xff]
  %v844 = vld [vmem:[%s1 + $0x16d0] sm:$0xff]
  %v845 = vld [vmem:[%s1 + $0x16d8] sm:$0xff]
  %v846 = vld [vmem:[%s1 + $0x16e0] sm:$0xff]
  %v847 = vld [vmem:[%s1 + $0x16e8] sm:$0xff]
  %v848 = vld [vmem:[%s1 + $0x16f0] sm:$0xff]
  %v849 = vld [vmem:[%s1 + $0x16f8] sm:$0xff]
  %v850 = vld [vmem:[%s1 + $0x1700] sm:$0xff]
  %v851 = vld [vmem:[%s1 + $0x1708] sm:$0xff]
  %v852 = vld [vmem:[%s1 + $0x1710] sm:$0xff]
  %v853 = vld [vmem:[%s1 + $0x1718] sm:$0xff]
  %v854 = vld [vmem:[%s1 + $0x1720] sm:$0xff]
  %v855 = vld [vmem:[%s1 + $0x1728] sm:$0xff]
  %v856 = vld [vmem:[%s1 + $0x1730] sm:$0xff]
  %v857 = vld [vmem:[%s1 + $0x1738] sm:$0xff]
  %v858 = vld [vmem:[%s1 + $0x1740] sm:$0xff]
  %v859 = vld [vmem:[%s1 + $0x1748] sm:$0xff]
  %v860 = vld [vmem:[%s1 + $0x1750] sm:$0xff]
  %v861 = vld [vmem:[%s1 + $0x1758] sm:$0xff]
  %v862 = vld [vmem:[%s1 + $0x1760] sm:$0xff]
  %v863 = vld [vmem:[%s1 + $0x1768] sm:$0xff]
  %v864 = vld [vmem:[%s1 + $0x1770] sm:$0xff]
  %v865 = vld [vmem:[%s1 + $0x1778] sm:$0xff]
  %v866 = vld [vmem:[%s1 + $0x1780] sm:$0xff]
  %v867 = vld [vmem:[%s1 + $0x1788] sm:$0xff]
  %v868 = vld [vmem:[%s1 + $0x1790] sm:$0xff]
  %v869 = vld [vmem:[%s1 + $0x1798] sm:$0xff]
  %v870 = vld [vmem:[%s1 + $0x17a0] sm:$0xff]
  %v871 = vld [vmem:[%s1 + $0x17a8] sm:$0xff]
  %v872 = vld [vmem:[%s1 + $0x17b0] sm:$0xff]
  %v873 = vld [vmem:[%s1 + $0x17b8] sm:$0xff]
  %v874 = vld [vmem:[%s1 + $0x17c0] sm:$0xff]
  %v875 = vld [vmem:[%s1 + $0x17c8] sm:$0xff]
  %v876 = vld [vmem:[%s1 + $0x17d0] sm:$0xff]
  %v877 = vld [vmem:[%s1 + $0x17d8] sm:$0xff]
  %v878 = vld [vmem:[%s1 + $0x17e0] sm:$0xff]
  %v879 = vld [vmem:[%s1 + $0x17e8] sm:$0xff]
  %v880 = vld [vmem:[%s1 + $0x17f0] sm:$0xff]
  %v881 = vld [vmem:[%s1 + $0x17f8] sm:$0xff]
  %v882 = vld [vmem:[%s1 + $0x1800] sm:$0xff]
  %v883 = vld [vmem:[%s1 + $0x1808] sm:$0xff]
  %v884 = vld [vmem:[%s1 + $0x1810] sm:$0xff]
  %v885 = vld [vmem:[%s1 + $0x1818] sm:$0xff]
  %v886 = vld [vmem:[%s1 + $0x1820] sm:$0xff]
  %v887 = vld [vmem:[%s1 + $0x1828] sm:$0xff]
  %v888 = vld [vmem:[%s1 + $0x1830] sm:$0xff]
  %v889 = vld [vmem:[%s1 + $0x1838] sm:$0xff]
  %v890 = vld [vmem:[%s1 + $0x1840] sm:$0xff]
  %v891 = vld [vmem:[%s1 + $0x1848] sm:$0xff]
  %v892 = vld [vmem:[%s1 + $0x1850] sm:$0xff]
  %v893 = vld [vmem:[%s1 + $0x1858] sm:$0xff]
  %v894 = vld [vmem:[%s1 + $0x1860] sm:$0xff]
  %v895 = vld [vmem:[%s1 + $0x1868] sm:$0xff]
  %v896 = vld [vmem:[%s1 + $0x1870] sm:$0xff]
  %v897 = vld [vmem:[%s1 + $0x1878] sm:$0xff]
  %v898 = vld [vmem:[%s1 + $0x1880] sm:$0xff]
  %v899 = vld [vmem:[%s1 + $0x1888] sm:$0xff]
  %v900 = vld [vmem:[%s1 + $0x1890] sm:$0xff]
  %v901 = vld [vmem:[%s1 + $0x1898] sm:$0xff]
  %v902 = vld [vmem:[%s1 + $0x18a0] sm:$0xff]
  %v903 = vld [vmem:[%s1 + $0x18a8] sm:$0xff]
  %v904 = vld [vmem:[%s1 + $0x18b0] sm:$0xff]
  %v905 = vld [vmem:[%s1 + $0x18b8] sm:$0xff]
  %v906 = vld [vmem:[%s1 + $0x18c0] sm:$0xff]
  %v907 = vld [vmem:[%s1 + $0x18c8] sm:$0xff]
  %v908 = vld [vmem:[%s1 + $0x18d0] sm:$0xff]
  %v909 = vld [vmem:[%s1 + $0x18d8] sm:$0xff]
  %v910 = vld [vmem:[%s1 + $0x18e0] sm:$0xff]
  %v911 = vld [vmem:[%s1 + $0x18e8] sm:$0xff]
  %v912 = vld [vmem:[%s1 + $0x18f0] sm:$0xff]
  %v913 = vld [vmem:[%s1 + $0x18f8] sm:$0xff]
  %v914 = vld [vmem:[%s1 + $0x1900] sm:$0xff]
  %v915 = vld [vmem:[%s1 + $0x1908] sm:$0xff]
  %v916 = vld [vmem:[%s1 + $0x1910] sm:$0xff]
  %v917 = vld [vmem:[%s1 + $0x1918] sm:$0xff]
  %v918 = vld [vmem:[%s1 + $0x1920] sm:$0xff]
  %v919 = vld [vmem:[%s1 + $0x1928] sm:$0xff]
  %v920 = vld [vmem:[%s1 + $0x1930] sm:$0xff]
  %v921 = vld [vmem:[%s1 + $0x1938] sm:$0xff]
  %v922 = vld [vmem:[%s1 + $0x1940] sm:$0xff]
  %v923 = vld [vmem:[%s1 + $0x1948] sm:$0xff]
  %v924 = vld [vmem:[%s1 + $0x1950] sm:$0xff]
  %v925 = vld [vmem:[%s1 + $0x1958] sm:$0xff]
  %v926 = vld [vmem:[%s1 + $0x1960] sm:$0xff]
  %v927 = vld [vmem:[%s1 + $0x1968] sm:$0xff]
  %v928 = vld [vmem:[%s1 + $0x1970] sm:$0xff]
  %v929 = vld [vmem:[%s1 + $0x1978] sm:$0xff]
  %v930 = vld [vmem:[%s1 + $0x1980] sm:$0xff]
  %v931 = vld [vmem:[%s1 + $0x1988] sm:$0xff]
  %v932 = vld [vmem:[%s1 + $0x1990] sm:$0xff]
  %v933 = vld [vmem:[%s1 + $0x1998] sm:$0xff]
  %v934 = vld [vmem:[%s1 + $0x19a0] sm:$0xff]
  %v935 = vld [vmem:[%s1 + $0x19a8] sm:$0xff]
  %v936 = vld [vmem:[%s1 + $0x19b0] sm:$0xff]
  %v937 = vld [vmem:[%s1 + $0x19b8] sm:$0xff]
  %v938 = vld [vmem:[%s1 + $0x19c0] sm:$0xff]
  %v939 = vld [vmem:[%s1 + $0x19c8] sm:$0xff]
  %v940 = vld [vmem:[%s1 + $0x19d0] sm:$0xff]
  %v941 = vld [vmem:[%s1 + $0x19d8] sm:$0xff]
  %v942 = vld [vmem:[%s1 + $0x19e0] sm:$0xff]
  %v943 = vld [vmem:[%s1 + $0x19e8] sm:$0xff]
  %v944 = vld [vmem:[%s1 + $0x19f0] sm:$0xff]
  %v945 = vld [vmem:[%s1 + $0x19f8] sm:$0xff]
  %v946 = vld [vmem:[%s1 + $0x1a00] sm:$0xff]
  %v947 = vld [vmem:[%s1 + $0x1a08] sm:$0xff]
  %v948 = vld [vmem:[%s1 + $0x1a10] sm:$0xff]
  %v949 = vld [vmem:[%s1 + $0x1a18] sm:$0xff]
  %v950 = vld [vmem:[%s1 + $0x1a20] sm:$0xff]
  %v951 = vld [vmem:[%s1 + $0x1a28] sm:$0xff]
  %v952 = vld [vmem:[%s1 + $0x1a30] sm:$0xff]
  %v953 = vld [vmem:[%s1 + $0x1a38] sm:$0xff]
  %v954 = vld [vmem:[%s1 + $0x1a40] sm:$0xff]
  %v955 = vld [vmem:[%s1 + $0x1a48] sm:$0xff]
  %v956 = vld [vmem:[%s1 + $0x1a50] sm:$0xff]
  %v957 = vld [vmem:[%s1 + $0x1a58] sm:$0xff]
  %v958 = vld [vmem:[%s1 + $0x1a60] sm:$0xff]
  %v959 = vld [vmem:[%s1 + $0x1a68] sm:$0xff]
  %v960 = vld [vmem:[%s1 + $0x1a70] sm:$0xff]
  %v961 = vld [vmem:[%s1 + $0x1a78] sm:$0xff]
  %v962 = vld [vmem:[%s1 + $0x1a80] sm:$0xff]
  %v963 = vld [vmem:[%s1 + $0x1a88] sm:$0xff]
  %v964 = vld [vmem:[%s1 + $0x1a90] sm:$0xff]
  %v965 = vld [vmem:[%s1 + $0x1a98] sm:$0xff]
  %v966 = vld [vmem:[%s1 + $0x1aa0] sm:$0xff]
  %v967 = vld [vmem:[%s1 + $0x1aa8] sm:$0xff]
  %v968 = vld [vmem:[%s1 + $0x1ab0] sm:$0xff]
  %v969 = vld [vmem:[%s1 + $0x1ab8] sm:$0xff]
  %v970 = vld [vmem:[%s1 + $0x1ac0] sm:$0xff]
  %v971 = vld [vmem:[%s1 + $0x1ac8] sm:$0xff]
  %v972 = vld [vmem:[%s1 + $0x1ad0] sm:$0xff]
  %v973 = vld [vmem:[%s1 + $0x1ad8] sm:$0xff]
  %v974 = vld [vmem:[%s1 + $0x1ae0] sm:$0xff]
  %v975 = vld [vmem:[%s1 + $0x1ae8] sm:$0xff]
  %v976 = vld [vmem:[%s1 + $0x1af0] sm:$0xff]
  %v977 = vld [vmem:[%s1 + $0x1af8] sm:$0xff]
  %v978 = vld [vmem:[%s1 + $0x1b00] sm:$0xff]
  %v979 = vld [vmem:[%s1 + $0x1b08] sm:$0xff]
  %v980 = vld [vmem:[%s1 + $0x1b10] sm:$0xff]
  %v981 = vld [vmem:[%s1 + $0x1b18] sm:$0xff]
  %v982 = vld [vmem:[%s1 + $0x1b20] sm:$0xff]
  %v983 = vld [vmem:[%s1 + $0x1b28] sm:$0xff]
  %v984 = vld [vmem:[%s1 + $0x1b30] sm:$0xff]
  %v985 = vld [vmem:[%s1 + $0x1b38] sm:$0xff]
  %v986 = vld [vmem:[%s1 + $0x1b40] sm:$0xff]
  %v987 = vld [vmem:[%s1 + $0x1b48] sm:$0xff]
  %v988 = vld [vmem:[%s1 + $0x1b50] sm:$0xff]
  %v989 = vld [vmem:[%s1 + $0x1b58] sm:$0xff]
  %v990 = vld [vmem:[%s1 + $0x1b60] sm:$0xff]
  %v991 = vld [vmem:[%s1 + $0x1b68] sm:$0xff]
  %v992 = vld [vmem:[%s1 + $0x1b70] sm:$0xff]
  %v993 = vld [vmem:[%s1 + $0x1b78] sm:$0xff]
  %v994 = vld [vmem:[%s1 + $0x1b80] sm:$0xff]
  %v995 = vld [vmem:[%s1 + $0x1b88] sm:$0xff]
  %v996 = vld [vmem:[%s1 + $0x1b90] sm:$0xff]
  %v997 = vld [vmem:[%s1 + $0x1b98] sm:$0xff]
  %v998 = vld [vmem:[%s1 + $0x1ba0] sm:$0xff]
  %v999 = vld [vmem:[%s1 + $0x1ba8] sm:$0xff]
  %v1000 = vld [vmem:[%s1 + $0x1bb0] sm:$0xff]
  %v1001 = vld [vmem:[%s1 + $0x1bb8] sm:$0xff]
  %v1002 = vld [vmem:[%s1 + $0x1bc0] sm:$0xff]
  %v1003 = vld [vmem:[%s1 + $0x1bc8] sm:$0xff]
  %v1004 = vld [vmem:[%s1 + $0x1bd0] sm:$0xff]
  %v1005 = vld [vmem:[%s1 + $0x1bd8] sm:$0xff]
  %v1006 = vld [vmem:[%s1 + $0x1be0] sm:$0xff]
  %v1007 = vld [vmem:[%s1 + $0x1be8] sm:$0xff]
  %v1008 = vld [vmem:[%s1 + $0x1bf0] sm:$0xff]
  %v1009 = vld [vmem:[%s1 + $0x1bf8] sm:$0xff]
  %v1010 = vld [vmem:[%s1 + $0x1c00] sm:$0xff]
  %v1011 = vld [vmem:[%s1 + $0x1c08] sm:$0xff]
  %v1012 = vld [vmem:[%s1 + $0x1c10] sm:$0xff]
  %v1013 = vld [vmem:[%s1 + $0x1c18] sm:$0xff]
  %v1014 = vld [vmem:[%s1 + $0x1c20] sm:$0xff]
  %v1015 = vld [vmem:[%s1 + $0x1c28] sm:$0xff]
  %v1016 = vld [vmem:[%s1 + $0x1c30] sm:$0xff]
  %v1017 = vld [vmem:[%s1 + $0x1c38] sm:$0xff]
  %v1018 = vld [vmem:[%s1 + $0x1c40] sm:$0xff]
  %v1019 = vld [vmem:[%s1 + $0x1c48] sm:$0xff]
  %v1020 = vld [vmem:[%s1 + $0x1c50] sm:$0xff]
  %v1021 = vld [vmem:[%s1 + $0x1c58] sm:$0xff]
  %v1022 = vld [vmem:[%s1 + $0x1c60] sm:$0xff]
  %v1023 = vld [vmem:[%s1 + $0x1c68] sm:$0xff]
  %v1024 = vld [vmem:[%s1 + $0x1c70] sm:$0xff]
  %v1025 = vld [vmem:[%s1 + $0x1c78] sm:$0xff]
  %v1026 = vld [vmem:[%s1 + $0x1c80] sm:$0xff]
  %v1027 = vld [vmem:[%s1 + $0x1c88] sm:$0xff]
  %v1028 = vld [vmem:[%s1 + $0x1c90] sm:$0xff]
  %v1029 = vld [vmem:[%s1 + $0x1c98] sm:$0xff]
  %v1030 = vld [vmem:[%s1 + $0x1ca0] sm:$0xff]
  %v1031 = vld [vmem:[%s1 + $0x1ca8] sm:$0xff]
  %v1032 = vld [vmem:[%s1 + $0x1cb0] sm:$0xff]
  %v1033 = vld [vmem:[%s1 + $0x1cb8] sm:$0xff]
  %v1034 = vld [vmem:[%s1 + $0x1cc0] sm:$0xff]
  %v1035 = vld [vmem:[%s1 + $0x1cc8] sm:$0xff]
  %v1036 = vld [vmem:[%s1 + $0x1cd0] sm:$0xff]
  %v1037 = vld [vmem:[%s1 + $0x1cd8] sm:$0xff]
  %v1038 = vld [vmem:[%s1 + $0x1ce0] sm:$0xff]
  %v1039 = vld [vmem:[%s1 + $0x1ce8] sm:$0xff]
  %v1040 = vld [vmem:[%s1 + $0x1cf0] sm:$0xff]
  %v1041 = vld [vmem:[%s1 + $0x1cf8] sm:$0xff]
  %v1042 = vld [vmem:[%s1 + $0x1d00] sm:$0xff]
  %v1043 = vld [vmem:[%s1 + $0x1d08] sm:$0xff]
  %v1044 = vld [vmem:[%s1 + $0x1d10] sm:$0xff]
  %v1045 = vld [vmem:[%s1 + $0x1d18] sm:$0xff]
  %v1046 = vld [vmem:[%s1 + $0x1d20] sm:$0xff]
  %v1047 = vld [vmem:[%s1 + $0x1d28] sm:$0xff]
  %v1048 = vld [vmem:[%s1 + $0x1d30] sm:$0xff]
  %v1049 = vld [vmem:[%s1 + $0x1d38] sm:$0xff]
  %v1050 = vld [vmem:[%s1 + $0x1d40] sm:$0xff]
  %v1051 = vld [vmem:[%s1 + $0x1d48] sm:$0xff]
  %v1052 = vld [vmem:[%s1 + $0x1d50] sm:$0xff]
  %v1053 = vld [vmem:[%s1 + $0x1d58] sm:$0xff]
  %v1054 = vld [vmem:[%s1 + $0x1d60] sm:$0xff]
  %v1055 = vld [vmem:[%s1 + $0x1d68] sm:$0xff]
  %v1056 = vld [vmem:[%s1 + $0x1d70] sm:$0xff]
  %v1057 = vld [vmem:[%s1 + $0x1d78] sm:$0xff]
  %v1058 = vld [vmem:[%s1 + $0x1d80] sm:$0xff]
  %v1059 = vld [vmem:[%s1 + $0x1d88] sm:$0xff]
  %v1060 = vld [vmem:[%s1 + $0x1d90] sm:$0xff]
  %v1061 = vld [vmem:[%s1 + $0x1d98] sm:$0xff]
  %v1062 = vld [vmem:[%s1 + $0x1da0] sm:$0xff]
  %v1063 = vld [vmem:[%s1 + $0x1da8] sm:$0xff]
  %v1064 = vld [vmem:[%s1 + $0x1db0] sm:$0xff]
  %v1065 = vld [vmem:[%s1 + $0x1db8] sm:$0xff]
  %v1066 = vld [vmem:[%s1 + $0x1dc0] sm:$0xff]
  %v1067 = vld [vmem:[%s1 + $0x1dc8] sm:$0xff]
  %v1068 = vld [vmem:[%s1 + $0x1dd0] sm:$0xff]
  %v1069 = vld [vmem:[%s1 + $0x1dd8] sm:$0xff]
  %v1070 = vld [vmem:[%s1 + $0x1de0] sm:$0xff]
  %v1071 = vld [vmem:[%s1 + $0x1de8] sm:$0xff]
  %v1072 = vld [vmem:[%s1 + $0x1df0] sm:$0xff]
  %v1073 = vld [vmem:[%s1 + $0x1df8] sm:$0xff]
  %v1074 = vld [vmem:[%s1 + $0x1e00] sm:$0xff]
  %v1075 = vld [vmem:[%s1 + $0x1e08] sm:$0xff]
  %v1076 = vld [vmem:[%s1 + $0x1e10] sm:$0xff]
  %v1077 = vld [vmem:[%s1 + $0x1e18] sm:$0xff]
  %v1078 = vld [vmem:[%s1 + $0x1e20] sm:$0xff]
  %v1079 = vld [vmem:[%s1 + $0x1e28] sm:$0xff]
  %v1080 = vld [vmem:[%s1 + $0x1e30] sm:$0xff]
  %v1081 = vld [vmem:[%s1 + $0x1e38] sm:$0xff]
  %v1082 = vld [vmem:[%s1 + $0x1e40] sm:$0xff]
  %v1083 = vld [vmem:[%s1 + $0x1e48] sm:$0xff]
  %v1084 = vld [vmem:[%s1 + $0x1e50] sm:$0xff]
  %v1085 = vld [vmem:[%s1 + $0x1e58] sm:$0xff]
  %v1086 = vld [vmem:[%s1 + $0x1e60] sm:$0xff]
  %v1087 = vld [vmem:[%s1 + $0x1e68] sm:$0xff]
  %v1088 = vld [vmem:[%s1 + $0x1e70] sm:$0xff]
  %v1089 = vld [vmem:[%s1 + $0x1e78] sm:$0xff]
  %v1090 = vld [vmem:[%s1 + $0x1e80] sm:$0xff]
  %v1091 = vld [vmem:[%s1 + $0x1e88] sm:$0xff]
  %v1092 = vld [vmem:[%s1 + $0x1e90] sm:$0xff]
  %v1093 = vld [vmem:[%s1 + $0x1e98] sm:$0xff]
  %v1094 = vld [vmem:[%s1 + $0x1ea0] sm:$0xff]
  %v1095 = vld [vmem:[%s1 + $0x1ea8] sm:$0xff]
  %v1096 = vld [vmem:[%s1 + $0x1eb0] sm:$0xff]
  %v1097 = vld [vmem:[%s1 + $0x1eb8] sm:$0xff]
  %v1098 = vld [vmem:[%s1 + $0x1ec0] sm:$0xff]
  %v1099 = vld [vmem:[%s1 + $0x1ec8] sm:$0xff]
  %v1100 = vld [vmem:[%s1 + $0x1ed0] sm:$0xff]
  %v1101 = vld [vmem:[%s1 + $0x1ed8] sm:$0xff]
  %v1102 = vld [vmem:[%s1 + $0x1ee0] sm:$0xff]
  %v1103 = vld [vmem:[%s1 + $0x1ee8] sm:$0xff]
  %v1104 = vld [vmem:[%s1 + $0x1ef0] sm:$0xff]
  %v1105 = vld [vmem:[%s1 + $0x1ef8] sm:$0xff]
  %v1106 = vld [vmem:[%s1 + $0x1f00] sm:$0xff]
  %v1107 = vld [vmem:[%s1 + $0x1f08] sm:$0xff]
  %v1108 = vld [vmem:[%s1 + $0x1f10] sm:$0xff]
  %v1109 = vld [vmem:[%s1 + $0x1f18] sm:$0xff]
  %v1110 = vld [vmem:[%s1 + $0x1f20] sm:$0xff]
  %v1111 = vld [vmem:[%s1 + $0x1f28] sm:$0xff]
  %v1112 = vld [vmem:[%s1 + $0x1f30] sm:$0xff]
  %v1113 = vld [vmem:[%s1 + $0x1f38] sm:$0xff]
  %v1114 = vld [vmem:[%s1 + $0x1f40] sm:$0xff]
  %v1115 = vld [vmem:[%s1 + $0x1f48] sm:$0xff]
  %v1116 = vld [vmem:[%s1 + $0x1f50] sm:$0xff]
  %v1117 = vld [vmem:[%s1 + $0x1f58] sm:$0xff]
  %v1118 = vld [vmem:[%s1 + $0x1f60] sm:$0xff]
  %v1119 = vld [vmem:[%s1 + $0x1f68] sm:$0xff]
  %v1120 = vld [vmem:[%s1 + $0x1f70] sm:$0xff]
  %v1121 = vld [vmem:[%s1 + $0x1f78] sm:$0xff]
  %v1122 = vld [vmem:[%s1 + $0x1f80] sm:$0xff]
  %v1123 = vld [vmem:[%s1 + $0x1f88] sm:$0xff]
  %v1124 = vld [vmem:[%s1 + $0x1f90] sm:$0xff]
  %v1125 = vld [vmem:[%s1 + $0x1f98] sm:$0xff]
  %v1126 = vld [vmem:[%s1 + $0x1fa0] sm:$0xff]
  %v1127 = vld [vmem:[%s1 + $0x1fa8] sm:$0xff]
  %v1128 = vld [vmem:[%s1 + $0x1fb0] sm:$0xff]
  %v1129 = vld [vmem:[%s1 + $0x1fb8] sm:$0xff]
  %v1130 = vld [vmem:[%s1 + $0x1fc0] sm:$0xff]
  %v1131 = vld [vmem:[%s1 + $0x1fc8] sm:$0xff]
  %v1132 = vld [vmem:[%s1 + $0x1fd0] sm:$0xff]
  %v1133 = vld [vmem:[%s1 + $0x1fd8] sm:$0xff]
  %v1134 = vld [vmem:[%s1 + $0x1fe0] sm:$0xff]
  %v1135 = vld [vmem:[%s1 + $0x1fe8] sm:$0xff]
  %v1136 = vld [vmem:[%s1 + $0x1ff0] sm:$0xff]
  %v1137 = vld [vmem:[%s1 + $0x1ff8] sm:$0xff]
  %v1138 = vld [vmem:[%s1 + $0x2000] sm:$0xff]
  %v1139 = vld [vmem:[%s1 + $0x2008] sm:$0xff]
  %v1140 = vld [vmem:[%s1 + $0x2010] sm:$0xff]
  %v1141 = vld [vmem:[%s1 + $0x2018] sm:$0xff]
  %v1142 = vld [vmem:[%s1 + $0x2020] sm:$0xff]
  %v1143 = vld [vmem:[%s1 + $0x2028] sm:$0xff]
  %v1144 = vld [vmem:[%s1 + $0x2030] sm:$0xff]
  %v1145 = vld [vmem:[%s1 + $0x2038] sm:$0xff]
  %v1146 = vld [vmem:[%s1 + $0x2040] sm:$0xff]
  %v1147 = vld [vmem:[%s1 + $0x2048] sm:$0xff]
  %v1148 = vld [vmem:[%s1 + $0x2050] sm:$0xff]
  %v1149 = vld [vmem:[%s1 + $0x2058] sm:$0xff]
  %v1150 = vld [vmem:[%s1 + $0x2060] sm:$0xff]
  %v1151 = vld [vmem:[%s1 + $0x2068] sm:$0xff]
  %v1152 = vld [vmem:[%s1 + $0x2070] sm:$0xff]
  %v1153 = vld [vmem:[%s1 + $0x2078] sm:$0xff]
  %v1154 = vld [vmem:[%s1 + $0x2080] sm:$0xff]
  %v1155 = vld [vmem:[%s1 + $0x2088] sm:$0xff]
  %v1156 = vld [vmem:[%s1 + $0x2090] sm:$0xff]
  %v1157 = vld [vmem:[%s1 + $0x2098] sm:$0xff]
  %v1158 = vld [vmem:[%s1 + $0x20a0] sm:$0xff]
  %v1159 = vld [vmem:[%s1 + $0x20a8] sm:$0xff]
  %v1160 = vld [vmem:[%s1 + $0x20b0] sm:$0xff]
  %v1161 = vld [vmem:[%s1 + $0x20b8] sm:$0xff]
  %v1162 = vld [vmem:[%s1 + $0x20c0] sm:$0xff]
  %v1163 = vld [vmem:[%s1 + $0x20c8] sm:$0xff]
  %v1164 = vld [vmem:[%s1 + $0x20d0] sm:$0xff]
  %v1165 = vld [vmem:[%s1 + $0x20d8] sm:$0xff]
  %v1166 = vld [vmem:[%s1 + $0x20e0] sm:$0xff]
  %v1167 = vld [vmem:[%s1 + $0x20e8] sm:$0xff]
  %v1168 = vld [vmem:[%s1 + $0x20f0] sm:$0xff]
  %v1169 = vld [vmem:[%s1 + $0x20f8] sm:$0xff]
  %v1170 = vld [vmem:[%s1 + $0x2100] sm:$0xff]
  %v1171 = vld [vmem:[%s1 + $0x2108] sm:$0xff]
  %v1172 = vld [vmem:[%s1 + $0x2110] sm:$0xff]
  %v1173 = vld [vmem:[%s1 + $0x2118] sm:$0xff]
  %v1174 = vld [vmem:[%s1 + $0x2120] sm:$0xff]
  %v1175 = vld [vmem:[%s1 + $0x2128] sm:$0xff]
  %v1176 = vld [vmem:[%s1 + $0x2130] sm:$0xff]
  %v1177 = vld [vmem:[%s1 + $0x2138] sm:$0xff]
  %v1178 = vld [vmem:[%s1 + $0x2140] sm:$0xff]
  %v1179 = vld [vmem:[%s1 + $0x2148] sm:$0xff]
  %v1180 = vld [vmem:[%s1 + $0x2150] sm:$0xff]
  %v1181 = vld [vmem:[%s1 + $0x2158] sm:$0xff]
  %v1182 = vld [vmem:[%s1 + $0x2160] sm:$0xff]
  %v1183 = vld [vmem:[%s1 + $0x2168] sm:$0xff]
  %v1184 = vld [vmem:[%s1 + $0x2170] sm:$0xff]
  %v1185 = vld [vmem:[%s1 + $0x2178] sm:$0xff]
  %v1186 = vld [vmem:[%s1 + $0x2180] sm:$0xff]
  %v1187 = vld [vmem:[%s1 + $0x2188] sm:$0xff]
  %v1188 = vld [vmem:[%s1 + $0x2190] sm:$0xff]
  %v1189 = vld [vmem:[%s1 + $0x2198] sm:$0xff]
  %v1190 = vld [vmem:[%s1 + $0x21a0] sm:$0xff]
  %v1191 = vld [vmem:[%s1 + $0x21a8] sm:$0xff]
  %v1192 = vld [vmem:[%s1 + $0x21b0] sm:$0xff]
  %v1193 = vld [vmem:[%s1 + $0x21b8] sm:$0xff]
  %v1194 = vld [vmem:[%s1 + $0x21c0] sm:$0xff]
  %v1195 = vld [vmem:[%s1 + $0x21c8] sm:$0xff]
  %v1196 = vld [vmem:[%s1 + $0x21d0] sm:$0xff]
  %v1197 = vld [vmem:[%s1 + $0x21d8] sm:$0xff]
  %v1198 = vld [vmem:[%s1 + $0x21e0] sm:$0xff]
  %v1199 = vld [vmem:[%s1 + $0x21e8] sm:$0xff]
  %v1200 = vld [vmem:[%s1 + $0x21f0] sm:$0xff]
  %v1201 = vld [vmem:[%s1 + $0x21f8] sm:$0xff]
  %v1202 = vld [vmem:[%s1 + $0x2200] sm:$0xff]
  %v1203 = vld [vmem:[%s1 + $0x2208] sm:$0xff]
  %v1204 = vld [vmem:[%s1 + $0x2210] sm:$0xff]
  %v1205 = vld [vmem:[%s1 + $0x2218] sm:$0xff]
  %v1206 = vld [vmem:[%s1 + $0x2220] sm:$0xff]
  %v1207 = vld [vmem:[%s1 + $0x2228] sm:$0xff]
  %v1208 = vld [vmem:[%s1 + $0x2230] sm:$0xff]
  %v1209 = vld [vmem:[%s1 + $0x2238] sm:$0xff]
  %v1210 = vld [vmem:[%s1 + $0x2240] sm:$0xff]
  %v1211 = vld [vmem:[%s1 + $0x2248] sm:$0xff]
  %v1212 = vld [vmem:[%s1 + $0x2250] sm:$0xff]
  %v1213 = vld [vmem:[%s1 + $0x2258] sm:$0xff]
  %v1214 = vld [vmem:[%s1 + $0x2260] sm:$0xff]
  %v1215 = vld [vmem:[%s1 + $0x2268] sm:$0xff]
  %v1216 = vld [vmem:[%s1 + $0x2270] sm:$0xff]
  %v1217 = vld [vmem:[%s1 + $0x2278] sm:$0xff]
  %v1218 = vld [vmem:[%s1 + $0x2280] sm:$0xff]
  %v1219 = vld [vmem:[%s1 + $0x2288] sm:$0xff]
  %v1220 = vld [vmem:[%s1 + $0x2290] sm:$0xff]
  %v1221 = vld [vmem:[%s1 + $0x2298] sm:$0xff]
  %v1222 = vld [vmem:[%s1 + $0x22a0] sm:$0xff]
  %v1223 = vld [vmem:[%s1 + $0x22a8] sm:$0xff]
  %v1224 = vld [vmem:[%s1 + $0x22b0] sm:$0xff]
  %v1225 = vld [vmem:[%s1 + $0x22b8] sm:$0xff]
  %v1226 = vld [vmem:[%s1 + $0x22c0] sm:$0xff]
  %v1227 = vld [vmem:[%s1 + $0x22c8] sm:$0xff]
  %v1228 = vld [vmem:[%s1 + $0x22d0] sm:$0xff]
  %v1229 = vld [vmem:[%s1 + $0x22d8] sm:$0xff]
  %v1230 = vld [vmem:[%s1 + $0x22e0] sm:$0xff]
  %v1231 = vld [vmem:[%s1 + $0x22e8] sm:$0xff]
  %v1232 = vld [vmem:[%s1 + $0x22f0] sm:$0xff]
  %v1233 = vld [vmem:[%s1 + $0x22f8] sm:$0xff]
  %v1234 = vld [vmem:[%s1 + $0x2300] sm:$0xff]
  %v1235 = vld [vmem:[%s1 + $0x2308] sm:$0xff]
  %v1236 = vld [vmem:[%s1 + $0x2310] sm:$0xff]
  %v1237 = vld [vmem:[%s1 + $0x2318] sm:$0xff]
  %v1238 = vld [vmem:[%s1 + $0x2320] sm:$0xff]
  %v1239 = vld [vmem:[%s1 + $0x2328] sm:$0xff]
  %v1240 = vld [vmem:[%s1 + $0x2330] sm:$0xff]
  %v1241 = vld [vmem:[%s1 + $0x2338] sm:$0xff]
  %v1242 = vld [vmem:[%s1 + $0x2340] sm:$0xff]
  %v1243 = vld [vmem:[%s1 + $0x2348] sm:$0xff]
  %v1244 = vld [vmem:[%s1 + $0x2350] sm:$0xff]
  %v1245 = vld [vmem:[%s1 + $0x2358] sm:$0xff]
  %v1246 = vld [vmem:[%s1 + $0x2360] sm:$0xff]
  %v1247 = vld [vmem:[%s1 + $0x2368] sm:$0xff]
  %v1248 = vld [vmem:[%s1 + $0x2370] sm:$0xff]
  %v1249 = vld [vmem:[%s1 + $0x2378] sm:$0xff]
  %v1250 = vld [vmem:[%s1 + $0x2380] sm:$0xff]
  %v1251 = vld [vmem:[%s1 + $0x2388] sm:$0xff]
  %v1252 = vld [vmem:[%s1 + $0x2390] sm:$0xff]
  %v1253 = vld [vmem:[%s1 + $0x2398] sm:$0xff]
  %v1254 = vld [vmem:[%s1 + $0x23a0] sm:$0xff]
  %v1255 = vld [vmem:[%s1 + $0x23a8] sm:$0xff]
  %v1256 = vld [vmem:[%s1 + $0x23b0] sm:$0xff]
  %v1257 = vld [vmem:[%s1 + $0x23b8] sm:$0xff]
  %v1258 = vld [vmem:[%s1 + $0x23c0] sm:$0xff]
  %v1259 = vld [vmem:[%s1 + $0x23c8] sm:$0xff]
  %v1260 = vld [vmem:[%s1 + $0x23d0] sm:$0xff]
  %v1261 = vld [vmem:[%s1 + $0x23d8] sm:$0xff]
  %v1262 = vld [vmem:[%s1 + $0x23e0] sm:$0xff]
  %v1263 = vld [vmem:[%s1 + $0x23e8] sm:$0xff]
  %v1264 = vld [vmem:[%s1 + $0x23f0] sm:$0xff]
  %v1265 = vld [vmem:[%s1 + $0x23f8] sm:$0xff]
  %v1266 = vld [vmem:[%s1 + $0x2400] sm:$0xff]
  %v1267 = vld [vmem:[%s1 + $0x2408] sm:$0xff]
  %v1268 = vld [vmem:[%s1 + $0x2410] sm:$0xff]
  %v1269 = vld [vmem:[%s1 + $0x2418] sm:$0xff]
  %v1270 = vld [vmem:[%s1 + $0x2420] sm:$0xff]
  %v1271 = vld [vmem:[%s1 + $0x2428] sm:$0xff]
  %v1272 = vld [vmem:[%s1 + $0x2430] sm:$0xff]
  %v1273 = vld [vmem:[%s1 + $0x2438] sm:$0xff]
  %v1274 = vld [vmem:[%s1 + $0x2440] sm:$0xff]
  %v1275 = vld [vmem:[%s1 + $0x2448] sm:$0xff]
  %v1276 = vld [vmem:[%s1 + $0x2450] sm:$0xff]
  %v1277 = vld [vmem:[%s1 + $0x2458] sm:$0xff]
  %v1278 = vld [vmem:[%s1 + $0x2460] sm:$0xff]
  %v1279 = vld [vmem:[%s1 + $0x2468] sm:$0xff]
  %v1280 = vld [vmem:[%s1 + $0x2470] sm:$0xff]
  %v1281 = vld [vmem:[%s1 + $0x2478] sm:$0xff]
  %v1282 = vld [vmem:[%s1 + $0x2480] sm:$0xff]
  %v1283 = vld [vmem:[%s1 + $0x2488] sm:$0xff]
  %v1284 = vld [vmem:[%s1 + $0x2490] sm:$0xff]
  %v1285 = vld [vmem:[%s1 + $0x2498] sm:$0xff]
  %v1286 = vld [vmem:[%s1 + $0x24a0] sm:$0xff]
  %v1287 = vld [vmem:[%s1 + $0x24a8] sm:$0xff]
  %v1288 = vld [vmem:[%s1 + $0x24b0] sm:$0xff]
  %v1289 = vld [vmem:[%s1 + $0x24b8] sm:$0xff]
  %v1290 = vld [vmem:[%s1 + $0x24c0] sm:$0xff]
  %v1291 = vld [vmem:[%s1 + $0x24c8] sm:$0xff]
  %v1292 = vld [vmem:[%s1 + $0x24d0] sm:$0xff]
  %v1293 = vld [vmem:[%s1 + $0x24d8] sm:$0xff]
  %v1294 = vld [vmem:[%s1 + $0x24e0] sm:$0xff]
  %v1295 = vld [vmem:[%s1 + $0x24e8] sm:$0xff]
  %v1296 = vld [vmem:[%s1 + $0x24f0] sm:$0xff]
  %v1297 = vld [vmem:[%s1 + $0x24f8] sm:$0xff]
  %v1298 = vld [vmem:[%s1 + $0x2500] sm:$0xff]
  %v1299 = vld [vmem:[%s1 + $0x2508] sm:$0xff]
  %v1300 = vld [vmem:[%s1 + $0x2510] sm:$0xff]
  %v1301 = vld [vmem:[%s1 + $0x2518] sm:$0xff]
  %v1302 = vld [vmem:[%s1 + $0x2520] sm:$0xff]
  %v1303 = vld [vmem:[%s1 + $0x2528] sm:$0xff]
  %v1304 = vld [vmem:[%s1 + $0x2530] sm:$0xff]
  %v1305 = vld [vmem:[%s1 + $0x2538] sm:$0xff]
  %v1306 = vld [vmem:[%s1 + $0x2540] sm:$0xff]
  %v1307 = vld [vmem:[%s1 + $0x2548] sm:$0xff]
  %v1308 = vld [vmem:[%s1 + $0x2550] sm:$0xff]
  %v1309 = vld [vmem:[%s1 + $0x2558] sm:$0xff]
  %v1310 = vld [vmem:[%s1 + $0x2560] sm:$0xff]
  %v1311 = vld [vmem:[%s1 + $0x2568] sm:$0xff]
  %v1312 = vld [vmem:[%s1 + $0x2570] sm:$0xff]
  %v1313 = vld [vmem:[%s1 + $0x2578] sm:$0xff]
  %v1314 = vld [vmem:[%s1 + $0x2580] sm:$0xff]
  %v1315 = vld [vmem:[%s1 + $0x2588] sm:$0xff]
  %v1316 = vld [vmem:[%s1 + $0x2590] sm:$0xff]
  %v1317 = vld [vmem:[%s1 + $0x2598] sm:$0xff]
  %v1318 = vld [vmem:[%s1 + $0x25a0] sm:$0xff]
  %v1319 = vld [vmem:[%s1 + $0x25a8] sm:$0xff]
  %v1320 = vld [vmem:[%s1 + $0x25b0] sm:$0xff]
  %v1321 = vld [vmem:[%s1 + $0x25b8] sm:$0xff]
  %v1322 = vld [vmem:[%s1 + $0x25c0] sm:$0xff]
  %v1323 = vld [vmem:[%s1 + $0x25c8] sm:$0xff]
  %v1324 = vld [vmem:[%s1 + $0x25d0] sm:$0xff]
  %v1325 = vld [vmem:[%s1 + $0x25d8] sm:$0xff]
  %v1326 = vld [vmem:[%s1 + $0x25e0] sm:$0xff]
  %v1327 = vld [vmem:[%s1 + $0x25e8] sm:$0xff]
  %v1328 = vld [vmem:[%s1 + $0x25f0] sm:$0xff]
  %v1329 = vld [vmem:[%s1 + $0x25f8] sm:$0xff]
  %v1330 = vld [vmem:[%s1 + $0x2600] sm:$0xff]
  %v1331 = vld [vmem:[%s1 + $0x2608] sm:$0xff]
  %v1332 = vld [vmem:[%s1 + $0x2610] sm:$0xff]
  %v1333 = vld [vmem:[%s1 + $0x2618] sm:$0xff]
  %v1334 = vld [vmem:[%s1 + $0x2620] sm:$0xff]
  %v1335 = vld [vmem:[%s1 + $0x2628] sm:$0xff]
  %v1336 = vld [vmem:[%s1 + $0x2630] sm:$0xff]
  %v1337 = vld [vmem:[%s1 + $0x2638] sm:$0xff]
  %v1338 = vld [vmem:[%s1 + $0x2640] sm:$0xff]
  %v1339 = vld [vmem:[%s1 + $0x2648] sm:$0xff]
  %v1340 = vld [vmem:[%s1 + $0x2650] sm:$0xff]
  %v1341 = vld [vmem:[%s1 + $0x2658] sm:$0xff]
  %v1342 = vld [vmem:[%s1 + $0x2660] sm:$0xff]
  %v1343 = vld [vmem:[%s1 + $0x2668] sm:$0xff]
  %v1344 = vld [vmem:[%s1 + $0x2670] sm:$0xff]
  %v1345 = vld [vmem:[%s1 + $0x2678] sm:$0xff]
  %v1346 = vld [vmem:[%s1 + $0x2680] sm:$0xff]
  %v1347 = vld [vmem:[%s1 + $0x2688] sm:$0xff]
  %v1348 = vld [vmem:[%s1 + $0x2690] sm:$0xff]
  %v1349 = vld [vmem:[%s1 + $0x2698] sm:$0xff]
  %v1350 = vld [vmem:[%s1 + $0x26a0] sm:$0xff]
  %v1351 = vld [vmem:[%s1 + $0x26a8] sm:$0xff]
  %v1352 = vld [vmem:[%s1 + $0x26b0] sm:$0xff]
  %v1353 = vld [vmem:[%s1 + $0x26b8] sm:$0xff]
  %v1354 = vld [vmem:[%s1 + $0x26c0] sm:$0xff]
  %v1355 = vld [vmem:[%s1 + $0x26c8] sm:$0xff]
  %v1356 = vld [vmem:[%s1 + $0x26d0] sm:$0xff]
  %v1357 = vld [vmem:[%s1 + $0x26d8] sm:$0xff]
  %v1358 = vld [vmem:[%s1 + $0x26e0] sm:$0xff]
  %v1359 = vld [vmem:[%s1 + $0x26e8] sm:$0xff]
  %v1360 = vld [vmem:[%s1 + $0x26f0] sm:$0xff]
  %v1361 = vld [vmem:[%s1 + $0x26f8] sm:$0xff]
  %v1362 = vld [vmem:[%s1 + $0x2700] sm:$0xff]
  %v1363 = vld [vmem:[%s1 + $0x2708] sm:$0xff]
  %v1364 = vld [vmem:[%s1 + $0x2710] sm:$0xff]
  %v1365 = vld [vmem:[%s1 + $0x2718] sm:$0xff]
  %v1366 = vld [vmem:[%s1 + $0x2720] sm:$0xff]
  %v1367 = vld [vmem:[%s1 + $0x2728] sm:$0xff]
  %v1368 = vld [vmem:[%s1 + $0x2730] sm:$0xff]
  %v1369 = vld [vmem:[%s1 + $0x2738] sm:$0xff]
  %v1370 = vld [vmem:[%s1 + $0x2740] sm:$0xff]
  %v1371 = vld [vmem:[%s1 + $0x2748] sm:$0xff]
  %v1372 = vld [vmem:[%s1 + $0x2750] sm:$0xff]
  %v1373 = vld [vmem:[%s1 + $0x2758] sm:$0xff]
  %v1374 = vld [vmem:[%s1 + $0x2760] sm:$0xff]
  %v1375 = vld [vmem:[%s1 + $0x2768] sm:$0xff]
  %v1376 = vld [vmem:[%s1 + $0x2770] sm:$0xff]
  %v1377 = vld [vmem:[%s1 + $0x2778] sm:$0xff]
  %v1378 = vld [vmem:[%s1 + $0x2780] sm:$0xff]
  %v1379 = vld [vmem:[%s1 + $0x2788] sm:$0xff]
  %v1380 = vld [vmem:[%s1 + $0x2790] sm:$0xff]
  %v1381 = vld [vmem:[%s1 + $0x2798] sm:$0xff]
  %v1382 = vld [vmem:[%s1 + $0x27a0] sm:$0xff]
  %v1383 = vld [vmem:[%s1 + $0x27a8] sm:$0xff]
  %v1384 = vld [vmem:[%s1 + $0x27b0] sm:$0xff]
  %v1385 = vld [vmem:[%s1 + $0x27b8] sm:$0xff]
  %v1386 = vld [vmem:[%s1 + $0x27c0] sm:$0xff]
  %v1387 = vld [vmem:[%s1 + $0x27c8] sm:$0xff]
  %v1388 = vld [vmem:[%s1 + $0x27d0] sm:$0xff]
  %v1389 = vld [vmem:[%s1 + $0x27d8] sm:$0xff]
  %v1390 = vld [vmem:[%s1 + $0x27e0] sm:$0xff]
  %v1391 = vld [vmem:[%s1 + $0x27e8] sm:$0xff]
  %v1392 = vld [vmem:[%s1 + $0x27f0] sm:$0xff]
  %v1393 = vld [vmem:[%s1 + $0x27f8] sm:$0xff]
  %v1394 = vld [vmem:[%s1 + $0x2800] sm:$0xff]
  %v1395 = vld [vmem:[%s1 + $0x2808] sm:$0xff]
  %v1396 = vld [vmem:[%s1 + $0x2810] sm:$0xff]
  %v1397 = vld [vmem:[%s1 + $0x2818] sm:$0xff]
  %v1398 = vld [vmem:[%s1 + $0x2820] sm:$0xff]
  %v1399 = vld [vmem:[%s1 + $0x2828] sm:$0xff]
  %v1400 = vld [vmem:[%s1 + $0x2830] sm:$0xff]
  %v1401 = vld [vmem:[%s1 + $0x2838] sm:$0xff]
  %v1402 = vld [vmem:[%s1 + $0x2840] sm:$0xff]
  %v1403 = vld [vmem:[%s1 + $0x2848] sm:$0xff]
  %v1404 = vld [vmem:[%s1 + $0x2850] sm:$0xff]
  %v1405 = vld [vmem:[%s1 + $0x2858] sm:$0xff]
  %v1406 = vld [vmem:[%s1 + $0x2860] sm:$0xff]
  %v1407 = vld [vmem:[%s1 + $0x2868] sm:$0xff]
  %v1408 = vld [vmem:[%s1 + $0x2870] sm:$0xff]
  %v1409 = vld [vmem:[%s1 + $0x2878] sm:$0xff]
  %v1410 = vld [vmem:[%s1 + $0x2880] sm:$0xff]
  %v1411 = vld [vmem:[%s1 + $0x2888] sm:$0xff]
  %v1412 = vld [vmem:[%s1 + $0x2890] sm:$0xff]
  %v1413 = vld [vmem:[%s1 + $0x2898] sm:$0xff]
  %v1414 = vld [vmem:[%s1 + $0x28a0] sm:$0xff]
  %v1415 = vld [vmem:[%s1 + $0x28a8] sm:$0xff]
  %v1416 = vld [vmem:[%s1 + $0x28b0] sm:$0xff]
  %v1417 = vld [vmem:[%s1 + $0x28b8] sm:$0xff]
  %v1418 = vld [vmem:[%s1 + $0x28c0] sm:$0xff]
  %v1419 = vld [vmem:[%s1 + $0x28c8] sm:$0xff]
  %v1420 = vld [vmem:[%s1 + $0x28d0] sm:$0xff]
  %v1421 = vld [vmem:[%s1 + $0x28d8] sm:$0xff]
  %v1422 = vld [vmem:[%s1 + $0x28e0] sm:$0xff]
  %v1423 = vld [vmem:[%s1 + $0x28e8] sm:$0xff]
  %v1424 = vld [vmem:[%s1 + $0x28f0] sm:$0xff]
  %v1425 = vld [vmem:[%s1 + $0x28f8] sm:$0xff]
  %v1426 = vld [vmem:[%s1 + $0x2900] sm:$0xff]
  %v1427 = vld [vmem:[%s1 + $0x2908] sm:$0xff]
  %v1428 = vld [vmem:[%s1 + $0x2910] sm:$0xff]
  %v1429 = vld [vmem:[%s1 + $0x2918] sm:$0xff]
  %v1430 = vld [vmem:[%s1 + $0x2920] sm:$0xff]
  %v1431 = vld [vmem:[%s1 + $0x2928] sm:$0xff]
  %v1432 = vld [vmem:[%s1 + $0x2930] sm:$0xff]
  %v1433 = vld [vmem:[%s1 + $0x2938] sm:$0xff]
  %v1434 = vld [vmem:[%s1 + $0x2940] sm:$0xff]
  %v1435 = vld [vmem:[%s1 + $0x2948] sm:$0xff]
  %v1436 = vld [vmem:[%s1 + $0x2950] sm:$0xff]
  %v1437 = vld [vmem:[%s1 + $0x2958] sm:$0xff]
  %v1438 = vld [vmem:[%s1 + $0x2960] sm:$0xff]
  %v1439 = vld [vmem:[%s1 + $0x2968] sm:$0xff]
  %v1440 = vld [vmem:[%s1 + $0x2970] sm:$0xff]
  %v1441 = vld [vmem:[%s1 + $0x2978] sm:$0xff]
  %v1442 = vld [vmem:[%s1 + $0x2980] sm:$0xff]
  %v1443 = vld [vmem:[%s1 + $0x2988] sm:$0xff]
  %v1444 = vld [vmem:[%s1 + $0x2990] sm:$0xff]
  %v1445 = vld [vmem:[%s1 + $0x2998] sm:$0xff]
  %v1446 = vld [vmem:[%s1 + $0x29a0] sm:$0xff]
  %v1447 = vld [vmem:[%s1 + $0x29a8] sm:$0xff]
  %v1448 = vld [vmem:[%s1 + $0x29b0] sm:$0xff]
  %v1449 = vld [vmem:[%s1 + $0x29b8] sm:$0xff]
  %v1450 = vld [vmem:[%s1 + $0x29c0] sm:$0xff]
  %v1451 = vld [vmem:[%s1 + $0x29c8] sm:$0xff]
  %v1452 = vld [vmem:[%s1 + $0x29d0] sm:$0xff]
  %v1453 = vld [vmem:[%s1 + $0x29d8] sm:$0xff]
  %v1454 = vld [vmem:[%s1 + $0x29e0] sm:$0xff]
  %v1455 = vld [vmem:[%s1 + $0x29e8] sm:$0xff]
  %v1456 = vld [vmem:[%s1 + $0x29f0] sm:$0xff]
  %v1457 = vld [vmem:[%s1 + $0x29f8] sm:$0xff]
  %v1458 = vld [vmem:[%s1 + $0x2a00] sm:$0xff]
  %v1459 = vld [vmem:[%s1 + $0x2a08] sm:$0xff]
  %v1460 = vld [vmem:[%s1 + $0x2a10] sm:$0xff]
  %v1461 = vld [vmem:[%s1 + $0x2a18] sm:$0xff]
  %v1462 = vld [vmem:[%s1 + $0x2a20] sm:$0xff]
  %v1463 = vld [vmem:[%s1 + $0x2a28] sm:$0xff]
  %v1464 = vld [vmem:[%s1 + $0x2a30] sm:$0xff]
  %v1465 = vld [vmem:[%s1 + $0x2a38] sm:$0xff]
  %v1466 = vld [vmem:[%s1 + $0x2a40] sm:$0xff]
  %v1467 = vld [vmem:[%s1 + $0x2a48] sm:$0xff]
  %v1468 = vld [vmem:[%s1 + $0x2a50] sm:$0xff]
  %v1469 = vld [vmem:[%s1 + $0x2a58] sm:$0xff]
  %v1470 = vld [vmem:[%s1 + $0x2a60] sm:$0xff]
  %v1471 = vld [vmem:[%s1 + $0x2a68] sm:$0xff]
  %v1472 = vld [vmem:[%s1 + $0x2a70] sm:$0xff]
  %v1473 = vld [vmem:[%s1 + $0x2a78] sm:$0xff]
  %v1474 = vld [vmem:[%s1 + $0x2a80] sm:$0xff]
  %v1475 = vld [vmem:[%s1 + $0x2a88] sm:$0xff]
  %v1476 = vld [vmem:[%s1 + $0x2a90] sm:$0xff]
  %v1477 = vld [vmem:[%s1 + $0x2a98] sm:$0xff]
  %v1478 = vld [vmem:[%s1 + $0x2aa0] sm:$0xff]
  %v1479 = vld [vmem:[%s1 + $0x2aa8] sm:$0xff]
  %v1480 = vld [vmem:[%s1 + $0x2ab0] sm:$0xff]
  %v1481 = vld [vmem:[%s1 + $0x2ab8] sm:$0xff]
  %v1482 = vld [vmem:[%s1 + $0x2ac0] sm:$0xff]
  %v1483 = vld [vmem:[%s1 + $0x2ac8] sm:$0xff]
  %v1484 = vld [vmem:[%s1 + $0x2ad0] sm:$0xff]
  %v1485 = vld [vmem:[%s1 + $0x2ad8] sm:$0xff]
  %v1486 = vld [vmem:[%s1 + $0x2ae0] sm:$0xff]
  %v1487 = vld [vmem:[%s1 + $0x2ae8] sm:$0xff]
  %v1488 = vld [vmem:[%s1 + $0x2af0] sm:$0xff]
  %v1489 = vld [vmem:[%s2] sm:$0x1]
  %v1491 = vlaneseq
  %v1492 = vshrl.u32 %v1491, 7
  %v1493 = vsub.s32 0, %v1492
  %v1494 = vrot.slane %v1489, %v1493
  %vm1496 = vcmask 982016
  %v1498 = vsel %vm1496, %v113, 0
  %1500 = vmatprep.subr.mxu0 0.0
  %1501 = vmatpush1.msra.mxu0 %v114
  %1502 = vmatprep.subr.mxu0 0.0
  %1503 = vmatpush1.msra.mxu0 %v115
  %1504 = vmatprep.subr.mxu0 0.0
  %1505 = vmatpush1.msra.mxu0 %v116
  %1506 = vmatprep.subr.mxu0 0.0
  %1507 = vmatpush1.msra.mxu0 %v117
  %1508 = vmatprep.subr.mxu0 0.0
  %1509 = vmatpush1.msra.mxu0 %v118
  %1510 = vmatprep.subr.mxu0 0.0
  %1511 = vmatpush1.msra.mxu0 %v119
  %1512 = vmatprep.subr.mxu0 0.0
  %1513 = vmatpush1.msra.mxu0 %v120
  %1514 = vmatprep.subr.mxu0 0.0
  %1515 = vmatpush1.msra.mxu0 %v121
  %1516 = vmatprep.subr.mxu0 0.0
  %1517 = vmatpush1.msra.mxu0 %v122
  %1518 = vmatprep.subr.mxu0 0.0
  %1519 = vmatpush1.msra.mxu0 %v123
  %1520 = vmatprep.subr.mxu0 0.0
  %1521 = vmatpush1.msra.mxu0 %v124
  %1522 = vmatprep.subr.mxu0 0.0
  %1523 = vmatpush1.msra.mxu0 %v125
  %1524 = vmatprep.subr.mxu0 0.0
  %1525 = vmatpush1.msra.mxu0 %v126
  %1526 = vmatprep.subr.mxu0 0.0
  %1527 = vmatpush1.msra.mxu0 %v127
  %1528 = vmatprep.subr.mxu0 0.0
  %1529 = vmatpush1.msra.mxu0 %v128
  %1530 = vmatprep.subr.mxu0 0.0
  %1531 = vmatpush1.msra.mxu0 %v129
  %1532 = vmatprep.subr.mxu0 0.0
  %1533 = vmatpush1.msra.mxu0 %v130
  %1534 = vmatprep.subr.mxu0 0.0
  %1535 = vmatpush1.msra.mxu0 %v131
  %1536 = vmatprep.subr.mxu0 0.0
  %1537 = vmatpush1.msra.mxu0 %v132
  %1538 = vmatprep.subr.mxu0 0.0
  %1539 = vmatpush1.msra.mxu0 %v133
  %1540 = vmatprep.subr.mxu0 0.0
  %1541 = vmatpush1.msra.mxu0 %v134
  %1542 = vmatprep.subr.mxu0 0.0
  %1543 = vmatpush1.msra.mxu0 %v135
  %1544 = vmatprep.subr.mxu0 0.0
  %1545 = vmatpush1.msra.mxu0 %v136
  %1546 = vmatprep.subr.mxu0 0.0
  %1547 = vmatpush1.msra.mxu0 %v137
  %1548 = vmatprep.subr.mxu0 0.0
  %1549 = vmatpush1.msra.mxu0 %v138
  %1550 = vmatprep.subr.mxu0 0.0
  %1551 = vmatpush1.msra.mxu0 %v139
  %1552 = vmatprep.subr.mxu0 0.0
  %1553 = vmatpush1.msra.mxu0 %v140
  %1554 = vmatprep.subr.mxu0 0.0
  %1555 = vmatpush1.msra.mxu0 %v141
  %1556 = vmatprep.subr.mxu0 0.0
  %1557 = vmatpush1.msra.mxu0 %v142
  %1558 = vmatprep.subr.mxu0 0.0
  %1559 = vmatpush1.msra.mxu0 %v143
  %1560 = vmatprep.subr.mxu0 0.0
  %1561 = vmatpush1.msra.mxu0 %v144
  %1562 = vmatprep.subr.mxu0 0.0
  %1563 = vmatpush1.msra.mxu0 %v145
  %1564 = vmatprep.mubr.f32.mxu0 %v29
  %1565 = vmatmul.mubr.f32.gmra.mrb[0].mxu0 %v28
  %v1566 = vpop.f32.mrb[0].mxu0
  %v1567 = vadd.f32 %v1494, %v1566
  %v1568 = vpop.f32.mrb[0].mxu0
  %1569 = vdwg.mxu0
  %1570 = vmatprep.subr.mxu0 0.0
  %1571 = vmatpush1.msra.mxu0 %v146
  %1572 = vmatprep.subr.mxu0 0.0
  %1573 = vmatpush1.msra.mxu0 %v147
  %1574 = vmatprep.subr.mxu0 0.0
  %1575 = vmatpush1.msra.mxu0 %v148
  %1576 = vmatprep.subr.mxu0 0.0
  %1577 = vmatpush1.msra.mxu0 %v149
  %1578 = vmatprep.subr.mxu0 0.0
  %1579 = vmatpush1.msra.mxu0 %v150
  %1580 = vmatprep.subr.mxu0 0.0
  %1581 = vmatpush1.msra.mxu0 %v151
  %1582 = vmatprep.subr.mxu0 0.0
  %1583 = vmatpush1.msra.mxu0 %v152
  %1584 = vmatprep.subr.mxu0 0.0
  %1585 = vmatpush1.msra.mxu0 %v153
  %1586 = vmatprep.subr.mxu0 0.0
  %1587 = vmatpush1.msra.mxu0 %v154
  %1588 = vmatprep.subr.mxu0 0.0
  %1589 = vmatpush1.msra.mxu0 %v155
  %1590 = vmatprep.subr.mxu0 0.0
  %1591 = vmatpush1.msra.mxu0 %v156
  %1592 = vmatprep.subr.mxu0 0.0
  %1593 = vmatpush1.msra.mxu0 %v157
  %1594 = vmatprep.subr.mxu0 0.0
  %1595 = vmatpush1.msra.mxu0 %v158
  %1596 = vmatprep.subr.mxu0 0.0
  %1597 = vmatpush1.msra.mxu0 %v159
  %1598 = vmatprep.subr.mxu0 0.0
  %1599 = vmatpush1.msra.mxu0 %v160
  %1600 = vmatprep.subr.mxu0 0.0
  %1601 = vmatpush1.msra.mxu0 %v161
  %1602 = vmatprep.subr.mxu0 0.0
  %1603 = vmatpush1.msra.mxu0 %v162
  %1604 = vmatprep.subr.mxu0 0.0
  %1605 = vmatpush1.msra.mxu0 %v163
  %1606 = vmatprep.subr.mxu0 0.0
  %1607 = vmatpush1.msra.mxu0 %v164
  %1608 = vmatprep.subr.mxu0 0.0
  %1609 = vmatpush1.msra.mxu0 %v165
  %1610 = vmatprep.subr.mxu0 0.0
  %1611 = vmatpush1.msra.mxu0 %v166
  %1612 = vmatprep.subr.mxu0 0.0
  %1613 = vmatpush1.msra.mxu0 %v167
  %1614 = vmatprep.subr.mxu0 0.0
  %1615 = vmatpush1.msra.mxu0 %v168
  %1616 = vmatprep.subr.mxu0 0.0
  %1617 = vmatpush1.msra.mxu0 %v169
  %1618 = vmatprep.subr.mxu0 0.0
  %1619 = vmatpush1.msra.mxu0 %v170
  %1620 = vmatprep.subr.mxu0 0.0
  %1621 = vmatpush1.msra.mxu0 %v171
  %1622 = vmatprep.subr.mxu0 0.0
  %1623 = vmatpush1.msra.mxu0 %v172
  %1624 = vmatprep.subr.mxu0 0.0
  %1625 = vmatpush1.msra.mxu0 %v173
  %1626 = vmatprep.subr.mxu0 0.0
  %1627 = vmatpush1.msra.mxu0 %v174
  %1628 = vmatprep.subr.mxu0 0.0
  %1629 = vmatpush1.msra.mxu0 %v175
  %1630 = vmatprep.subr.mxu0 0.0
  %1631 = vmatpush1.msra.mxu0 %v176
  %1632 = vmatprep.subr.mxu0 0.0
  %1633 = vmatpush1.msra.mxu0 %v177
  %1634 = vmatprep.mubr.f32.mxu0 %v31
  %1635 = vmatmul.mubr.f32.gmra.mrb[0].mxu0 %v30
  %v1636 = vpop.f32.mrb[0].mxu0
  %v1637 = vadd.f32 %v1567, %v1636
  %v1638 = vpop.f32.mrb[0].mxu0
  %1639 = vdwg.mxu0
  %1640 = vmatprep.subr.mxu0 0.0
  %1641 = vmatpush1.msra.mxu0 %v178
  %1642 = vmatprep.subr.mxu0 0.0
  %1643 = vmatpush1.msra.mxu0 %v179
  %1644 = vmatprep.subr.mxu0 0.0
  %1645 = vmatpush1.msra.mxu0 %v180
  %1646 = vmatprep.subr.mxu0 0.0
  %1647 = vmatpush1.msra.mxu0 %v181
  %1648 = vmatprep.subr.mxu0 0.0
  %1649 = vmatpush1.msra.mxu0 %v182
  %1650 = vmatprep.subr.mxu0 0.0
  %1651 = vmatpush1.msra.mxu0 %v183
  %1652 = vmatprep.subr.mxu0 0.0
  %1653 = vmatpush1.msra.mxu0 %v184
  %1654 = vmatprep.subr.mxu0 0.0
  %1655 = vmatpush1.msra.mxu0 %v185
  %1656 = vmatprep.subr.mxu0 0.0
  %1657 = vmatpush1.msra.mxu0 %v186
  %1658 = vmatprep.subr.mxu0 0.0
  %1659 = vmatpush1.msra.mxu0 %v187
  %1660 = vmatprep.subr.mxu0 0.0
  %1661 = vmatpush1.msra.mxu0 %v188
  %1662 = vmatprep.subr.mxu0 0.0
  %1663 = vmatpush1.msra.mxu0 %v189
  %1664 = vmatprep.subr.mxu0 0.0
  %1665 = vmatpush1.msra.mxu0 %v190
  %1666 = vmatprep.subr.mxu0 0.0
  %1667 = vmatpush1.msra.mxu0 %v191
  %1668 = vmatprep.subr.mxu0 0.0
  %1669 = vmatpush1.msra.mxu0 %v192
  %1670 = vmatprep.subr.mxu0 0.0
  %1671 = vmatpush1.msra.mxu0 %v193
  %1672 = vmatprep.subr.mxu0 0.0
  %1673 = vmatpush1.msra.mxu0 %v194
  %1674 = vmatprep.subr.mxu0 0.0
  %1675 = vmatpush1.msra.mxu0 %v195
  %1676 = vmatprep.subr.mxu0 0.0
  %1677 = vmatpush1.msra.mxu0 %v196
  %1678 = vmatprep.subr.mxu0 0.0
  %1679 = vmatpush1.msra.mxu0 %v197
  %1680 = vmatprep.subr.mxu0 0.0
  %1681 = vmatpush1.msra.mxu0 %v198
  %1682 = vmatprep.subr.mxu0 0.0
  %1683 = vmatpush1.msra.mxu0 %v199
  %1684 = vmatprep.subr.mxu0 0.0
  %1685 = vmatpush1.msra.mxu0 %v200
  %1686 = vmatprep.subr.mxu0 0.0
  %1687 = vmatpush1.msra.mxu0 %v201
  %1688 = vmatprep.subr.mxu0 0.0
  %1689 = vmatpush1.msra.mxu0 %v202
  %1690 = vmatprep.subr.mxu0 0.0
  %1691 = vmatpush1.msra.mxu0 %v203
  %1692 = vmatprep.subr.mxu0 0.0
  %1693 = vmatpush1.msra.mxu0 %v204
  %1694 = vmatprep.subr.mxu0 0.0
  %1695 = vmatpush1.msra.mxu0 %v205
  %1696 = vmatprep.subr.mxu0 0.0
  %1697 = vmatpush1.msra.mxu0 %v206
  %1698 = vmatprep.subr.mxu0 0.0
  %1699 = vmatpush1.msra.mxu0 %v207
  %1700 = vmatprep.subr.mxu0 0.0
  %1701 = vmatpush1.msra.mxu0 %v208
  %1702 = vmatprep.subr.mxu0 0.0
  %1703 = vmatpush1.msra.mxu0 %v209
  %1704 = vmatprep.mubr.f32.mxu0 %v33
  %1705 = vmatmul.mubr.f32.gmra.mrb[0].mxu0 %v32
  %v1706 = vpop.f32.mrb[0].mxu0
  %v1707 = vadd.f32 %v1637, %v1706
  %v1708 = vpop.f32.mrb[0].mxu0
  %1709 = vdwg.mxu0
  %1710 = vmatprep.subr.mxu0 0.0
  %1711 = vmatpush1.msra.mxu0 %v210
  %1712 = vmatprep.subr.mxu0 0.0
  %1713 = vmatpush1.msra.mxu0 %v211
  %1714 = vmatprep.subr.mxu0 0.0
  %1715 = vmatpush1.msra.mxu0 %v212
  %1716 = vmatprep.subr.mxu0 0.0
  %1717 = vmatpush1.msra.mxu0 %v213
  %1718 = vmatprep.subr.mxu0 0.0
  %1719 = vmatpush1.msra.mxu0 %v214
  %1720 = vmatprep.subr.mxu0 0.0
  %1721 = vmatpush1.msra.mxu0 %v215
  %1722 = vmatprep.subr.mxu0 0.0
  %1723 = vmatpush1.msra.mxu0 %v216
  %1724 = vmatprep.subr.mxu0 0.0
  %1725 = vmatpush1.msra.mxu0 %v217
  %1726 = vmatprep.subr.mxu0 0.0
  %1727 = vmatpush1.msra.mxu0 %v218
  %1728 = vmatprep.subr.mxu0 0.0
  %1729 = vmatpush1.msra.mxu0 %v219
  %1730 = vmatprep.subr.mxu0 0.0
  %1731 = vmatpush1.msra.mxu0 %v220
  %1732 = vmatprep.subr.mxu0 0.0
  %1733 = vmatpush1.msra.mxu0 %v221
  %1734 = vmatprep.subr.mxu0 0.0
  %1735 = vmatpush1.msra.mxu0 %v222
  %1736 = vmatprep.subr.mxu0 0.0
  %1737 = vmatpush1.msra.mxu0 %v223
  %1738 = vmatprep.subr.mxu0 0.0
  %1739 = vmatpush1.msra.mxu0 %v224
  %1740 = vmatprep.subr.mxu0 0.0
  %1741 = vmatpush1.msra.mxu0 %v225
  %1742 = vmatprep.subr.mxu0 0.0
  %1743 = vmatpush1.msra.mxu0 %v226
  %1744 = vmatprep.subr.mxu0 0.0
  %1745 = vmatpush1.msra.mxu0 %v227
  %1746 = vmatprep.subr.mxu0 0.0
  %1747 = vmatpush1.msra.mxu0 %v228
  %1748 = vmatprep.subr.mxu0 0.0
  %1749 = vmatpush1.msra.mxu0 %v229
  %1750 = vmatprep.subr.mxu0 0.0
  %1751 = vmatpush1.msra.mxu0 %v230
  %1752 = vmatprep.subr.mxu0 0.0
  %1753 = vmatpush1.msra.mxu0 %v231
  %1754 = vmatprep.subr.mxu0 0.0
  %1755 = vmatpush1.msra.mxu0 %v232
  %1756 = vmatprep.subr.mxu0 0.0
  %1757 = vmatpush1.msra.mxu0 %v233
  %1758 = vmatprep.subr.mxu0 0.0
  %1759 = vmatpush1.msra.mxu0 %v234
  %1760 = vmatprep.subr.mxu0 0.0
  %1761 = vmatpush1.msra.mxu0 %v235
  %1762 = vmatprep.subr.mxu0 0.0
  %1763 = vmatpush1.msra.mxu0 %v236
  %1764 = vmatprep.subr.mxu0 0.0
  %1765 = vmatpush1.msra.mxu0 %v237
  %1766 = vmatprep.subr.mxu0 0.0
  %1767 = vmatpush1.msra.mxu0 %v238
  %1768 = vmatprep.subr.mxu0 0.0
  %1769 = vmatpush1.msra.mxu0 %v239
  %1770 = vmatprep.subr.mxu0 0.0
  %1771 = vmatpush1.msra.mxu0 %v240
  %1772 = vmatprep.subr.mxu0 0.0
  %1773 = vmatpush1.msra.mxu0 %v241
  %1774 = vmatprep.mubr.f32.mxu0 %v35
  %1775 = vmatmul.mubr.f32.gmra.mrb[0].mxu0 %v34
  %v1776 = vpop.f32.mrb[0].mxu0
  %v1777 = vadd.f32 %v1707, %v1776
  %v1778 = vpop.f32.mrb[0].mxu0
  %1779 = vdwg.mxu0
  %1780 = vmatprep.subr.mxu0 0.0
  %1781 = vmatpush1.msra.mxu0 %v242
  %1782 = vmatprep.subr.mxu0 0.0
  %1783 = vmatpush1.msra.mxu0 %v243
  %1784 = vmatprep.subr.mxu0 0.0
  %1785 = vmatpush1.msra.mxu0 %v244
  %1786 = vmatprep.subr.mxu0 0.0
  %1787 = vmatpush1.msra.mxu0 %v245
  %1788 = vmatprep.subr.mxu0 0.0
  %1789 = vmatpush1.msra.mxu0 %v246
  %1790 = vmatprep.subr.mxu0 0.0
  %1791 = vmatpush1.msra.mxu0 %v247
  %1792 = vmatprep.subr.mxu0 0.0
  %1793 = vmatpush1.msra.mxu0 %v248
  %1794 = vmatprep.subr.mxu0 0.0
  %1795 = vmatpush1.msra.mxu0 %v249
  %1796 = vmatprep.subr.mxu0 0.0
  %1797 = vmatpush1.msra.mxu0 %v250
  %1798 = vmatprep.subr.mxu0 0.0
  %1799 = vmatpush1.msra.mxu0 %v251
  %1800 = vmatprep.subr.mxu0 0.0
  %1801 = vmatpush1.msra.mxu0 %v252
  %1802 = vmatprep.subr.mxu0 0.0
  %1803 = vmatpush1.msra.mxu0 %v253
  %1804 = vmatprep.subr.mxu0 0.0
  %1805 = vmatpush1.msra.mxu0 %v254
  %1806 = vmatprep.subr.mxu0 0.0
  %1807 = vmatpush1.msra.mxu0 %v255
  %1808 = vmatprep.subr.mxu0 0.0
  %1809 = vmatpush1.msra.mxu0 %v256
  %1810 = vmatprep.subr.mxu0 0.0
  %1811 = vmatpush1.msra.mxu0 %v257
  %1812 = vmatprep.subr.mxu0 0.0
  %1813 = vmatpush1.msra.mxu0 %v258
  %1814 = vmatprep.subr.mxu0 0.0
  %1815 = vmatpush1.msra.mxu0 %v259
  %1816 = vmatprep.subr.mxu0 0.0
  %1817 = vmatpush1.msra.mxu0 %v260
  %1818 = vmatprep.subr.mxu0 0.0
  %1819 = vmatpush1.msra.mxu0 %v261
  %1820 = vmatprep.subr.mxu0 0.0
  %1821 = vmatpush1.msra.mxu0 %v262
  %1822 = vmatprep.subr.mxu0 0.0
  %1823 = vmatpush1.msra.mxu0 %v263
  %1824 = vmatprep.subr.mxu0 0.0
  %1825 = vmatpush1.msra.mxu0 %v264
  %1826 = vmatprep.subr.mxu0 0.0
  %1827 = vmatpush1.msra.mxu0 %v265
  %1828 = vmatprep.subr.mxu0 0.0
  %1829 = vmatpush1.msra.mxu0 %v266
  %1830 = vmatprep.subr.mxu0 0.0
  %1831 = vmatpush1.msra.mxu0 %v267
  %1832 = vmatprep.subr.mxu0 0.0
  %1833 = vmatpush1.msra.mxu0 %v268
  %1834 = vmatprep.subr.mxu0 0.0
  %1835 = vmatpush1.msra.mxu0 %v269
  %1836 = vmatprep.subr.mxu0 0.0
  %1837 = vmatpush1.msra.mxu0 %v270
  %1838 = vmatprep.subr.mxu0 0.0
  %1839 = vmatpush1.msra.mxu0 %v271
  %1840 = vmatprep.subr.mxu0 0.0
  %1841 = vmatpush1.msra.mxu0 %v272
  %1842 = vmatprep.subr.mxu0 0.0
  %1843 = vmatpush1.msra.mxu0 %v273
  %1844 = vmatprep.mubr.f32.mxu0 %v37
  %1845 = vmatmul.mubr.f32.gmra.mrb[0].mxu0 %v36
  %v1846 = vpop.f32.mrb[0].mxu0
  %v1847 = vadd.f32 %v1777, %v1846
  %v1848 = vpop.f32.mrb[0].mxu0
  %1849 = vdwg.mxu0
  %1850 = vmatprep.subr.mxu0 0.0
  %1851 = vmatpush1.msra.mxu0 %v274
  %1852 = vmatprep.subr.mxu0 0.0
  %1853 = vmatpush1.msra.mxu0 %v275
  %1854 = vmatprep.subr.mxu0 0.0
  %1855 = vmatpush1.msra.mxu0 %v276
  %1856 = vmatprep.subr.mxu0 0.0
  %1857 = vmatpush1.msra.mxu0 %v277
  %1858 = vmatprep.subr.mxu0 0.0
  %1859 = vmatpush1.msra.mxu0 %v278
  %1860 = vmatprep.subr.mxu0 0.0
  %1861 = vmatpush1.msra.mxu0 %v279
  %1862 = vmatprep.subr.mxu0 0.0
  %1863 = vmatpush1.msra.mxu0 %v280
  %1864 = vmatprep.subr.mxu0 0.0
  %1865 = vmatpush1.msra.mxu0 %v281
  %1866 = vmatprep.subr.mxu0 0.0
  %1867 = vmatpush1.msra.mxu0 %v282
  %1868 = vmatprep.subr.mxu0 0.0
  %1869 = vmatpush1.msra.mxu0 %v283
  %1870 = vmatprep.subr.mxu0 0.0
  %1871 = vmatpush1.msra.mxu0 %v284
  %1872 = vmatprep.subr.mxu0 0.0
  %1873 = vmatpush1.msra.mxu0 %v285
  %1874 = vmatprep.subr.mxu0 0.0
  %1875 = vmatpush1.msra.mxu0 %v286
  %1876 = vmatprep.subr.mxu0 0.0
  %1877 = vmatpush1.msra.mxu0 %v287
  %1878 = vmatprep.subr.mxu0 0.0
  %1879 = vmatpush1.msra.mxu0 %v288
  %1880 = vmatprep.subr.mxu0 0.0
  %1881 = vmatpush1.msra.mxu0 %v289
  %1882 = vmatprep.subr.mxu0 0.0
  %1883 = vmatpush1.msra.mxu0 %v290
  %1884 = vmatprep.subr.mxu0 0.0
  %1885 = vmatpush1.msra.mxu0 %v291
  %1886 = vmatprep.subr.mxu0 0.0
  %1887 = vmatpush1.msra.mxu0 %v292
  %1888 = vmatprep.subr.mxu0 0.0
  %1889 = vmatpush1.msra.mxu0 %v293
  %1890 = vmatprep.subr.mxu0 0.0
  %1891 = vmatpush1.msra.mxu0 %v294
  %1892 = vmatprep.subr.mxu0 0.0
  %1893 = vmatpush1.msra.mxu0 %v295
  %1894 = vmatprep.subr.mxu0 0.0
  %1895 = vmatpush1.msra.mxu0 %v296
  %1896 = vmatprep.subr.mxu0 0.0
  %1897 = vmatpush1.msra.mxu0 %v297
  %1898 = vmatprep.subr.mxu0 0.0
  %1899 = vmatpush1.msra.mxu0 %v298
  %1900 = vmatprep.subr.mxu0 0.0
  %1901 = vmatpush1.msra.mxu0 %v299
  %1902 = vmatprep.subr.mxu0 0.0
  %1903 = vmatpush1.msra.mxu0 %v300
  %1904 = vmatprep.subr.mxu0 0.0
  %1905 = vmatpush1.msra.mxu0 %v301
  %1906 = vmatprep.subr.mxu0 0.0
  %1907 = vmatpush1.msra.mxu0 %v302
  %1908 = vmatprep.subr.mxu0 0.0
  %1909 = vmatpush1.msra.mxu0 %v303
  %1910 = vmatprep.subr.mxu0 0.0
  %1911 = vmatpush1.msra.mxu0 %v304
  %1912 = vmatprep.subr.mxu0 0.0
  %1913 = vmatpush1.msra.mxu0 %v305
  %1914 = vmatprep.mubr.f32.mxu0 %v39
  %1915 = vmatmul.mubr.f32.gmra.mrb[0].mxu0 %v38
  %v1916 = vpop.f32.mrb[0].mxu0
  %v1917 = vadd.f32 %v1847, %v1916
  %v1918 = vpop.f32.mrb[0].mxu0
  %1919 = vdwg.mxu0
  %1920 = vmatprep.subr.mxu0 0.0
  %1921 = vmatpush1.msra.mxu0 %v306
  %1922 = vmatprep.subr.mxu0 0.0
  %1923 = vmatpush1.msra.mxu0 %v307
  %1924 = vmatprep.subr.mxu0 0.0
  %1925 = vmatpush1.msra.mxu0 %v308
  %1926 = vmatprep.subr.mxu0 0.0
  %1927 = vmatpush1.msra.mxu0 %v309
  %1928 = vmatprep.subr.mxu0 0.0
  %1929 = vmatpush1.msra.mxu0 %v310
  %1930 = vmatprep.subr.mxu0 0.0
  %1931 = vmatpush1.msra.mxu0 %v311
  %1932 = vmatprep.subr.mxu0 0.0
  %1933 = vmatpush1.msra.mxu0 %v312
  %1934 = vmatprep.subr.mxu0 0.0
  %1935 = vmatpush1.msra.mxu0 %v313
  %1936 = vmatprep.subr.mxu0 0.0
  %1937 = vmatpush1.msra.mxu0 %v314
  %1938 = vmatprep.subr.mxu0 0.0
  %1939 = vmatpush1.msra.mxu0 %v315
  %1940 = vmatprep.subr.mxu0 0.0
  %1941 = vmatpush1.msra.mxu0 %v316
  %1942 = vmatprep.subr.mxu0 0.0
  %1943 = vmatpush1.msra.mxu0 %v317
  %1944 = vmatprep.subr.mxu0 0.0
  %1945 = vmatpush1.msra.mxu0 %v318
  %1946 = vmatprep.subr.mxu0 0.0
  %1947 = vmatpush1.msra.mxu0 %v319
  %1948 = vmatprep.subr.mxu0 0.0
  %1949 = vmatpush1.msra.mxu0 %v320
  %1950 = vmatprep.subr.mxu0 0.0
  %1951 = vmatpush1.msra.mxu0 %v321
  %1952 = vmatprep.subr.mxu0 0.0
  %1953 = vmatpush1.msra.mxu0 %v322
  %1954 = vmatprep.subr.mxu0 0.0
  %1955 = vmatpush1.msra.mxu0 %v323
  %1956 = vmatprep.subr.mxu0 0.0
  %1957 = vmatpush1.msra.mxu0 %v324
  %1958 = vmatprep.subr.mxu0 0.0
  %1959 = vmatpush1.msra.mxu0 %v325
  %1960 = vmatprep.subr.mxu0 0.0
  %1961 = vmatpush1.msra.mxu0 %v326
  %1962 = vmatprep.subr.mxu0 0.0
  %1963 = vmatpush1.msra.mxu0 %v327
  %1964 = vmatprep.subr.mxu0 0.0
  %1965 = vmatpush1.msra.mxu0 %v328
  %1966 = vmatprep.subr.mxu0 0.0
  %1967 = vmatpush1.msra.mxu0 %v329
  %1968 = vmatprep.subr.mxu0 0.0
  %1969 = vmatpush1.msra.mxu0 %v330
  %1970 = vmatprep.subr.mxu0 0.0
  %1971 = vmatpush1.msra.mxu0 %v331
  %1972 = vmatprep.subr.mxu0 0.0
  %1973 = vmatpush1.msra.mxu0 %v332
  %1974 = vmatprep.subr.mxu0 0.0
  %1975 = vmatpush1.msra.mxu0 %v333
  %1976 = vmatprep.subr.mxu0 0.0
  %1977 = vmatpush1.msra.mxu0 %v334
  %1978 = vmatprep.subr.mxu0 0.0
  %1979 = vmatpush1.msra.mxu0 %v335
  %1980 = vmatprep.subr.mxu0 0.0
  %1981 = vmatpush1.msra.mxu0 %v336
  %1982 = vmatprep.subr.mxu0 0.0
  %1983 = vmatpush1.msra.mxu0 %v337
  %1984 = vmatprep.mubr.f32.mxu0 %v41
  %1985 = vmatmul.mubr.f32.gmra.mrb[0].mxu0 %v40
  %v1986 = vpop.f32.mrb[0].mxu0
  %v1987 = vadd.f32 %v1917, %v1986
  %v1988 = vpop.f32.mrb[0].mxu0
  %1989 = vdwg.mxu0
  %1990 = vmatprep.subr.mxu0 0.0
  %1991 = vmatpush1.msra.mxu0 %v338
  %1992 = vmatprep.subr.mxu0 0.0
  %1993 = vmatpush1.msra.mxu0 %v339
  %1994 = vmatprep.subr.mxu0 0.0
  %1995 = vmatpush1.msra.mxu0 %v340
  %1996 = vmatprep.subr.mxu0 0.0
  %1997 = vmatpush1.msra.mxu0 %v341
  %1998 = vmatprep.subr.mxu0 0.0
  %1999 = vmatpush1.msra.mxu0 %v342
  %2000 = vmatprep.subr.mxu0 0.0
  %2001 = vmatpush1.msra.mxu0 %v343
  %2002 = vmatprep.subr.mxu0 0.0
  %2003 = vmatpush1.msra.mxu0 %v344
  %2004 = vmatprep.subr.mxu0 0.0
  %2005 = vmatpush1.msra.mxu0 %v345
  %2006 = vmatprep.subr.mxu0 0.0
  %2007 = vmatpush1.msra.mxu0 %v346
  %2008 = vmatprep.subr.mxu0 0.0
  %2009 = vmatpush1.msra.mxu0 %v347
  %2010 = vmatprep.subr.mxu0 0.0
  %2011 = vmatpush1.msra.mxu0 %v348
  %2012 = vmatprep.subr.mxu0 0.0
  %2013 = vmatpush1.msra.mxu0 %v349
  %2014 = vmatprep.subr.mxu0 0.0
  %2015 = vmatpush1.msra.mxu0 %v350
  %2016 = vmatprep.subr.mxu0 0.0
  %2017 = vmatpush1.msra.mxu0 %v351
  %2018 = vmatprep.subr.mxu0 0.0
  %2019 = vmatpush1.msra.mxu0 %v352
  %2020 = vmatprep.subr.mxu0 0.0
  %2021 = vmatpush1.msra.mxu0 %v353
  %2022 = vmatprep.subr.mxu0 0.0
  %2023 = vmatpush1.msra.mxu0 %v354
  %2024 = vmatprep.subr.mxu0 0.0
  %2025 = vmatpush1.msra.mxu0 %v355
  %2026 = vmatprep.subr.mxu0 0.0
  %2027 = vmatpush1.msra.mxu0 %v356
  %2028 = vmatprep.subr.mxu0 0.0
  %2029 = vmatpush1.msra.mxu0 %v357
  %2030 = vmatprep.subr.mxu0 0.0
  %2031 = vmatpush1.msra.mxu0 %v358
  %2032 = vmatprep.subr.mxu0 0.0
  %2033 = vmatpush1.msra.mxu0 %v359
  %2034 = vmatprep.subr.mxu0 0.0
  %2035 = vmatpush1.msra.mxu0 %v360
  %2036 = vmatprep.subr.mxu0 0.0
  %2037 = vmatpush1.msra.mxu0 %v361
  %2038 = vmatprep.subr.mxu0 0.0
  %2039 = vmatpush1.msra.mxu0 %v362
  %2040 = vmatprep.subr.mxu0 0.0
  %2041 = vmatpush1.msra.mxu0 %v363
  %2042 = vmatprep.subr.mxu0 0.0
  %2043 = vmatpush1.msra.mxu0 %v364
  %2044 = vmatprep.subr.mxu0 0.0
  %2045 = vmatpush1.msra.mxu0 %v365
  %2046 = vmatprep.subr.mxu0 0.0
  %2047 = vmatpush1.msra.mxu0 %v366
  %2048 = vmatprep.subr.mxu0 0.0
  %2049 = vmatpush1.msra.mxu0 %v367
  %2050 = vmatprep.subr.mxu0 0.0
  %2051 = vmatpush1.msra.mxu0 %v368
  %2052 = vmatprep.subr.mxu0 0.0
  %2053 = vmatpush1.msra.mxu0 %v369
  %2054 = vmatprep.mubr.f32.mxu0 %v43
  %2055 = vmatmul.mubr.f32.gmra.mrb[0].mxu0 %v42
  %v2056 = vpop.f32.mrb[0].mxu0
  %v2057 = vadd.f32 %v1987, %v2056
  %v2058 = vpop.f32.mrb[0].mxu0
  %2059 = vdwg.mxu0
  %2060 = vmatprep.subr.mxu0 0.0
  %2061 = vmatpush1.msra.mxu0 %v370
  %2062 = vmatprep.subr.mxu0 0.0
  %2063 = vmatpush1.msra.mxu0 %v371
  %2064 = vmatprep.subr.mxu0 0.0
  %2065 = vmatpush1.msra.mxu0 %v372
  %2066 = vmatprep.subr.mxu0 0.0
  %2067 = vmatpush1.msra.mxu0 %v373
  %2068 = vmatprep.subr.mxu0 0.0
  %2069 = vmatpush1.msra.mxu0 %v374
  %2070 = vmatprep.subr.mxu0 0.0
  %2071 = vmatpush1.msra.mxu0 %v375
  %2072 = vmatprep.subr.mxu0 0.0
  %2073 = vmatpush1.msra.mxu0 %v376
  %2074 = vmatprep.subr.mxu0 0.0
  %2075 = vmatpush1.msra.mxu0 %v377
  %2076 = vmatprep.subr.mxu0 0.0
  %2077 = vmatpush1.msra.mxu0 %v378
  %2078 = vmatprep.subr.mxu0 0.0
  %2079 = vmatpush1.msra.mxu0 %v379
  %2080 = vmatprep.subr.mxu0 0.0
  %2081 = vmatpush1.msra.mxu0 %v380
  %2082 = vmatprep.subr.mxu0 0.0
  %2083 = vmatpush1.msra.mxu0 %v381
  %2084 = vmatprep.subr.mxu0 0.0
  %2085 = vmatpush1.msra.mxu0 %v382
  %2086 = vmatprep.subr.mxu0 0.0
  %2087 = vmatpush1.msra.mxu0 %v383
  %2088 = vmatprep.subr.mxu0 0.0
  %2089 = vmatpush1.msra.mxu0 %v384
  %2090 = vmatprep.subr.mxu0 0.0
  %2091 = vmatpush1.msra.mxu0 %v385
  %2092 = vmatprep.subr.mxu0 0.0
  %2093 = vmatpush1.msra.mxu0 %v386
  %2094 = vmatprep.subr.mxu0 0.0
  %2095 = vmatpush1.msra.mxu0 %v387
  %2096 = vmatprep.subr.mxu0 0.0
  %2097 = vmatpush1.msra.mxu0 %v388
  %2098 = vmatprep.subr.mxu0 0.0
  %2099 = vmatpush1.msra.mxu0 %v389
  %2100 = vmatprep.subr.mxu0 0.0
  %2101 = vmatpush1.msra.mxu0 %v390
  %2102 = vmatprep.subr.mxu0 0.0
  %2103 = vmatpush1.msra.mxu0 %v391
  %2104 = vmatprep.subr.mxu0 0.0
  %2105 = vmatpush1.msra.mxu0 %v392
  %2106 = vmatprep.subr.mxu0 0.0
  %2107 = vmatpush1.msra.mxu0 %v393
  %2108 = vmatprep.subr.mxu0 0.0
  %2109 = vmatpush1.msra.mxu0 %v394
  %2110 = vmatprep.subr.mxu0 0.0
  %2111 = vmatpush1.msra.mxu0 %v395
  %2112 = vmatprep.subr.mxu0 0.0
  %2113 = vmatpush1.msra.mxu0 %v396
  %2114 = vmatprep.subr.mxu0 0.0
  %2115 = vmatpush1.msra.mxu0 %v397
  %2116 = vmatprep.subr.mxu0 0.0
  %2117 = vmatpush1.msra.mxu0 %v398
  %2118 = vmatprep.subr.mxu0 0.0
  %2119 = vmatpush1.msra.mxu0 %v399
  %2120 = vmatprep.subr.mxu0 0.0
  %2121 = vmatpush1.msra.mxu0 %v400
  %2122 = vmatprep.subr.mxu0 0.0
  %2123 = vmatpush1.msra.mxu0 %v401
  %2124 = vmatprep.mubr.f32.mxu0 %v45
  %2125 = vmatmul.mubr.f32.gmra.mrb[0].mxu0 %v44
  %v2126 = vpop.f32.mrb[0].mxu0
  %v2127 = vadd.f32 %v2057, %v2126
  %v2128 = vpop.f32.mrb[0].mxu0
  %2129 = vdwg.mxu0
  %2130 = vmatprep.subr.mxu0 0.0
  %2131 = vmatpush1.msra.mxu0 %v402
  %2132 = vmatprep.subr.mxu0 0.0
  %2133 = vmatpush1.msra.mxu0 %v403
  %2134 = vmatprep.subr.mxu0 0.0
  %2135 = vmatpush1.msra.mxu0 %v404
  %2136 = vmatprep.subr.mxu0 0.0
  %2137 = vmatpush1.msra.mxu0 %v405
  %2138 = vmatprep.subr.mxu0 0.0
  %2139 = vmatpush1.msra.mxu0 %v406
  %2140 = vmatprep.subr.mxu0 0.0
  %2141 = vmatpush1.msra.mxu0 %v407
  %2142 = vmatprep.subr.mxu0 0.0
  %2143 = vmatpush1.msra.mxu0 %v408
  %2144 = vmatprep.subr.mxu0 0.0
  %2145 = vmatpush1.msra.mxu0 %v409
  %2146 = vmatprep.subr.mxu0 0.0
  %2147 = vmatpush1.msra.mxu0 %v410
  %2148 = vmatprep.subr.mxu0 0.0
  %2149 = vmatpush1.msra.mxu0 %v411
  %2150 = vmatprep.subr.mxu0 0.0
  %2151 = vmatpush1.msra.mxu0 %v412
  %2152 = vmatprep.subr.mxu0 0.0
  %2153 = vmatpush1.msra.mxu0 %v413
  %2154 = vmatprep.subr.mxu0 0.0
  %2155 = vmatpush1.msra.mxu0 %v414
  %2156 = vmatprep.subr.mxu0 0.0
  %2157 = vmatpush1.msra.mxu0 %v415
  %2158 = vmatprep.subr.mxu0 0.0
  %2159 = vmatpush1.msra.mxu0 %v416
  %2160 = vmatprep.subr.mxu0 0.0
  %2161 = vmatpush1.msra.mxu0 %v417
  %2162 = vmatprep.subr.mxu0 0.0
  %2163 = vmatpush1.msra.mxu0 %v418
  %2164 = vmatprep.subr.mxu0 0.0
  %2165 = vmatpush1.msra.mxu0 %v419
  %2166 = vmatprep.subr.mxu0 0.0
  %2167 = vmatpush1.msra.mxu0 %v420
  %2168 = vmatprep.subr.mxu0 0.0
  %2169 = vmatpush1.msra.mxu0 %v421
  %2170 = vmatprep.subr.mxu0 0.0
  %2171 = vmatpush1.msra.mxu0 %v422
  %2172 = vmatprep.subr.mxu0 0.0
  %2173 = vmatpush1.msra.mxu0 %v423
  %2174 = vmatprep.subr.mxu0 0.0
  %2175 = vmatpush1.msra.mxu0 %v424
  %2176 = vmatprep.subr.mxu0 0.0
  %2177 = vmatpush1.msra.mxu0 %v425
  %2178 = vmatprep.subr.mxu0 0.0
  %2179 = vmatpush1.msra.mxu0 %v426
  %2180 = vmatprep.subr.mxu0 0.0
  %2181 = vmatpush1.msra.mxu0 %v427
  %2182 = vmatprep.subr.mxu0 0.0
  %2183 = vmatpush1.msra.mxu0 %v428
  %2184 = vmatprep.subr.mxu0 0.0
  %2185 = vmatpush1.msra.mxu0 %v429
  %2186 = vmatprep.subr.mxu0 0.0
  %2187 = vmatpush1.msra.mxu0 %v430
  %2188 = vmatprep.subr.mxu0 0.0
  %2189 = vmatpush1.msra.mxu0 %v431
  %2190 = vmatprep.subr.mxu0 0.0
  %2191 = vmatpush1.msra.mxu0 %v432
  %2192 = vmatprep.subr.mxu0 0.0
  %2193 = vmatpush1.msra.mxu0 %v433
  %2194 = vmatprep.mubr.f32.mxu0 %v47
  %2195 = vmatmul.mubr.f32.gmra.mrb[0].mxu0 %v46
  %v2196 = vpop.f32.mrb[0].mxu0
  %v2197 = vadd.f32 %v2127, %v2196
  %v2198 = vpop.f32.mrb[0].mxu0
  %2199 = vdwg.mxu0
  %2200 = vmatprep.subr.mxu0 0.0
  %2201 = vmatpush1.msra.mxu0 %v434
  %2202 = vmatprep.subr.mxu0 0.0
  %2203 = vmatpush1.msra.mxu0 %v435
  %2204 = vmatprep.subr.mxu0 0.0
  %2205 = vmatpush1.msra.mxu0 %v436
  %2206 = vmatprep.subr.mxu0 0.0
  %2207 = vmatpush1.msra.mxu0 %v437
  %2208 = vmatprep.subr.mxu0 0.0
  %2209 = vmatpush1.msra.mxu0 %v438
  %2210 = vmatprep.subr.mxu0 0.0
  %2211 = vmatpush1.msra.mxu0 %v439
  %2212 = vmatprep.subr.mxu0 0.0
  %2213 = vmatpush1.msra.mxu0 %v440
  %2214 = vmatprep.subr.mxu0 0.0
  %2215 = vmatpush1.msra.mxu0 %v441
  %2216 = vmatprep.subr.mxu0 0.0
  %2217 = vmatpush1.msra.mxu0 %v442
  %2218 = vmatprep.subr.mxu0 0.0
  %2219 = vmatpush1.msra.mxu0 %v443
  %2220 = vmatprep.subr.mxu0 0.0
  %2221 = vmatpush1.msra.mxu0 %v444
  %2222 = vmatprep.subr.mxu0 0.0
  %2223 = vmatpush1.msra.mxu0 %v445
  %2224 = vmatprep.subr.mxu0 0.0
  %2225 = vmatpush1.msra.mxu0 %v446
  %2226 = vmatprep.subr.mxu0 0.0
  %2227 = vmatpush1.msra.mxu0 %v447
  %2228 = vmatprep.subr.mxu0 0.0
  %2229 = vmatpush1.msra.mxu0 %v448
  %2230 = vmatprep.subr.mxu0 0.0
  %2231 = vmatpush1.msra.mxu0 %v449
  %2232 = vmatprep.subr.mxu0 0.0
  %2233 = vmatpush1.msra.mxu0 %v450
  %2234 = vmatprep.subr.mxu0 0.0
  %2235 = vmatpush1.msra.mxu0 %v451
  %2236 = vmatprep.subr.mxu0 0.0
  %2237 = vmatpush1.msra.mxu0 %v452
  %2238 = vmatprep.subr.mxu0 0.0
  %2239 = vmatpush1.msra.mxu0 %v453
  %2240 = vmatprep.subr.mxu0 0.0
  %2241 = vmatpush1.msra.mxu0 %v454
  %2242 = vmatprep.subr.mxu0 0.0
  %2243 = vmatpush1.msra.mxu0 %v455
  %2244 = vmatprep.subr.mxu0 0.0
  %2245 = vmatpush1.msra.mxu0 %v456
  %2246 = vmatprep.subr.mxu0 0.0
  %2247 = vmatpush1.msra.mxu0 %v457
  %2248 = vmatprep.subr.mxu0 0.0
  %2249 = vmatpush1.msra.mxu0 %v458
  %2250 = vmatprep.subr.mxu0 0.0
  %2251 = vmatpush1.msra.mxu0 %v459
  %2252 = vmatprep.subr.mxu0 0.0
  %2253 = vmatpush1.msra.mxu0 %v460
  %2254 = vmatprep.subr.mxu0 0.0
  %2255 = vmatpush1.msra.mxu0 %v461
  %2256 = vmatprep.subr.mxu0 0.0
  %2257 = vmatpush1.msra.mxu0 %v462
  %2258 = vmatprep.subr.mxu0 0.0
  %2259 = vmatpush1.msra.mxu0 %v463
  %2260 = vmatprep.subr.mxu0 0.0
  %2261 = vmatpush1.msra.mxu0 %v464
  %2262 = vmatprep.subr.mxu0 0.0
  %2263 = vmatpush1.msra.mxu0 %v465
  %2264 = vmatprep.mubr.f32.mxu0 %v49
  %2265 = vmatmul.mubr.f32.gmra.mrb[0].mxu0 %v48
  %v2266 = vpop.f32.mrb[0].mxu0
  %v2267 = vadd.f32 %v2197, %v2266
  %v2268 = vpop.f32.mrb[0].mxu0
  %2269 = vdwg.mxu0
  %2270 = vmatprep.subr.mxu0 0.0
  %2271 = vmatpush1.msra.mxu0 %v466
  %2272 = vmatprep.subr.mxu0 0.0
  %2273 = vmatpush1.msra.mxu0 %v467
  %2274 = vmatprep.subr.mxu0 0.0
  %2275 = vmatpush1.msra.mxu0 %v468
  %2276 = vmatprep.subr.mxu0 0.0
  %2277 = vmatpush1.msra.mxu0 %v469
  %2278 = vmatprep.subr.mxu0 0.0
  %2279 = vmatpush1.msra.mxu0 %v470
  %2280 = vmatprep.subr.mxu0 0.0
  %2281 = vmatpush1.msra.mxu0 %v471
  %2282 = vmatprep.subr.mxu0 0.0
  %2283 = vmatpush1.msra.mxu0 %v472
  %2284 = vmatprep.subr.mxu0 0.0
  %2285 = vmatpush1.msra.mxu0 %v473
  %2286 = vmatprep.subr.mxu0 0.0
  %2287 = vmatpush1.msra.mxu0 %v474
  %2288 = vmatprep.subr.mxu0 0.0
  %2289 = vmatpush1.msra.mxu0 %v475
  %2290 = vmatprep.subr.mxu0 0.0
  %2291 = vmatpush1.msra.mxu0 %v476
  %2292 = vmatprep.subr.mxu0 0.0
  %2293 = vmatpush1.msra.mxu0 %v477
  %2294 = vmatprep.subr.mxu0 0.0
  %2295 = vmatpush1.msra.mxu0 %v478
  %2296 = vmatprep.subr.mxu0 0.0
  %2297 = vmatpush1.msra.mxu0 %v479
  %2298 = vmatprep.subr.mxu0 0.0
  %2299 = vmatpush1.msra.mxu0 %v480
  %2300 = vmatprep.subr.mxu0 0.0
  %2301 = vmatpush1.msra.mxu0 %v481
  %2302 = vmatprep.subr.mxu0 0.0
  %2303 = vmatpush1.msra.mxu0 %v482
  %2304 = vmatprep.subr.mxu0 0.0
  %2305 = vmatpush1.msra.mxu0 %v483
  %2306 = vmatprep.subr.mxu0 0.0
  %2307 = vmatpush1.msra.mxu0 %v484
  %2308 = vmatprep.subr.mxu0 0.0
  %2309 = vmatpush1.msra.mxu0 %v485
  %2310 = vmatprep.subr.mxu0 0.0
  %2311 = vmatpush1.msra.mxu0 %v486
  %2312 = vmatprep.subr.mxu0 0.0
  %2313 = vmatpush1.msra.mxu0 %v487
  %2314 = vmatprep.subr.mxu0 0.0
  %2315 = vmatpush1.msra.mxu0 %v488
  %2316 = vmatprep.subr.mxu0 0.0
  %2317 = vmatpush1.msra.mxu0 %v489
  %2318 = vmatprep.subr.mxu0 0.0
  %2319 = vmatpush1.msra.mxu0 %v490
  %2320 = vmatprep.subr.mxu0 0.0
  %2321 = vmatpush1.msra.mxu0 %v491
  %2322 = vmatprep.subr.mxu0 0.0
  %2323 = vmatpush1.msra.mxu0 %v492
  %2324 = vmatprep.subr.mxu0 0.0
  %2325 = vmatpush1.msra.mxu0 %v493
  %2326 = vmatprep.subr.mxu0 0.0
  %2327 = vmatpush1.msra.mxu0 %v494
  %2328 = vmatprep.subr.mxu0 0.0
  %2329 = vmatpush1.msra.mxu0 %v495
  %2330 = vmatprep.subr.mxu0 0.0
  %2331 = vmatpush1.msra.mxu0 %v496
  %2332 = vmatprep.subr.mxu0 0.0
  %2333 = vmatpush1.msra.mxu0 %v497
  %2334 = vmatprep.mubr.f32.mxu0 %v51
  %2335 = vmatmul.mubr.f32.gmra.mrb[0].mxu0 %v50
  %v2336 = vpop.f32.mrb[0].mxu0
  %v2337 = vadd.f32 %v2267, %v2336
  %v2338 = vpop.f32.mrb[0].mxu0
  %2339 = vdwg.mxu0
  %2340 = vmatprep.subr.mxu0 0.0
  %2341 = vmatpush1.msra.mxu0 %v498
  %2342 = vmatprep.subr.mxu0 0.0
  %2343 = vmatpush1.msra.mxu0 %v499
  %2344 = vmatprep.subr.mxu0 0.0
  %2345 = vmatpush1.msra.mxu0 %v500
  %2346 = vmatprep.subr.mxu0 0.0
  %2347 = vmatpush1.msra.mxu0 %v501
  %2348 = vmatprep.subr.mxu0 0.0
  %2349 = vmatpush1.msra.mxu0 %v502
  %2350 = vmatprep.subr.mxu0 0.0
  %2351 = vmatpush1.msra.mxu0 %v503
  %2352 = vmatprep.subr.mxu0 0.0
  %2353 = vmatpush1.msra.mxu0 %v504
  %2354 = vmatprep.subr.mxu0 0.0
  %2355 = vmatpush1.msra.mxu0 %v505
  %2356 = vmatprep.subr.mxu0 0.0
  %2357 = vmatpush1.msra.mxu0 %v506
  %2358 = vmatprep.subr.mxu0 0.0
  %2359 = vmatpush1.msra.mxu0 %v507
  %2360 = vmatprep.subr.mxu0 0.0
  %2361 = vmatpush1.msra.mxu0 %v508
  %2362 = vmatprep.subr.mxu0 0.0
  %2363 = vmatpush1.msra.mxu0 %v509
  %2364 = vmatprep.subr.mxu0 0.0
  %2365 = vmatpush1.msra.mxu0 %v510
  %2366 = vmatprep.subr.mxu0 0.0
  %2367 = vmatpush1.msra.mxu0 %v511
  %2368 = vmatprep.subr.mxu0 0.0
  %2369 = vmatpush1.msra.mxu0 %v512
  %2370 = vmatprep.subr.mxu0 0.0
  %2371 = vmatpush1.msra.mxu0 %v513
  %2372 = vmatprep.subr.mxu0 0.0
  %2373 = vmatpush1.msra.mxu0 %v514
  %2374 = vmatprep.subr.mxu0 0.0
  %2375 = vmatpush1.msra.mxu0 %v515
  %2376 = vmatprep.subr.mxu0 0.0
  %2377 = vmatpush1.msra.mxu0 %v516
  %2378 = vmatprep.subr.mxu0 0.0
  %2379 = vmatpush1.msra.mxu0 %v517
  %2380 = vmatprep.subr.mxu0 0.0
  %2381 = vmatpush1.msra.mxu0 %v518
  %2382 = vmatprep.subr.mxu0 0.0
  %2383 = vmatpush1.msra.mxu0 %v519
  %2384 = vmatprep.subr.mxu0 0.0
  %2385 = vmatpush1.msra.mxu0 %v520
  %2386 = vmatprep.subr.mxu0 0.0
  %2387 = vmatpush1.msra.mxu0 %v521
  %2388 = vmatprep.subr.mxu0 0.0
  %2389 = vmatpush1.msra.mxu0 %v522
  %2390 = vmatprep.subr.mxu0 0.0
  %2391 = vmatpush1.msra.mxu0 %v523
  %2392 = vmatprep.subr.mxu0 0.0
  %2393 = vmatpush1.msra.mxu0 %v524
  %2394 = vmatprep.subr.mxu0 0.0
  %2395 = vmatpush1.msra.mxu0 %v525
  %2396 = vmatprep.subr.mxu0 0.0
  %2397 = vmatpush1.msra.mxu0 %v526
  %2398 = vmatprep.subr.mxu0 0.0
  %2399 = vmatpush1.msra.mxu0 %v527
  %2400 = vmatprep.subr.mxu0 0.0
  %2401 = vmatpush1.msra.mxu0 %v528
  %2402 = vmatprep.subr.mxu0 0.0
  %2403 = vmatpush1.msra.mxu0 %v529
  %2404 = vmatprep.mubr.f32.mxu0 %v53
  %2405 = vmatmul.mubr.f32.gmra.mrb[0].mxu0 %v52
  %v2406 = vpop.f32.mrb[0].mxu0
  %v2407 = vadd.f32 %v2337, %v2406
  %v2408 = vpop.f32.mrb[0].mxu0
  %2409 = vdwg.mxu0
  %2410 = vmatprep.subr.mxu0 0.0
  %2411 = vmatpush1.msra.mxu0 %v530
  %2412 = vmatprep.subr.mxu0 0.0
  %2413 = vmatpush1.msra.mxu0 %v531
  %2414 = vmatprep.subr.mxu0 0.0
  %2415 = vmatpush1.msra.mxu0 %v532
  %2416 = vmatprep.subr.mxu0 0.0
  %2417 = vmatpush1.msra.mxu0 %v533
  %2418 = vmatprep.subr.mxu0 0.0
  %2419 = vmatpush1.msra.mxu0 %v534
  %2420 = vmatprep.subr.mxu0 0.0
  %2421 = vmatpush1.msra.mxu0 %v535
  %2422 = vmatprep.subr.mxu0 0.0
  %2423 = vmatpush1.msra.mxu0 %v536
  %2424 = vmatprep.subr.mxu0 0.0
  %2425 = vmatpush1.msra.mxu0 %v537
  %2426 = vmatprep.subr.mxu0 0.0
  %2427 = vmatpush1.msra.mxu0 %v538
  %2428 = vmatprep.subr.mxu0 0.0
  %2429 = vmatpush1.msra.mxu0 %v539
  %2430 = vmatprep.subr.mxu0 0.0
  %2431 = vmatpush1.msra.mxu0 %v540
  %2432 = vmatprep.subr.mxu0 0.0
  %2433 = vmatpush1.msra.mxu0 %v541
  %2434 = vmatprep.subr.mxu0 0.0
  %2435 = vmatpush1.msra.mxu0 %v542
  %2436 = vmatprep.subr.mxu0 0.0
  %2437 = vmatpush1.msra.mxu0 %v543
  %2438 = vmatprep.subr.mxu0 0.0
  %2439 = vmatpush1.msra.mxu0 %v544
  %2440 = vmatprep.subr.mxu0 0.0
  %2441 = vmatpush1.msra.mxu0 %v545
  %2442 = vmatprep.subr.mxu0 0.0
  %2443 = vmatpush1.msra.mxu0 %v546
  %2444 = vmatprep.subr.mxu0 0.0
  %2445 = vmatpush1.msra.mxu0 %v547
  %2446 = vmatprep.subr.mxu0 0.0
  %2447 = vmatpush1.msra.mxu0 %v548
  %2448 = vmatprep.subr.mxu0 0.0
  %2449 = vmatpush1.msra.mxu0 %v549
  %2450 = vmatprep.subr.mxu0 0.0
  %2451 = vmatpush1.msra.mxu0 %v550
  %2452 = vmatprep.subr.mxu0 0.0
  %2453 = vmatpush1.msra.mxu0 %v551
  %2454 = vmatprep.subr.mxu0 0.0
  %2455 = vmatpush1.msra.mxu0 %v552
  %2456 = vmatprep.subr.mxu0 0.0
  %2457 = vmatpush1.msra.mxu0 %v553
  %2458 = vmatprep.subr.mxu0 0.0
  %2459 = vmatpush1.msra.mxu0 %v554
  %2460 = vmatprep.subr.mxu0 0.0
  %2461 = vmatpush1.msra.mxu0 %v555
  %2462 = vmatprep.subr.mxu0 0.0
  %2463 = vmatpush1.msra.mxu0 %v556
  %2464 = vmatprep.subr.mxu0 0.0
  %2465 = vmatpush1.msra.mxu0 %v557
  %2466 = vmatprep.subr.mxu0 0.0
  %2467 = vmatpush1.msra.mxu0 %v558
  %2468 = vmatprep.subr.mxu0 0.0
  %2469 = vmatpush1.msra.mxu0 %v559
  %2470 = vmatprep.subr.mxu0 0.0
  %2471 = vmatpush1.msra.mxu0 %v560
  %2472 = vmatprep.subr.mxu0 0.0
  %2473 = vmatpush1.msra.mxu0 %v561
  %2474 = vmatprep.mubr.f32.mxu0 %v55
  %2475 = vmatmul.mubr.f32.gmra.mrb[0].mxu0 %v54
  %v2476 = vpop.f32.mrb[0].mxu0
  %v2477 = vadd.f32 %v2407, %v2476
  %v2478 = vpop.f32.mrb[0].mxu0
  %2479 = vdwg.mxu0
  %2480 = vmatprep.subr.mxu0 0.0
  %2481 = vmatpush1.msra.mxu0 %v562
  %2482 = vmatprep.subr.mxu0 0.0
  %2483 = vmatpush1.msra.mxu0 %v563
  %2484 = vmatprep.subr.mxu0 0.0
  %2485 = vmatpush1.msra.mxu0 %v564
  %2486 = vmatprep.subr.mxu0 0.0
  %2487 = vmatpush1.msra.mxu0 %v565
  %2488 = vmatprep.subr.mxu0 0.0
  %2489 = vmatpush1.msra.mxu0 %v566
  %2490 = vmatprep.subr.mxu0 0.0
  %2491 = vmatpush1.msra.mxu0 %v567
  %2492 = vmatprep.subr.mxu0 0.0
  %2493 = vmatpush1.msra.mxu0 %v568
  %2494 = vmatprep.subr.mxu0 0.0
  %2495 = vmatpush1.msra.mxu0 %v569
  %2496 = vmatprep.subr.mxu0 0.0
  %2497 = vmatpush1.msra.mxu0 %v570
  %2498 = vmatprep.subr.mxu0 0.0
  %2499 = vmatpush1.msra.mxu0 %v571
  %2500 = vmatprep.subr.mxu0 0.0
  %2501 = vmatpush1.msra.mxu0 %v572
  %2502 = vmatprep.subr.mxu0 0.0
  %2503 = vmatpush1.msra.mxu0 %v573
  %2504 = vmatprep.subr.mxu0 0.0
  %2505 = vmatpush1.msra.mxu0 %v574
  %2506 = vmatprep.subr.mxu0 0.0
  %2507 = vmatpush1.msra.mxu0 %v575
  %2508 = vmatprep.subr.mxu0 0.0
  %2509 = vmatpush1.msra.mxu0 %v576
  %2510 = vmatprep.subr.mxu0 0.0
  %2511 = vmatpush1.msra.mxu0 %v577
  %2512 = vmatprep.subr.mxu0 0.0
  %2513 = vmatpush1.msra.mxu0 %v578
  %2514 = vmatprep.subr.mxu0 0.0
  %2515 = vmatpush1.msra.mxu0 %v579
  %2516 = vmatprep.subr.mxu0 0.0
  %2517 = vmatpush1.msra.mxu0 %v580
  %2518 = vmatprep.subr.mxu0 0.0
  %2519 = vmatpush1.msra.mxu0 %v581
  %2520 = vmatprep.subr.mxu0 0.0
  %2521 = vmatpush1.msra.mxu0 %v582
  %2522 = vmatprep.subr.mxu0 0.0
  %2523 = vmatpush1.msra.mxu0 %v583
  %2524 = vmatprep.subr.mxu0 0.0
  %2525 = vmatpush1.msra.mxu0 %v584
  %2526 = vmatprep.subr.mxu0 0.0
  %2527 = vmatpush1.msra.mxu0 %v585
  %2528 = vmatprep.subr.mxu0 0.0
  %2529 = vmatpush1.msra.mxu0 %v586
  %2530 = vmatprep.subr.mxu0 0.0
  %2531 = vmatpush1.msra.mxu0 %v587
  %2532 = vmatprep.subr.mxu0 0.0
  %2533 = vmatpush1.msra.mxu0 %v588
  %2534 = vmatprep.subr.mxu0 0.0
  %2535 = vmatpush1.msra.mxu0 %v589
  %2536 = vmatprep.subr.mxu0 0.0
  %2537 = vmatpush1.msra.mxu0 %v590
  %2538 = vmatprep.subr.mxu0 0.0
  %2539 = vmatpush1.msra.mxu0 %v591
  %2540 = vmatprep.subr.mxu0 0.0
  %2541 = vmatpush1.msra.mxu0 %v592
  %2542 = vmatprep.subr.mxu0 0.0
  %2543 = vmatpush1.msra.mxu0 %v593
  %2544 = vmatprep.mubr.f32.mxu0 %v57
  %2545 = vmatmul.mubr.f32.gmra.mrb[0].mxu0 %v56
  %v2546 = vpop.f32.mrb[0].mxu0
  %v2547 = vadd.f32 %v2477, %v2546
  %v2548 = vpop.f32.mrb[0].mxu0
  %2549 = vdwg.mxu0
  %2550 = vmatprep.subr.mxu0 0.0
  %2551 = vmatpush1.msra.mxu0 %v594
  %2552 = vmatprep.subr.mxu0 0.0
  %2553 = vmatpush1.msra.mxu0 %v595
  %2554 = vmatprep.subr.mxu0 0.0
  %2555 = vmatpush1.msra.mxu0 %v596
  %2556 = vmatprep.subr.mxu0 0.0
  %2557 = vmatpush1.msra.mxu0 %v597
  %2558 = vmatprep.subr.mxu0 0.0
  %2559 = vmatpush1.msra.mxu0 %v598
  %2560 = vmatprep.subr.mxu0 0.0
  %2561 = vmatpush1.msra.mxu0 %v599
  %2562 = vmatprep.subr.mxu0 0.0
  %2563 = vmatpush1.msra.mxu0 %v600
  %2564 = vmatprep.subr.mxu0 0.0
  %2565 = vmatpush1.msra.mxu0 %v601
  %2566 = vmatprep.subr.mxu0 0.0
  %2567 = vmatpush1.msra.mxu0 %v602
  %2568 = vmatprep.subr.mxu0 0.0
  %2569 = vmatpush1.msra.mxu0 %v603
  %2570 = vmatprep.subr.mxu0 0.0
  %2571 = vmatpush1.msra.mxu0 %v604
  %2572 = vmatprep.subr.mxu0 0.0
  %2573 = vmatpush1.msra.mxu0 %v605
  %2574 = vmatprep.subr.mxu0 0.0
  %2575 = vmatpush1.msra.mxu0 %v606
  %2576 = vmatprep.subr.mxu0 0.0
  %2577 = vmatpush1.msra.mxu0 %v607
  %2578 = vmatprep.subr.mxu0 0.0
  %2579 = vmatpush1.msra.mxu0 %v608
  %2580 = vmatprep.subr.mxu0 0.0
  %2581 = vmatpush1.msra.mxu0 %v609
  %2582 = vmatprep.subr.mxu0 0.0
  %2583 = vmatpush1.msra.mxu0 %v610
  %2584 = vmatprep.subr.mxu0 0.0
  %2585 = vmatpush1.msra.mxu0 %v611
  %2586 = vmatprep.subr.mxu0 0.0
  %2587 = vmatpush1.msra.mxu0 %v612
  %2588 = vmatprep.subr.mxu0 0.0
  %2589 = vmatpush1.msra.mxu0 %v613
  %2590 = vmatprep.subr.mxu0 0.0
  %2591 = vmatpush1.msra.mxu0 %v614
  %2592 = vmatprep.subr.mxu0 0.0
  %2593 = vmatpush1.msra.mxu0 %v615
  %2594 = vmatprep.subr.mxu0 0.0
  %2595 = vmatpush1.msra.mxu0 %v616
  %2596 = vmatprep.subr.mxu0 0.0
  %2597 = vmatpush1.msra.mxu0 %v617
  %2598 = vmatprep.subr.mxu0 0.0
  %2599 = vmatpush1.msra.mxu0 %v618
  %2600 = vmatprep.subr.mxu0 0.0
  %2601 = vmatpush1.msra.mxu0 %v619
  %2602 = vmatprep.subr.mxu0 0.0
  %2603 = vmatpush1.msra.mxu0 %v620
  %2604 = vmatprep.subr.mxu0 0.0
  %2605 = vmatpush1.msra.mxu0 %v621
  %2606 = vmatprep.subr.mxu0 0.0
  %2607 = vmatpush1.msra.mxu0 %v622
  %2608 = vmatprep.subr.mxu0 0.0
  %2609 = vmatpush1.msra.mxu0 %v623
  %2610 = vmatprep.subr.mxu0 0.0
  %2611 = vmatpush1.msra.mxu0 %v624
  %2612 = vmatprep.subr.mxu0 0.0
  %2613 = vmatpush1.msra.mxu0 %v625
  %2614 = vmatprep.mubr.f32.mxu0 %v59
  %2615 = vmatmul.mubr.f32.gmra.mrb[0].mxu0 %v58
  %v2616 = vpop.f32.mrb[0].mxu0
  %v2617 = vadd.f32 %v2547, %v2616
  %v2618 = vpop.f32.mrb[0].mxu0
  %2619 = vdwg.mxu0
  %2620 = vmatprep.subr.mxu0 0.0
  %2621 = vmatpush1.msra.mxu0 %v626
  %2622 = vmatprep.subr.mxu0 0.0
  %2623 = vmatpush1.msra.mxu0 %v627
  %2624 = vmatprep.subr.mxu0 0.0
  %2625 = vmatpush1.msra.mxu0 %v628
  %2626 = vmatprep.subr.mxu0 0.0
  %2627 = vmatpush1.msra.mxu0 %v629
  %2628 = vmatprep.subr.mxu0 0.0
  %2629 = vmatpush1.msra.mxu0 %v630
  %2630 = vmatprep.subr.mxu0 0.0
  %2631 = vmatpush1.msra.mxu0 %v631
  %2632 = vmatprep.subr.mxu0 0.0
  %2633 = vmatpush1.msra.mxu0 %v632
  %2634 = vmatprep.subr.mxu0 0.0
  %2635 = vmatpush1.msra.mxu0 %v633
  %2636 = vmatprep.subr.mxu0 0.0
  %2637 = vmatpush1.msra.mxu0 %v634
  %2638 = vmatprep.subr.mxu0 0.0
  %2639 = vmatpush1.msra.mxu0 %v635
  %2640 = vmatprep.subr.mxu0 0.0
  %2641 = vmatpush1.msra.mxu0 %v636
  %2642 = vmatprep.subr.mxu0 0.0
  %2643 = vmatpush1.msra.mxu0 %v637
  %2644 = vmatprep.subr.mxu0 0.0
  %2645 = vmatpush1.msra.mxu0 %v638
  %2646 = vmatprep.subr.mxu0 0.0
  %2647 = vmatpush1.msra.mxu0 %v639
  %2648 = vmatprep.subr.mxu0 0.0
  %2649 = vmatpush1.msra.mxu0 %v640
  %2650 = vmatprep.subr.mxu0 0.0
  %2651 = vmatpush1.msra.mxu0 %v641
  %2652 = vmatprep.subr.mxu0 0.0
  %2653 = vmatpush1.msra.mxu0 %v642
  %2654 = vmatprep.subr.mxu0 0.0
  %2655 = vmatpush1.msra.mxu0 %v643
  %2656 = vmatprep.subr.mxu0 0.0
  %2657 = vmatpush1.msra.mxu0 %v644
  %2658 = vmatprep.subr.mxu0 0.0
  %2659 = vmatpush1.msra.mxu0 %v645
  %2660 = vmatprep.subr.mxu0 0.0
  %2661 = vmatpush1.msra.mxu0 %v646
  %2662 = vmatprep.subr.mxu0 0.0
  %2663 = vmatpush1.msra.mxu0 %v647
  %2664 = vmatprep.subr.mxu0 0.0
  %2665 = vmatpush1.msra.mxu0 %v648
  %2666 = vmatprep.subr.mxu0 0.0
  %2667 = vmatpush1.msra.mxu0 %v649
  %2668 = vmatprep.subr.mxu0 0.0
  %2669 = vmatpush1.msra.mxu0 %v650
  %2670 = vmatprep.subr.mxu0 0.0
  %2671 = vmatpush1.msra.mxu0 %v651
  %2672 = vmatprep.subr.mxu0 0.0
  %2673 = vmatpush1.msra.mxu0 %v652
  %2674 = vmatprep.subr.mxu0 0.0
  %2675 = vmatpush1.msra.mxu0 %v653
  %2676 = vmatprep.subr.mxu0 0.0
  %2677 = vmatpush1.msra.mxu0 %v654
  %2678 = vmatprep.subr.mxu0 0.0
  %2679 = vmatpush1.msra.mxu0 %v655
  %2680 = vmatprep.subr.mxu0 0.0
  %2681 = vmatpush1.msra.mxu0 %v656
  %2682 = vmatprep.subr.mxu0 0.0
  %2683 = vmatpush1.msra.mxu0 %v657
  %2684 = vmatprep.mubr.f32.mxu0 %v61
  %2685 = vmatmul.mubr.f32.gmra.mrb[0].mxu0 %v60
  %v2686 = vpop.f32.mrb[0].mxu0
  %v2687 = vadd.f32 %v2617, %v2686
  %v2688 = vpop.f32.mrb[0].mxu0
  %2689 = vdwg.mxu0
  %2690 = vmatprep.subr.mxu0 0.0
  %2691 = vmatpush1.msra.mxu0 %v658
  %2692 = vmatprep.subr.mxu0 0.0
  %2693 = vmatpush1.msra.mxu0 %v659
  %2694 = vmatprep.subr.mxu0 0.0
  %2695 = vmatpush1.msra.mxu0 %v660
  %2696 = vmatprep.subr.mxu0 0.0
  %2697 = vmatpush1.msra.mxu0 %v661
  %2698 = vmatprep.subr.mxu0 0.0
  %2699 = vmatpush1.msra.mxu0 %v662
  %2700 = vmatprep.subr.mxu0 0.0
  %2701 = vmatpush1.msra.mxu0 %v663
  %2702 = vmatprep.subr.mxu0 0.0
  %2703 = vmatpush1.msra.mxu0 %v664
  %2704 = vmatprep.subr.mxu0 0.0
  %2705 = vmatpush1.msra.mxu0 %v665
  %2706 = vmatprep.subr.mxu0 0.0
  %2707 = vmatpush1.msra.mxu0 %v666
  %2708 = vmatprep.subr.mxu0 0.0
  %2709 = vmatpush1.msra.mxu0 %v667
  %2710 = vmatprep.subr.mxu0 0.0
  %2711 = vmatpush1.msra.mxu0 %v668
  %2712 = vmatprep.subr.mxu0 0.0
  %2713 = vmatpush1.msra.mxu0 %v669
  %2714 = vmatprep.subr.mxu0 0.0
  %2715 = vmatpush1.msra.mxu0 %v670
  %2716 = vmatprep.subr.mxu0 0.0
  %2717 = vmatpush1.msra.mxu0 %v671
  %2718 = vmatprep.subr.mxu0 0.0
  %2719 = vmatpush1.msra.mxu0 %v672
  %2720 = vmatprep.subr.mxu0 0.0
  %2721 = vmatpush1.msra.mxu0 %v673
  %2722 = vmatprep.subr.mxu0 0.0
  %2723 = vmatpush1.msra.mxu0 %v674
  %2724 = vmatprep.subr.mxu0 0.0
  %2725 = vmatpush1.msra.mxu0 %v675
  %2726 = vmatprep.subr.mxu0 0.0
  %2727 = vmatpush1.msra.mxu0 %v676
  %2728 = vmatprep.subr.mxu0 0.0
  %2729 = vmatpush1.msra.mxu0 %v677
  %2730 = vmatprep.subr.mxu0 0.0
  %2731 = vmatpush1.msra.mxu0 %v678
  %2732 = vmatprep.subr.mxu0 0.0
  %2733 = vmatpush1.msra.mxu0 %v679
  %2734 = vmatprep.subr.mxu0 0.0
  %2735 = vmatpush1.msra.mxu0 %v680
  %2736 = vmatprep.subr.mxu0 0.0
  %2737 = vmatpush1.msra.mxu0 %v681
  %2738 = vmatprep.subr.mxu0 0.0
  %2739 = vmatpush1.msra.mxu0 %v682
  %2740 = vmatprep.subr.mxu0 0.0
  %2741 = vmatpush1.msra.mxu0 %v683
  %2742 = vmatprep.subr.mxu0 0.0
  %2743 = vmatpush1.msra.mxu0 %v684
  %2744 = vmatprep.subr.mxu0 0.0
  %2745 = vmatpush1.msra.mxu0 %v685
  %2746 = vmatprep.subr.mxu0 0.0
  %2747 = vmatpush1.msra.mxu0 %v686
  %2748 = vmatprep.subr.mxu0 0.0
  %2749 = vmatpush1.msra.mxu0 %v687
  %2750 = vmatprep.subr.mxu0 0.0
  %2751 = vmatpush1.msra.mxu0 %v688
  %2752 = vmatprep.subr.mxu0 0.0
  %2753 = vmatpush1.msra.mxu0 %v689
  %2754 = vmatprep.mubr.f32.mxu0 %v63
  %2755 = vmatmul.mubr.f32.gmra.mrb[0].mxu0 %v62
  %v2756 = vpop.f32.mrb[0].mxu0
  %v2757 = vadd.f32 %v2687, %v2756
  %v2758 = vpop.f32.mrb[0].mxu0
  %2759 = vdwg.mxu0
  %2760 = vmatprep.subr.mxu0 0.0
  %2761 = vmatpush1.msra.mxu0 %v690
  %2762 = vmatprep.subr.mxu0 0.0
  %2763 = vmatpush1.msra.mxu0 %v691
  %2764 = vmatprep.subr.mxu0 0.0
  %2765 = vmatpush1.msra.mxu0 %v692
  %2766 = vmatprep.subr.mxu0 0.0
  %2767 = vmatpush1.msra.mxu0 %v693
  %2768 = vmatprep.subr.mxu0 0.0
  %2769 = vmatpush1.msra.mxu0 %v694
  %2770 = vmatprep.subr.mxu0 0.0
  %2771 = vmatpush1.msra.mxu0 %v695
  %2772 = vmatprep.subr.mxu0 0.0
  %2773 = vmatpush1.msra.mxu0 %v696
  %2774 = vmatprep.subr.mxu0 0.0
  %2775 = vmatpush1.msra.mxu0 %v697
  %2776 = vmatprep.subr.mxu0 0.0
  %2777 = vmatpush1.msra.mxu0 %v698
  %2778 = vmatprep.subr.mxu0 0.0
  %2779 = vmatpush1.msra.mxu0 %v699
  %2780 = vmatprep.subr.mxu0 0.0
  %2781 = vmatpush1.msra.mxu0 %v700
  %2782 = vmatprep.subr.mxu0 0.0
  %2783 = vmatpush1.msra.mxu0 %v701
  %2784 = vmatprep.subr.mxu0 0.0
  %2785 = vmatpush1.msra.mxu0 %v702
  %2786 = vmatprep.subr.mxu0 0.0
  %2787 = vmatpush1.msra.mxu0 %v703
  %2788 = vmatprep.subr.mxu0 0.0
  %2789 = vmatpush1.msra.mxu0 %v704
  %2790 = vmatprep.subr.mxu0 0.0
  %2791 = vmatpush1.msra.mxu0 %v705
  %2792 = vmatprep.subr.mxu0 0.0
  %2793 = vmatpush1.msra.mxu0 %v706
  %2794 = vmatprep.subr.mxu0 0.0
  %2795 = vmatpush1.msra.mxu0 %v707
  %2796 = vmatprep.subr.mxu0 0.0
  %2797 = vmatpush1.msra.mxu0 %v708
  %2798 = vmatprep.subr.mxu0 0.0
  %2799 = vmatpush1.msra.mxu0 %v709
  %2800 = vmatprep.subr.mxu0 0.0
  %2801 = vmatpush1.msra.mxu0 %v710
  %2802 = vmatprep.subr.mxu0 0.0
  %2803 = vmatpush1.msra.mxu0 %v711
  %2804 = vmatprep.subr.mxu0 0.0
  %2805 = vmatpush1.msra.mxu0 %v712
  %2806 = vmatprep.subr.mxu0 0.0
  %2807 = vmatpush1.msra.mxu0 %v713
  %2808 = vmatprep.subr.mxu0 0.0
  %2809 = vmatpush1.msra.mxu0 %v714
  %2810 = vmatprep.subr.mxu0 0.0
  %2811 = vmatpush1.msra.mxu0 %v715
  %2812 = vmatprep.subr.mxu0 0.0
  %2813 = vmatpush1.msra.mxu0 %v716
  %2814 = vmatprep.subr.mxu0 0.0
  %2815 = vmatpush1.msra.mxu0 %v717
  %2816 = vmatprep.subr.mxu0 0.0
  %2817 = vmatpush1.msra.mxu0 %v718
  %2818 = vmatprep.subr.mxu0 0.0
  %2819 = vmatpush1.msra.mxu0 %v719
  %2820 = vmatprep.subr.mxu0 0.0
  %2821 = vmatpush1.msra.mxu0 %v720
  %2822 = vmatprep.subr.mxu0 0.0
  %2823 = vmatpush1.msra.mxu0 %v721
  %2824 = vmatprep.mubr.f32.mxu0 %v65
  %2825 = vmatmul.mubr.f32.gmra.mrb[0].mxu0 %v64
  %v2826 = vpop.f32.mrb[0].mxu0
  %v2827 = vadd.f32 %v2757, %v2826
  %v2828 = vpop.f32.mrb[0].mxu0
  %2829 = vdwg.mxu0
  %2830 = vmatprep.subr.mxu0 0.0
  %2831 = vmatpush1.msra.mxu0 %v722
  %2832 = vmatprep.subr.mxu0 0.0
  %2833 = vmatpush1.msra.mxu0 %v723
  %2834 = vmatprep.subr.mxu0 0.0
  %2835 = vmatpush1.msra.mxu0 %v724
  %2836 = vmatprep.subr.mxu0 0.0
  %2837 = vmatpush1.msra.mxu0 %v725
  %2838 = vmatprep.subr.mxu0 0.0
  %2839 = vmatpush1.msra.mxu0 %v726
  %2840 = vmatprep.subr.mxu0 0.0
  %2841 = vmatpush1.msra.mxu0 %v727
  %2842 = vmatprep.subr.mxu0 0.0
  %2843 = vmatpush1.msra.mxu0 %v728
  %2844 = vmatprep.subr.mxu0 0.0
  %2845 = vmatpush1.msra.mxu0 %v729
  %2846 = vmatprep.subr.mxu0 0.0
  %2847 = vmatpush1.msra.mxu0 %v730
  %2848 = vmatprep.subr.mxu0 0.0
  %2849 = vmatpush1.msra.mxu0 %v731
  %2850 = vmatprep.subr.mxu0 0.0
  %2851 = vmatpush1.msra.mxu0 %v732
  %2852 = vmatprep.subr.mxu0 0.0
  %2853 = vmatpush1.msra.mxu0 %v733
  %2854 = vmatprep.subr.mxu0 0.0
  %2855 = vmatpush1.msra.mxu0 %v734
  %2856 = vmatprep.subr.mxu0 0.0
  %2857 = vmatpush1.msra.mxu0 %v735
  %2858 = vmatprep.subr.mxu0 0.0
  %2859 = vmatpush1.msra.mxu0 %v736
  %2860 = vmatprep.subr.mxu0 0.0
  %2861 = vmatpush1.msra.mxu0 %v737
  %2862 = vmatprep.subr.mxu0 0.0
  %2863 = vmatpush1.msra.mxu0 %v738
  %2864 = vmatprep.subr.mxu0 0.0
  %2865 = vmatpush1.msra.mxu0 %v739
  %2866 = vmatprep.subr.mxu0 0.0
  %2867 = vmatpush1.msra.mxu0 %v740
  %2868 = vmatprep.subr.mxu0 0.0
  %2869 = vmatpush1.msra.mxu0 %v741
  %2870 = vmatprep.subr.mxu0 0.0
  %2871 = vmatpush1.msra.mxu0 %v742
  %2872 = vmatprep.subr.mxu0 0.0
  %2873 = vmatpush1.msra.mxu0 %v743
  %2874 = vmatprep.subr.mxu0 0.0
  %2875 = vmatpush1.msra.mxu0 %v744
  %2876 = vmatprep.subr.mxu0 0.0
  %2877 = vmatpush1.msra.mxu0 %v745
  %2878 = vmatprep.subr.mxu0 0.0
  %2879 = vmatpush1.msra.mxu0 %v746
  %2880 = vmatprep.subr.mxu0 0.0
  %2881 = vmatpush1.msra.mxu0 %v747
  %2882 = vmatprep.subr.mxu0 0.0
  %2883 = vmatpush1.msra.mxu0 %v748
  %2884 = vmatprep.subr.mxu0 0.0
  %2885 = vmatpush1.msra.mxu0 %v749
  %2886 = vmatprep.subr.mxu0 0.0
  %2887 = vmatpush1.msra.mxu0 %v750
  %2888 = vmatprep.subr.mxu0 0.0
  %2889 = vmatpush1.msra.mxu0 %v751
  %2890 = vmatprep.subr.mxu0 0.0
  %2891 = vmatpush1.msra.mxu0 %v752
  %2892 = vmatprep.subr.mxu0 0.0
  %2893 = vmatpush1.msra.mxu0 %v753
  %2894 = vmatprep.mubr.f32.mxu0 %v67
  %2895 = vmatmul.mubr.f32.gmra.mrb[0].mxu0 %v66
  %v2896 = vpop.f32.mrb[0].mxu0
  %v2897 = vadd.f32 %v2827, %v2896
  %v2898 = vpop.f32.mrb[0].mxu0
  %2899 = vdwg.mxu0
  %2900 = vmatprep.subr.mxu0 0.0
  %2901 = vmatpush1.msra.mxu0 %v754
  %2902 = vmatprep.subr.mxu0 0.0
  %2903 = vmatpush1.msra.mxu0 %v755
  %2904 = vmatprep.subr.mxu0 0.0
  %2905 = vmatpush1.msra.mxu0 %v756
  %2906 = vmatprep.subr.mxu0 0.0
  %2907 = vmatpush1.msra.mxu0 %v757
  %2908 = vmatprep.subr.mxu0 0.0
  %2909 = vmatpush1.msra.mxu0 %v758
  %2910 = vmatprep.subr.mxu0 0.0
  %2911 = vmatpush1.msra.mxu0 %v759
  %2912 = vmatprep.subr.mxu0 0.0
  %2913 = vmatpush1.msra.mxu0 %v760
  %2914 = vmatprep.subr.mxu0 0.0
  %2915 = vmatpush1.msra.mxu0 %v761
  %2916 = vmatprep.subr.mxu0 0.0
  %2917 = vmatpush1.msra.mxu0 %v762
  %2918 = vmatprep.subr.mxu0 0.0
  %2919 = vmatpush1.msra.mxu0 %v763
  %2920 = vmatprep.subr.mxu0 0.0
  %2921 = vmatpush1.msra.mxu0 %v764
  %2922 = vmatprep.subr.mxu0 0.0
  %2923 = vmatpush1.msra.mxu0 %v765
  %2924 = vmatprep.subr.mxu0 0.0
  %2925 = vmatpush1.msra.mxu0 %v766
  %2926 = vmatprep.subr.mxu0 0.0
  %2927 = vmatpush1.msra.mxu0 %v767
  %2928 = vmatprep.subr.mxu0 0.0
  %2929 = vmatpush1.msra.mxu0 %v768
  %2930 = vmatprep.subr.mxu0 0.0
  %2931 = vmatpush1.msra.mxu0 %v769
  %2932 = vmatprep.subr.mxu0 0.0
  %2933 = vmatpush1.msra.mxu0 %v770
  %2934 = vmatprep.subr.mxu0 0.0
  %2935 = vmatpush1.msra.mxu0 %v771
  %2936 = vmatprep.subr.mxu0 0.0
  %2937 = vmatpush1.msra.mxu0 %v772
  %2938 = vmatprep.subr.mxu0 0.0
  %2939 = vmatpush1.msra.mxu0 %v773
  %2940 = vmatprep.subr.mxu0 0.0
  %2941 = vmatpush1.msra.mxu0 %v774
  %2942 = vmatprep.subr.mxu0 0.0
  %2943 = vmatpush1.msra.mxu0 %v775
  %2944 = vmatprep.subr.mxu0 0.0
  %2945 = vmatpush1.msra.mxu0 %v776
  %2946 = vmatprep.subr.mxu0 0.0
  %2947 = vmatpush1.msra.mxu0 %v777
  %2948 = vmatprep.subr.mxu0 0.0
  %2949 = vmatpush1.msra.mxu0 %v778
  %2950 = vmatprep.subr.mxu0 0.0
  %2951 = vmatpush1.msra.mxu0 %v779
  %2952 = vmatprep.subr.mxu0 0.0
  %2953 = vmatpush1.msra.mxu0 %v780
  %2954 = vmatprep.subr.mxu0 0.0
  %2955 = vmatpush1.msra.mxu0 %v781
  %2956 = vmatprep.subr.mxu0 0.0
  %2957 = vmatpush1.msra.mxu0 %v782
  %2958 = vmatprep.subr.mxu0 0.0
  %2959 = vmatpush1.msra.mxu0 %v783
  %2960 = vmatprep.subr.mxu0 0.0
  %2961 = vmatpush1.msra.mxu0 %v784
  %2962 = vmatprep.subr.mxu0 0.0
  %2963 = vmatpush1.msra.mxu0 %v785
  %2964 = vmatprep.mubr.f32.mxu0 %v69
  %2965 = vmatmul.mubr.f32.gmra.mrb[0].mxu0 %v68
  %v2966 = vpop.f32.mrb[0].mxu0
  %v2967 = vadd.f32 %v2897, %v2966
  %v2968 = vpop.f32.mrb[0].mxu0
  %2969 = vdwg.mxu0
  %2970 = vmatprep.subr.mxu0 0.0
  %2971 = vmatpush1.msra.mxu0 %v786
  %2972 = vmatprep.subr.mxu0 0.0
  %2973 = vmatpush1.msra.mxu0 %v787
  %2974 = vmatprep.subr.mxu0 0.0
  %2975 = vmatpush1.msra.mxu0 %v788
  %2976 = vmatprep.subr.mxu0 0.0
  %2977 = vmatpush1.msra.mxu0 %v789
  %2978 = vmatprep.subr.mxu0 0.0
  %2979 = vmatpush1.msra.mxu0 %v790
  %2980 = vmatprep.subr.mxu0 0.0
  %2981 = vmatpush1.msra.mxu0 %v791
  %2982 = vmatprep.subr.mxu0 0.0
  %2983 = vmatpush1.msra.mxu0 %v792
  %2984 = vmatprep.subr.mxu0 0.0
  %2985 = vmatpush1.msra.mxu0 %v793
  %2986 = vmatprep.subr.mxu0 0.0
  %2987 = vmatpush1.msra.mxu0 %v794
  %2988 = vmatprep.subr.mxu0 0.0
  %2989 = vmatpush1.msra.mxu0 %v795
  %2990 = vmatprep.subr.mxu0 0.0
  %2991 = vmatpush1.msra.mxu0 %v796
  %2992 = vmatprep.subr.mxu0 0.0
  %2993 = vmatpush1.msra.mxu0 %v797
  %2994 = vmatprep.subr.mxu0 0.0
  %2995 = vmatpush1.msra.mxu0 %v798
  %2996 = vmatprep.subr.mxu0 0.0
  %2997 = vmatpush1.msra.mxu0 %v799
  %2998 = vmatprep.subr.mxu0 0.0
  %2999 = vmatpush1.msra.mxu0 %v800
  %3000 = vmatprep.subr.mxu0 0.0
  %3001 = vmatpush1.msra.mxu0 %v801
  %3002 = vmatprep.subr.mxu0 0.0
  %3003 = vmatpush1.msra.mxu0 %v802
  %3004 = vmatprep.subr.mxu0 0.0
  %3005 = vmatpush1.msra.mxu0 %v803
  %3006 = vmatprep.subr.mxu0 0.0
  %3007 = vmatpush1.msra.mxu0 %v804
  %3008 = vmatprep.subr.mxu0 0.0
  %3009 = vmatpush1.msra.mxu0 %v805
  %3010 = vmatprep.subr.mxu0 0.0
  %3011 = vmatpush1.msra.mxu0 %v806
  %3012 = vmatprep.subr.mxu0 0.0
  %3013 = vmatpush1.msra.mxu0 %v807
  %3014 = vmatprep.subr.mxu0 0.0
  %3015 = vmatpush1.msra.mxu0 %v808
  %3016 = vmatprep.subr.mxu0 0.0
  %3017 = vmatpush1.msra.mxu0 %v809
  %3018 = vmatprep.subr.mxu0 0.0
  %3019 = vmatpush1.msra.mxu0 %v810
  %3020 = vmatprep.subr.mxu0 0.0
  %3021 = vmatpush1.msra.mxu0 %v811
  %3022 = vmatprep.subr.mxu0 0.0
  %3023 = vmatpush1.msra.mxu0 %v812
  %3024 = vmatprep.subr.mxu0 0.0
  %3025 = vmatpush1.msra.mxu0 %v813
  %3026 = vmatprep.subr.mxu0 0.0
  %3027 = vmatpush1.msra.mxu0 %v814
  %3028 = vmatprep.subr.mxu0 0.0
  %3029 = vmatpush1.msra.mxu0 %v815
  %3030 = vmatprep.subr.mxu0 0.0
  %3031 = vmatpush1.msra.mxu0 %v816
  %3032 = vmatprep.subr.mxu0 0.0
  %3033 = vmatpush1.msra.mxu0 %v817
  %3034 = vmatprep.mubr.f32.mxu0 %v71
  %3035 = vmatmul.mubr.f32.gmra.mrb[0].mxu0 %v70
  %v3036 = vpop.f32.mrb[0].mxu0
  %v3037 = vadd.f32 %v2967, %v3036
  %v3038 = vpop.f32.mrb[0].mxu0
  %3039 = vdwg.mxu0
  %3040 = vmatprep.subr.mxu0 0.0
  %3041 = vmatpush1.msra.mxu0 %v818
  %3042 = vmatprep.subr.mxu0 0.0
  %3043 = vmatpush1.msra.mxu0 %v819
  %3044 = vmatprep.subr.mxu0 0.0
  %3045 = vmatpush1.msra.mxu0 %v820
  %3046 = vmatprep.subr.mxu0 0.0
  %3047 = vmatpush1.msra.mxu0 %v821
  %3048 = vmatprep.subr.mxu0 0.0
  %3049 = vmatpush1.msra.mxu0 %v822
  %3050 = vmatprep.subr.mxu0 0.0
  %3051 = vmatpush1.msra.mxu0 %v823
  %3052 = vmatprep.subr.mxu0 0.0
  %3053 = vmatpush1.msra.mxu0 %v824
  %3054 = vmatprep.subr.mxu0 0.0
  %3055 = vmatpush1.msra.mxu0 %v825
  %3056 = vmatprep.subr.mxu0 0.0
  %3057 = vmatpush1.msra.mxu0 %v826
  %3058 = vmatprep.subr.mxu0 0.0
  %3059 = vmatpush1.msra.mxu0 %v827
  %3060 = vmatprep.subr.mxu0 0.0
  %3061 = vmatpush1.msra.mxu0 %v828
  %3062 = vmatprep.subr.mxu0 0.0
  %3063 = vmatpush1.msra.mxu0 %v829
  %3064 = vmatprep.subr.mxu0 0.0
  %3065 = vmatpush1.msra.mxu0 %v830
  %3066 = vmatprep.subr.mxu0 0.0
  %3067 = vmatpush1.msra.mxu0 %v831
  %3068 = vmatprep.subr.mxu0 0.0
  %3069 = vmatpush1.msra.mxu0 %v832
  %3070 = vmatprep.subr.mxu0 0.0
  %3071 = vmatpush1.msra.mxu0 %v833
  %3072 = vmatprep.subr.mxu0 0.0
  %3073 = vmatpush1.msra.mxu0 %v834
  %3074 = vmatprep.subr.mxu0 0.0
  %3075 = vmatpush1.msra.mxu0 %v835
  %3076 = vmatprep.subr.mxu0 0.0
  %3077 = vmatpush1.msra.mxu0 %v836
  %3078 = vmatprep.subr.mxu0 0.0
  %3079 = vmatpush1.msra.mxu0 %v837
  %3080 = vmatprep.subr.mxu0 0.0
  %3081 = vmatpush1.msra.mxu0 %v838
  %3082 = vmatprep.subr.mxu0 0.0
  %3083 = vmatpush1.msra.mxu0 %v839
  %3084 = vmatprep.subr.mxu0 0.0
  %3085 = vmatpush1.msra.mxu0 %v840
  %3086 = vmatprep.subr.mxu0 0.0
  %3087 = vmatpush1.msra.mxu0 %v841
  %3088 = vmatprep.subr.mxu0 0.0
  %3089 = vmatpush1.msra.mxu0 %v842
  %3090 = vmatprep.subr.mxu0 0.0
  %3091 = vmatpush1.msra.mxu0 %v843
  %3092 = vmatprep.subr.mxu0 0.0
  %3093 = vmatpush1.msra.mxu0 %v844
  %3094 = vmatprep.subr.mxu0 0.0
  %3095 = vmatpush1.msra.mxu0 %v845
  %3096 = vmatprep.subr.mxu0 0.0
  %3097 = vmatpush1.msra.mxu0 %v846
  %3098 = vmatprep.subr.mxu0 0.0
  %3099 = vmatpush1.msra.mxu0 %v847
  %3100 = vmatprep.subr.mxu0 0.0
  %3101 = vmatpush1.msra.mxu0 %v848
  %3102 = vmatprep.subr.mxu0 0.0
  %3103 = vmatpush1.msra.mxu0 %v849
  %3104 = vmatprep.mubr.f32.mxu0 %v73
  %3105 = vmatmul.mubr.f32.gmra.mrb[0].mxu0 %v72
  %v3106 = vpop.f32.mrb[0].mxu0
  %v3107 = vadd.f32 %v3037, %v3106
  %v3108 = vpop.f32.mrb[0].mxu0
  %3109 = vdwg.mxu0
  %3110 = vmatprep.subr.mxu0 0.0
  %3111 = vmatpush1.msra.mxu0 %v850
  %3112 = vmatprep.subr.mxu0 0.0
  %3113 = vmatpush1.msra.mxu0 %v851
  %3114 = vmatprep.subr.mxu0 0.0
  %3115 = vmatpush1.msra.mxu0 %v852
  %3116 = vmatprep.subr.mxu0 0.0
  %3117 = vmatpush1.msra.mxu0 %v853
  %3118 = vmatprep.subr.mxu0 0.0
  %3119 = vmatpush1.msra.mxu0 %v854
  %3120 = vmatprep.subr.mxu0 0.0
  %3121 = vmatpush1.msra.mxu0 %v855
  %3122 = vmatprep.subr.mxu0 0.0
  %3123 = vmatpush1.msra.mxu0 %v856
  %3124 = vmatprep.subr.mxu0 0.0
  %3125 = vmatpush1.msra.mxu0 %v857
  %3126 = vmatprep.subr.mxu0 0.0
  %3127 = vmatpush1.msra.mxu0 %v858
  %3128 = vmatprep.subr.mxu0 0.0
  %3129 = vmatpush1.msra.mxu0 %v859
  %3130 = vmatprep.subr.mxu0 0.0
  %3131 = vmatpush1.msra.mxu0 %v860
  %3132 = vmatprep.subr.mxu0 0.0
  %3133 = vmatpush1.msra.mxu0 %v861
  %3134 = vmatprep.subr.mxu0 0.0
  %3135 = vmatpush1.msra.mxu0 %v862
  %3136 = vmatprep.subr.mxu0 0.0
  %3137 = vmatpush1.msra.mxu0 %v863
  %3138 = vmatprep.subr.mxu0 0.0
  %3139 = vmatpush1.msra.mxu0 %v864
  %3140 = vmatprep.subr.mxu0 0.0
  %3141 = vmatpush1.msra.mxu0 %v865
  %3142 = vmatprep.subr.mxu0 0.0
  %3143 = vmatpush1.msra.mxu0 %v866
  %3144 = vmatprep.subr.mxu0 0.0
  %3145 = vmatpush1.msra.mxu0 %v867
  %3146 = vmatprep.subr.mxu0 0.0
  %3147 = vmatpush1.msra.mxu0 %v868
  %3148 = vmatprep.subr.mxu0 0.0
  %3149 = vmatpush1.msra.mxu0 %v869
  %3150 = vmatprep.subr.mxu0 0.0
  %3151 = vmatpush1.msra.mxu0 %v870
  %3152 = vmatprep.subr.mxu0 0.0
  %3153 = vmatpush1.msra.mxu0 %v871
  %3154 = vmatprep.subr.mxu0 0.0
  %3155 = vmatpush1.msra.mxu0 %v872
  %3156 = vmatprep.subr.mxu0 0.0
  %3157 = vmatpush1.msra.mxu0 %v873
  %3158 = vmatprep.subr.mxu0 0.0
  %3159 = vmatpush1.msra.mxu0 %v874
  %3160 = vmatprep.subr.mxu0 0.0
  %3161 = vmatpush1.msra.mxu0 %v875
  %3162 = vmatprep.subr.mxu0 0.0
  %3163 = vmatpush1.msra.mxu0 %v876
  %3164 = vmatprep.subr.mxu0 0.0
  %3165 = vmatpush1.msra.mxu0 %v877
  %3166 = vmatprep.subr.mxu0 0.0
  %3167 = vmatpush1.msra.mxu0 %v878
  %3168 = vmatprep.subr.mxu0 0.0
  %3169 = vmatpush1.msra.mxu0 %v879
  %3170 = vmatprep.subr.mxu0 0.0
  %3171 = vmatpush1.msra.mxu0 %v880
  %3172 = vmatprep.subr.mxu0 0.0
  %3173 = vmatpush1.msra.mxu0 %v881
  %3174 = vmatprep.mubr.f32.mxu0 %v75
  %3175 = vmatmul.mubr.f32.gmra.mrb[0].mxu0 %v74
  %v3176 = vpop.f32.mrb[0].mxu0
  %v3177 = vadd.f32 %v3107, %v3176
  %v3178 = vpop.f32.mrb[0].mxu0
  %3179 = vdwg.mxu0
  %3180 = vmatprep.subr.mxu0 0.0
  %3181 = vmatpush1.msra.mxu0 %v882
  %3182 = vmatprep.subr.mxu0 0.0
  %3183 = vmatpush1.msra.mxu0 %v883
  %3184 = vmatprep.subr.mxu0 0.0
  %3185 = vmatpush1.msra.mxu0 %v884
  %3186 = vmatprep.subr.mxu0 0.0
  %3187 = vmatpush1.msra.mxu0 %v885
  %3188 = vmatprep.subr.mxu0 0.0
  %3189 = vmatpush1.msra.mxu0 %v886
  %3190 = vmatprep.subr.mxu0 0.0
  %3191 = vmatpush1.msra.mxu0 %v887
  %3192 = vmatprep.subr.mxu0 0.0
  %3193 = vmatpush1.msra.mxu0 %v888
  %3194 = vmatprep.subr.mxu0 0.0
  %3195 = vmatpush1.msra.mxu0 %v889
  %3196 = vmatprep.subr.mxu0 0.0
  %3197 = vmatpush1.msra.mxu0 %v890
  %3198 = vmatprep.subr.mxu0 0.0
  %3199 = vmatpush1.msra.mxu0 %v891
  %3200 = vmatprep.subr.mxu0 0.0
  %3201 = vmatpush1.msra.mxu0 %v892
  %3202 = vmatprep.subr.mxu0 0.0
  %3203 = vmatpush1.msra.mxu0 %v893
  %3204 = vmatprep.subr.mxu0 0.0
  %3205 = vmatpush1.msra.mxu0 %v894
  %3206 = vmatprep.subr.mxu0 0.0
  %3207 = vmatpush1.msra.mxu0 %v895
  %3208 = vmatprep.subr.mxu0 0.0
  %3209 = vmatpush1.msra.mxu0 %v896
  %3210 = vmatprep.subr.mxu0 0.0
  %3211 = vmatpush1.msra.mxu0 %v897
  %3212 = vmatprep.subr.mxu0 0.0
  %3213 = vmatpush1.msra.mxu0 %v898
  %3214 = vmatprep.subr.mxu0 0.0
  %3215 = vmatpush1.msra.mxu0 %v899
  %3216 = vmatprep.subr.mxu0 0.0
  %3217 = vmatpush1.msra.mxu0 %v900
  %3218 = vmatprep.subr.mxu0 0.0
  %3219 = vmatpush1.msra.mxu0 %v901
  %3220 = vmatprep.subr.mxu0 0.0
  %3221 = vmatpush1.msra.mxu0 %v902
  %3222 = vmatprep.subr.mxu0 0.0
  %3223 = vmatpush1.msra.mxu0 %v903
  %3224 = vmatprep.subr.mxu0 0.0
  %3225 = vmatpush1.msra.mxu0 %v904
  %3226 = vmatprep.subr.mxu0 0.0
  %3227 = vmatpush1.msra.mxu0 %v905
  %3228 = vmatprep.subr.mxu0 0.0
  %3229 = vmatpush1.msra.mxu0 %v906
  %3230 = vmatprep.subr.mxu0 0.0
  %3231 = vmatpush1.msra.mxu0 %v907
  %3232 = vmatprep.subr.mxu0 0.0
  %3233 = vmatpush1.msra.mxu0 %v908
  %3234 = vmatprep.subr.mxu0 0.0
  %3235 = vmatpush1.msra.mxu0 %v909
  %3236 = vmatprep.subr.mxu0 0.0
  %3237 = vmatpush1.msra.mxu0 %v910
  %3238 = vmatprep.subr.mxu0 0.0
  %3239 = vmatpush1.msra.mxu0 %v911
  %3240 = vmatprep.subr.mxu0 0.0
  %3241 = vmatpush1.msra.mxu0 %v912
  %3242 = vmatprep.subr.mxu0 0.0
  %3243 = vmatpush1.msra.mxu0 %v913
  %3244 = vmatprep.mubr.f32.mxu0 %v77
  %3245 = vmatmul.mubr.f32.gmra.mrb[0].mxu0 %v76
  %v3246 = vpop.f32.mrb[0].mxu0
  %v3247 = vadd.f32 %v3177, %v3246
  %v3248 = vpop.f32.mrb[0].mxu0
  %3249 = vdwg.mxu0
  %3250 = vmatprep.subr.mxu0 0.0
  %3251 = vmatpush1.msra.mxu0 %v914
  %3252 = vmatprep.subr.mxu0 0.0
  %3253 = vmatpush1.msra.mxu0 %v915
  %3254 = vmatprep.subr.mxu0 0.0
  %3255 = vmatpush1.msra.mxu0 %v916
  %3256 = vmatprep.subr.mxu0 0.0
  %3257 = vmatpush1.msra.mxu0 %v917
  %3258 = vmatprep.subr.mxu0 0.0
  %3259 = vmatpush1.msra.mxu0 %v918
  %3260 = vmatprep.subr.mxu0 0.0
  %3261 = vmatpush1.msra.mxu0 %v919
  %3262 = vmatprep.subr.mxu0 0.0
  %3263 = vmatpush1.msra.mxu0 %v920
  %3264 = vmatprep.subr.mxu0 0.0
  %3265 = vmatpush1.msra.mxu0 %v921
  %3266 = vmatprep.subr.mxu0 0.0
  %3267 = vmatpush1.msra.mxu0 %v922
  %3268 = vmatprep.subr.mxu0 0.0
  %3269 = vmatpush1.msra.mxu0 %v923
  %3270 = vmatprep.subr.mxu0 0.0
  %3271 = vmatpush1.msra.mxu0 %v924
  %3272 = vmatprep.subr.mxu0 0.0
  %3273 = vmatpush1.msra.mxu0 %v925
  %3274 = vmatprep.subr.mxu0 0.0
  %3275 = vmatpush1.msra.mxu0 %v926
  %3276 = vmatprep.subr.mxu0 0.0
  %3277 = vmatpush1.msra.mxu0 %v927
  %3278 = vmatprep.subr.mxu0 0.0
  %3279 = vmatpush1.msra.mxu0 %v928
  %3280 = vmatprep.subr.mxu0 0.0
  %3281 = vmatpush1.msra.mxu0 %v929
  %3282 = vmatprep.subr.mxu0 0.0
  %3283 = vmatpush1.msra.mxu0 %v930
  %3284 = vmatprep.subr.mxu0 0.0
  %3285 = vmatpush1.msra.mxu0 %v931
  %3286 = vmatprep.subr.mxu0 0.0
  %3287 = vmatpush1.msra.mxu0 %v932
  %3288 = vmatprep.subr.mxu0 0.0
  %3289 = vmatpush1.msra.mxu0 %v933
  %3290 = vmatprep.subr.mxu0 0.0
  %3291 = vmatpush1.msra.mxu0 %v934
  %3292 = vmatprep.subr.mxu0 0.0
  %3293 = vmatpush1.msra.mxu0 %v935
  %3294 = vmatprep.subr.mxu0 0.0
  %3295 = vmatpush1.msra.mxu0 %v936
  %3296 = vmatprep.subr.mxu0 0.0
  %3297 = vmatpush1.msra.mxu0 %v937
  %3298 = vmatprep.subr.mxu0 0.0
  %3299 = vmatpush1.msra.mxu0 %v938
  %3300 = vmatprep.subr.mxu0 0.0
  %3301 = vmatpush1.msra.mxu0 %v939
  %3302 = vmatprep.subr.mxu0 0.0
  %3303 = vmatpush1.msra.mxu0 %v940
  %3304 = vmatprep.subr.mxu0 0.0
  %3305 = vmatpush1.msra.mxu0 %v941
  %3306 = vmatprep.subr.mxu0 0.0
  %3307 = vmatpush1.msra.mxu0 %v942
  %3308 = vmatprep.subr.mxu0 0.0
  %3309 = vmatpush1.msra.mxu0 %v943
  %3310 = vmatprep.subr.mxu0 0.0
  %3311 = vmatpush1.msra.mxu0 %v944
  %3312 = vmatprep.subr.mxu0 0.0
  %3313 = vmatpush1.msra.mxu0 %v945
  %3314 = vmatprep.mubr.f32.mxu0 %v79
  %3315 = vmatmul.mubr.f32.gmra.mrb[0].mxu0 %v78
  %v3316 = vpop.f32.mrb[0].mxu0
  %v3317 = vadd.f32 %v3247, %v3316
  %v3318 = vpop.f32.mrb[0].mxu0
  %3319 = vdwg.mxu0
  %3320 = vmatprep.subr.mxu0 0.0
  %3321 = vmatpush1.msra.mxu0 %v946
  %3322 = vmatprep.subr.mxu0 0.0
  %3323 = vmatpush1.msra.mxu0 %v947
  %3324 = vmatprep.subr.mxu0 0.0
  %3325 = vmatpush1.msra.mxu0 %v948
  %3326 = vmatprep.subr.mxu0 0.0
  %3327 = vmatpush1.msra.mxu0 %v949
  %3328 = vmatprep.subr.mxu0 0.0
  %3329 = vmatpush1.msra.mxu0 %v950
  %3330 = vmatprep.subr.mxu0 0.0
  %3331 = vmatpush1.msra.mxu0 %v951
  %3332 = vmatprep.subr.mxu0 0.0
  %3333 = vmatpush1.msra.mxu0 %v952
  %3334 = vmatprep.subr.mxu0 0.0
  %3335 = vmatpush1.msra.mxu0 %v953
  %3336 = vmatprep.subr.mxu0 0.0
  %3337 = vmatpush1.msra.mxu0 %v954
  %3338 = vmatprep.subr.mxu0 0.0
  %3339 = vmatpush1.msra.mxu0 %v955
  %3340 = vmatprep.subr.mxu0 0.0
  %3341 = vmatpush1.msra.mxu0 %v956
  %3342 = vmatprep.subr.mxu0 0.0
  %3343 = vmatpush1.msra.mxu0 %v957
  %3344 = vmatprep.subr.mxu0 0.0
  %3345 = vmatpush1.msra.mxu0 %v958
  %3346 = vmatprep.subr.mxu0 0.0
  %3347 = vmatpush1.msra.mxu0 %v959
  %3348 = vmatprep.subr.mxu0 0.0
  %3349 = vmatpush1.msra.mxu0 %v960
  %3350 = vmatprep.subr.mxu0 0.0
  %3351 = vmatpush1.msra.mxu0 %v961
  %3352 = vmatprep.subr.mxu0 0.0
  %3353 = vmatpush1.msra.mxu0 %v962
  %3354 = vmatprep.subr.mxu0 0.0
  %3355 = vmatpush1.msra.mxu0 %v963
  %3356 = vmatprep.subr.mxu0 0.0
  %3357 = vmatpush1.msra.mxu0 %v964
  %3358 = vmatprep.subr.mxu0 0.0
  %3359 = vmatpush1.msra.mxu0 %v965
  %3360 = vmatprep.subr.mxu0 0.0
  %3361 = vmatpush1.msra.mxu0 %v966
  %3362 = vmatprep.subr.mxu0 0.0
  %3363 = vmatpush1.msra.mxu0 %v967
  %3364 = vmatprep.subr.mxu0 0.0
  %3365 = vmatpush1.msra.mxu0 %v968
  %3366 = vmatprep.subr.mxu0 0.0
  %3367 = vmatpush1.msra.mxu0 %v969
  %3368 = vmatprep.subr.mxu0 0.0
  %3369 = vmatpush1.msra.mxu0 %v970
  %3370 = vmatprep.subr.mxu0 0.0
  %3371 = vmatpush1.msra.mxu0 %v971
  %3372 = vmatprep.subr.mxu0 0.0
  %3373 = vmatpush1.msra.mxu0 %v972
  %3374 = vmatprep.subr.mxu0 0.0
  %3375 = vmatpush1.msra.mxu0 %v973
  %3376 = vmatprep.subr.mxu0 0.0
  %3377 = vmatpush1.msra.mxu0 %v974
  %3378 = vmatprep.subr.mxu0 0.0
  %3379 = vmatpush1.msra.mxu0 %v975
  %3380 = vmatprep.subr.mxu0 0.0
  %3381 = vmatpush1.msra.mxu0 %v976
  %3382 = vmatprep.subr.mxu0 0.0
  %3383 = vmatpush1.msra.mxu0 %v977
  %3384 = vmatprep.mubr.f32.mxu0 %v81
  %3385 = vmatmul.mubr.f32.gmra.mrb[0].mxu0 %v80
  %v3386 = vpop.f32.mrb[0].mxu0
  %v3387 = vadd.f32 %v3317, %v3386
  %v3388 = vpop.f32.mrb[0].mxu0
  %3389 = vdwg.mxu0
  %3390 = vmatprep.subr.mxu0 0.0
  %3391 = vmatpush1.msra.mxu0 %v978
  %3392 = vmatprep.subr.mxu0 0.0
  %3393 = vmatpush1.msra.mxu0 %v979
  %3394 = vmatprep.subr.mxu0 0.0
  %3395 = vmatpush1.msra.mxu0 %v980
  %3396 = vmatprep.subr.mxu0 0.0
  %3397 = vmatpush1.msra.mxu0 %v981
  %3398 = vmatprep.subr.mxu0 0.0
  %3399 = vmatpush1.msra.mxu0 %v982
  %3400 = vmatprep.subr.mxu0 0.0
  %3401 = vmatpush1.msra.mxu0 %v983
  %3402 = vmatprep.subr.mxu0 0.0
  %3403 = vmatpush1.msra.mxu0 %v984
  %3404 = vmatprep.subr.mxu0 0.0
  %3405 = vmatpush1.msra.mxu0 %v985
  %3406 = vmatprep.subr.mxu0 0.0
  %3407 = vmatpush1.msra.mxu0 %v986
  %3408 = vmatprep.subr.mxu0 0.0
  %3409 = vmatpush1.msra.mxu0 %v987
  %3410 = vmatprep.subr.mxu0 0.0
  %3411 = vmatpush1.msra.mxu0 %v988
  %3412 = vmatprep.subr.mxu0 0.0
  %3413 = vmatpush1.msra.mxu0 %v989
  %3414 = vmatprep.subr.mxu0 0.0
  %3415 = vmatpush1.msra.mxu0 %v990
  %3416 = vmatprep.subr.mxu0 0.0
  %3417 = vmatpush1.msra.mxu0 %v991
  %3418 = vmatprep.subr.mxu0 0.0
  %3419 = vmatpush1.msra.mxu0 %v992
  %3420 = vmatprep.subr.mxu0 0.0
  %3421 = vmatpush1.msra.mxu0 %v993
  %3422 = vmatprep.subr.mxu0 0.0
  %3423 = vmatpush1.msra.mxu0 %v994
  %3424 = vmatprep.subr.mxu0 0.0
  %3425 = vmatpush1.msra.mxu0 %v995
  %3426 = vmatprep.subr.mxu0 0.0
  %3427 = vmatpush1.msra.mxu0 %v996
  %3428 = vmatprep.subr.mxu0 0.0
  %3429 = vmatpush1.msra.mxu0 %v997
  %3430 = vmatprep.subr.mxu0 0.0
  %3431 = vmatpush1.msra.mxu0 %v998
  %3432 = vmatprep.subr.mxu0 0.0
  %3433 = vmatpush1.msra.mxu0 %v999
  %3434 = vmatprep.subr.mxu0 0.0
  %3435 = vmatpush1.msra.mxu0 %v1000
  %3436 = vmatprep.subr.mxu0 0.0
  %3437 = vmatpush1.msra.mxu0 %v1001
  %3438 = vmatprep.subr.mxu0 0.0
  %3439 = vmatpush1.msra.mxu0 %v1002
  %3440 = vmatprep.subr.mxu0 0.0
  %3441 = vmatpush1.msra.mxu0 %v1003
  %3442 = vmatprep.subr.mxu0 0.0
  %3443 = vmatpush1.msra.mxu0 %v1004
  %3444 = vmatprep.subr.mxu0 0.0
  %3445 = vmatpush1.msra.mxu0 %v1005
  %3446 = vmatprep.subr.mxu0 0.0
  %3447 = vmatpush1.msra.mxu0 %v1006
  %3448 = vmatprep.subr.mxu0 0.0
  %3449 = vmatpush1.msra.mxu0 %v1007
  %3450 = vmatprep.subr.mxu0 0.0
  %3451 = vmatpush1.msra.mxu0 %v1008
  %3452 = vmatprep.subr.mxu0 0.0
  %3453 = vmatpush1.msra.mxu0 %v1009
  %3454 = vmatprep.mubr.f32.mxu0 %v83
  %3455 = vmatmul.mubr.f32.gmra.mrb[0].mxu0 %v82
  %v3456 = vpop.f32.mrb[0].mxu0
  %v3457 = vadd.f32 %v3387, %v3456
  %v3458 = vpop.f32.mrb[0].mxu0
  %3459 = vdwg.mxu0
  %3460 = vmatprep.subr.mxu0 0.0
  %3461 = vmatpush1.msra.mxu0 %v1010
  %3462 = vmatprep.subr.mxu0 0.0
  %3463 = vmatpush1.msra.mxu0 %v1011
  %3464 = vmatprep.subr.mxu0 0.0
  %3465 = vmatpush1.msra.mxu0 %v1012
  %3466 = vmatprep.subr.mxu0 0.0
  %3467 = vmatpush1.msra.mxu0 %v1013
  %3468 = vmatprep.subr.mxu0 0.0
  %3469 = vmatpush1.msra.mxu0 %v1014
  %3470 = vmatprep.subr.mxu0 0.0
  %3471 = vmatpush1.msra.mxu0 %v1015
  %3472 = vmatprep.subr.mxu0 0.0
  %3473 = vmatpush1.msra.mxu0 %v1016
  %3474 = vmatprep.subr.mxu0 0.0
  %3475 = vmatpush1.msra.mxu0 %v1017
  %3476 = vmatprep.subr.mxu0 0.0
  %3477 = vmatpush1.msra.mxu0 %v1018
  %3478 = vmatprep.subr.mxu0 0.0
  %3479 = vmatpush1.msra.mxu0 %v1019
  %3480 = vmatprep.subr.mxu0 0.0
  %3481 = vmatpush1.msra.mxu0 %v1020
  %3482 = vmatprep.subr.mxu0 0.0
  %3483 = vmatpush1.msra.mxu0 %v1021
  %3484 = vmatprep.subr.mxu0 0.0
  %3485 = vmatpush1.msra.mxu0 %v1022
  %3486 = vmatprep.subr.mxu0 0.0
  %3487 = vmatpush1.msra.mxu0 %v1023
  %3488 = vmatprep.subr.mxu0 0.0
  %3489 = vmatpush1.msra.mxu0 %v1024
  %3490 = vmatprep.subr.mxu0 0.0
  %3491 = vmatpush1.msra.mxu0 %v1025
  %3492 = vmatprep.subr.mxu0 0.0
  %3493 = vmatpush1.msra.mxu0 %v1026
  %3494 = vmatprep.subr.mxu0 0.0
  %3495 = vmatpush1.msra.mxu0 %v1027
  %3496 = vmatprep.subr.mxu0 0.0
  %3497 = vmatpush1.msra.mxu0 %v1028
  %3498 = vmatprep.subr.mxu0 0.0
  %3499 = vmatpush1.msra.mxu0 %v1029
  %3500 = vmatprep.subr.mxu0 0.0
  %3501 = vmatpush1.msra.mxu0 %v1030
  %3502 = vmatprep.subr.mxu0 0.0
  %3503 = vmatpush1.msra.mxu0 %v1031
  %3504 = vmatprep.subr.mxu0 0.0
  %3505 = vmatpush1.msra.mxu0 %v1032
  %3506 = vmatprep.subr.mxu0 0.0
  %3507 = vmatpush1.msra.mxu0 %v1033
  %3508 = vmatprep.subr.mxu0 0.0
  %3509 = vmatpush1.msra.mxu0 %v1034
  %3510 = vmatprep.subr.mxu0 0.0
  %3511 = vmatpush1.msra.mxu0 %v1035
  %3512 = vmatprep.subr.mxu0 0.0
  %3513 = vmatpush1.msra.mxu0 %v1036
  %3514 = vmatprep.subr.mxu0 0.0
  %3515 = vmatpush1.msra.mxu0 %v1037
  %3516 = vmatprep.subr.mxu0 0.0
  %3517 = vmatpush1.msra.mxu0 %v1038
  %3518 = vmatprep.subr.mxu0 0.0
  %3519 = vmatpush1.msra.mxu0 %v1039
  %3520 = vmatprep.subr.mxu0 0.0
  %3521 = vmatpush1.msra.mxu0 %v1040
  %3522 = vmatprep.subr.mxu0 0.0
  %3523 = vmatpush1.msra.mxu0 %v1041
  %3524 = vmatprep.mubr.f32.mxu0 %v85
  %3525 = vmatmul.mubr.f32.gmra.mrb[0].mxu0 %v84
  %v3526 = vpop.f32.mrb[0].mxu0
  %v3527 = vadd.f32 %v3457, %v3526
  %v3528 = vpop.f32.mrb[0].mxu0
  %3529 = vdwg.mxu0
  %3530 = vmatprep.subr.mxu0 0.0
  %3531 = vmatpush1.msra.mxu0 %v1042
  %3532 = vmatprep.subr.mxu0 0.0
  %3533 = vmatpush1.msra.mxu0 %v1043
  %3534 = vmatprep.subr.mxu0 0.0
  %3535 = vmatpush1.msra.mxu0 %v1044
  %3536 = vmatprep.subr.mxu0 0.0
  %3537 = vmatpush1.msra.mxu0 %v1045
  %3538 = vmatprep.subr.mxu0 0.0
  %3539 = vmatpush1.msra.mxu0 %v1046
  %3540 = vmatprep.subr.mxu0 0.0
  %3541 = vmatpush1.msra.mxu0 %v1047
  %3542 = vmatprep.subr.mxu0 0.0
  %3543 = vmatpush1.msra.mxu0 %v1048
  %3544 = vmatprep.subr.mxu0 0.0
  %3545 = vmatpush1.msra.mxu0 %v1049
  %3546 = vmatprep.subr.mxu0 0.0
  %3547 = vmatpush1.msra.mxu0 %v1050
  %3548 = vmatprep.subr.mxu0 0.0
  %3549 = vmatpush1.msra.mxu0 %v1051
  %3550 = vmatprep.subr.mxu0 0.0
  %3551 = vmatpush1.msra.mxu0 %v1052
  %3552 = vmatprep.subr.mxu0 0.0
  %3553 = vmatpush1.msra.mxu0 %v1053
  %3554 = vmatprep.subr.mxu0 0.0
  %3555 = vmatpush1.msra.mxu0 %v1054
  %3556 = vmatprep.subr.mxu0 0.0
  %3557 = vmatpush1.msra.mxu0 %v1055
  %3558 = vmatprep.subr.mxu0 0.0
  %3559 = vmatpush1.msra.mxu0 %v1056
  %3560 = vmatprep.subr.mxu0 0.0
  %3561 = vmatpush1.msra.mxu0 %v1057
  %3562 = vmatprep.subr.mxu0 0.0
  %3563 = vmatpush1.msra.mxu0 %v1058
  %3564 = vmatprep.subr.mxu0 0.0
  %3565 = vmatpush1.msra.mxu0 %v1059
  %3566 = vmatprep.subr.mxu0 0.0
  %3567 = vmatpush1.msra.mxu0 %v1060
  %3568 = vmatprep.subr.mxu0 0.0
  %3569 = vmatpush1.msra.mxu0 %v1061
  %3570 = vmatprep.subr.mxu0 0.0
  %3571 = vmatpush1.msra.mxu0 %v1062
  %3572 = vmatprep.subr.mxu0 0.0
  %3573 = vmatpush1.msra.mxu0 %v1063
  %3574 = vmatprep.subr.mxu0 0.0
  %3575 = vmatpush1.msra.mxu0 %v1064
  %3576 = vmatprep.subr.mxu0 0.0
  %3577 = vmatpush1.msra.mxu0 %v1065
  %3578 = vmatprep.subr.mxu0 0.0
  %3579 = vmatpush1.msra.mxu0 %v1066
  %3580 = vmatprep.subr.mxu0 0.0
  %3581 = vmatpush1.msra.mxu0 %v1067
  %3582 = vmatprep.subr.mxu0 0.0
  %3583 = vmatpush1.msra.mxu0 %v1068
  %3584 = vmatprep.subr.mxu0 0.0
  %3585 = vmatpush1.msra.mxu0 %v1069
  %3586 = vmatprep.subr.mxu0 0.0
  %3587 = vmatpush1.msra.mxu0 %v1070
  %3588 = vmatprep.subr.mxu0 0.0
  %3589 = vmatpush1.msra.mxu0 %v1071
  %3590 = vmatprep.subr.mxu0 0.0
  %3591 = vmatpush1.msra.mxu0 %v1072
  %3592 = vmatprep.subr.mxu0 0.0
  %3593 = vmatpush1.msra.mxu0 %v1073
  %3594 = vmatprep.mubr.f32.mxu0 %v87
  %3595 = vmatmul.mubr.f32.gmra.mrb[0].mxu0 %v86
  %v3596 = vpop.f32.mrb[0].mxu0
  %v3597 = vadd.f32 %v3527, %v3596
  %v3598 = vpop.f32.mrb[0].mxu0
  %3599 = vdwg.mxu0
  %3600 = vmatprep.subr.mxu0 0.0
  %3601 = vmatpush1.msra.mxu0 %v1074
  %3602 = vmatprep.subr.mxu0 0.0
  %3603 = vmatpush1.msra.mxu0 %v1075
  %3604 = vmatprep.subr.mxu0 0.0
  %3605 = vmatpush1.msra.mxu0 %v1076
  %3606 = vmatprep.subr.mxu0 0.0
  %3607 = vmatpush1.msra.mxu0 %v1077
  %3608 = vmatprep.subr.mxu0 0.0
  %3609 = vmatpush1.msra.mxu0 %v1078
  %3610 = vmatprep.subr.mxu0 0.0
  %3611 = vmatpush1.msra.mxu0 %v1079
  %3612 = vmatprep.subr.mxu0 0.0
  %3613 = vmatpush1.msra.mxu0 %v1080
  %3614 = vmatprep.subr.mxu0 0.0
  %3615 = vmatpush1.msra.mxu0 %v1081
  %3616 = vmatprep.subr.mxu0 0.0
  %3617 = vmatpush1.msra.mxu0 %v1082
  %3618 = vmatprep.subr.mxu0 0.0
  %3619 = vmatpush1.msra.mxu0 %v1083
  %3620 = vmatprep.subr.mxu0 0.0
  %3621 = vmatpush1.msra.mxu0 %v1084
  %3622 = vmatprep.subr.mxu0 0.0
  %3623 = vmatpush1.msra.mxu0 %v1085
  %3624 = vmatprep.subr.mxu0 0.0
  %3625 = vmatpush1.msra.mxu0 %v1086
  %3626 = vmatprep.subr.mxu0 0.0
  %3627 = vmatpush1.msra.mxu0 %v1087
  %3628 = vmatprep.subr.mxu0 0.0
  %3629 = vmatpush1.msra.mxu0 %v1088
  %3630 = vmatprep.subr.mxu0 0.0
  %3631 = vmatpush1.msra.mxu0 %v1089
  %3632 = vmatprep.subr.mxu0 0.0
  %3633 = vmatpush1.msra.mxu0 %v1090
  %3634 = vmatprep.subr.mxu0 0.0
  %3635 = vmatpush1.msra.mxu0 %v1091
  %3636 = vmatprep.subr.mxu0 0.0
  %3637 = vmatpush1.msra.mxu0 %v1092
  %3638 = vmatprep.subr.mxu0 0.0
  %3639 = vmatpush1.msra.mxu0 %v1093
  %3640 = vmatprep.subr.mxu0 0.0
  %3641 = vmatpush1.msra.mxu0 %v1094
  %3642 = vmatprep.subr.mxu0 0.0
  %3643 = vmatpush1.msra.mxu0 %v1095
  %3644 = vmatprep.subr.mxu0 0.0
  %3645 = vmatpush1.msra.mxu0 %v1096
  %3646 = vmatprep.subr.mxu0 0.0
  %3647 = vmatpush1.msra.mxu0 %v1097
  %3648 = vmatprep.subr.mxu0 0.0
  %3649 = vmatpush1.msra.mxu0 %v1098
  %3650 = vmatprep.subr.mxu0 0.0
  %3651 = vmatpush1.msra.mxu0 %v1099
  %3652 = vmatprep.subr.mxu0 0.0
  %3653 = vmatpush1.msra.mxu0 %v1100
  %3654 = vmatprep.subr.mxu0 0.0
  %3655 = vmatpush1.msra.mxu0 %v1101
  %3656 = vmatprep.subr.mxu0 0.0
  %3657 = vmatpush1.msra.mxu0 %v1102
  %3658 = vmatprep.subr.mxu0 0.0
  %3659 = vmatpush1.msra.mxu0 %v1103
  %3660 = vmatprep.subr.mxu0 0.0
  %3661 = vmatpush1.msra.mxu0 %v1104
  %3662 = vmatprep.subr.mxu0 0.0
  %3663 = vmatpush1.msra.mxu0 %v1105
  %3664 = vmatprep.mubr.f32.mxu0 %v89
  %3665 = vmatmul.mubr.f32.gmra.mrb[0].mxu0 %v88
  %v3666 = vpop.f32.mrb[0].mxu0
  %v3667 = vadd.f32 %v3597, %v3666
  %v3668 = vpop.f32.mrb[0].mxu0
  %3669 = vdwg.mxu0
  %3670 = vmatprep.subr.mxu0 0.0
  %3671 = vmatpush1.msra.mxu0 %v1106
  %3672 = vmatprep.subr.mxu0 0.0
  %3673 = vmatpush1.msra.mxu0 %v1107
  %3674 = vmatprep.subr.mxu0 0.0
  %3675 = vmatpush1.msra.mxu0 %v1108
  %3676 = vmatprep.subr.mxu0 0.0
  %3677 = vmatpush1.msra.mxu0 %v1109
  %3678 = vmatprep.subr.mxu0 0.0
  %3679 = vmatpush1.msra.mxu0 %v1110
  %3680 = vmatprep.subr.mxu0 0.0
  %3681 = vmatpush1.msra.mxu0 %v1111
  %3682 = vmatprep.subr.mxu0 0.0
  %3683 = vmatpush1.msra.mxu0 %v1112
  %3684 = vmatprep.subr.mxu0 0.0
  %3685 = vmatpush1.msra.mxu0 %v1113
  %3686 = vmatprep.subr.mxu0 0.0
  %3687 = vmatpush1.msra.mxu0 %v1114
  %3688 = vmatprep.subr.mxu0 0.0
  %3689 = vmatpush1.msra.mxu0 %v1115
  %3690 = vmatprep.subr.mxu0 0.0
  %3691 = vmatpush1.msra.mxu0 %v1116
  %3692 = vmatprep.subr.mxu0 0.0
  %3693 = vmatpush1.msra.mxu0 %v1117
  %3694 = vmatprep.subr.mxu0 0.0
  %3695 = vmatpush1.msra.mxu0 %v1118
  %3696 = vmatprep.subr.mxu0 0.0
  %3697 = vmatpush1.msra.mxu0 %v1119
  %3698 = vmatprep.subr.mxu0 0.0
  %3699 = vmatpush1.msra.mxu0 %v1120
  %3700 = vmatprep.subr.mxu0 0.0
  %3701 = vmatpush1.msra.mxu0 %v1121
  %3702 = vmatprep.subr.mxu0 0.0
  %3703 = vmatpush1.msra.mxu0 %v1122
  %3704 = vmatprep.subr.mxu0 0.0
  %3705 = vmatpush1.msra.mxu0 %v1123
  %3706 = vmatprep.subr.mxu0 0.0
  %3707 = vmatpush1.msra.mxu0 %v1124
  %3708 = vmatprep.subr.mxu0 0.0
  %3709 = vmatpush1.msra.mxu0 %v1125
  %3710 = vmatprep.subr.mxu0 0.0
  %3711 = vmatpush1.msra.mxu0 %v1126
  %3712 = vmatprep.subr.mxu0 0.0
  %3713 = vmatpush1.msra.mxu0 %v1127
  %3714 = vmatprep.subr.mxu0 0.0
  %3715 = vmatpush1.msra.mxu0 %v1128
  %3716 = vmatprep.subr.mxu0 0.0
  %3717 = vmatpush1.msra.mxu0 %v1129
  %3718 = vmatprep.subr.mxu0 0.0
  %3719 = vmatpush1.msra.mxu0 %v1130
  %3720 = vmatprep.subr.mxu0 0.0
  %3721 = vmatpush1.msra.mxu0 %v1131
  %3722 = vmatprep.subr.mxu0 0.0
  %3723 = vmatpush1.msra.mxu0 %v1132
  %3724 = vmatprep.subr.mxu0 0.0
  %3725 = vmatpush1.msra.mxu0 %v1133
  %3726 = vmatprep.subr.mxu0 0.0
  %3727 = vmatpush1.msra.mxu0 %v1134
  %3728 = vmatprep.subr.mxu0 0.0
  %3729 = vmatpush1.msra.mxu0 %v1135
  %3730 = vmatprep.subr.mxu0 0.0
  %3731 = vmatpush1.msra.mxu0 %v1136
  %3732 = vmatprep.subr.mxu0 0.0
  %3733 = vmatpush1.msra.mxu0 %v1137
  %3734 = vmatprep.mubr.f32.mxu0 %v91
  %3735 = vmatmul.mubr.f32.gmra.mrb[0].mxu0 %v90
  %v3736 = vpop.f32.mrb[0].mxu0
  %v3737 = vadd.f32 %v3667, %v3736
  %v3738 = vpop.f32.mrb[0].mxu0
  %3739 = vdwg.mxu0
  %3740 = vmatprep.subr.mxu0 0.0
  %3741 = vmatpush1.msra.mxu0 %v1138
  %3742 = vmatprep.subr.mxu0 0.0
  %3743 = vmatpush1.msra.mxu0 %v1139
  %3744 = vmatprep.subr.mxu0 0.0
  %3745 = vmatpush1.msra.mxu0 %v1140
  %3746 = vmatprep.subr.mxu0 0.0
  %3747 = vmatpush1.msra.mxu0 %v1141
  %3748 = vmatprep.subr.mxu0 0.0
  %3749 = vmatpush1.msra.mxu0 %v1142
  %3750 = vmatprep.subr.mxu0 0.0
  %3751 = vmatpush1.msra.mxu0 %v1143
  %3752 = vmatprep.subr.mxu0 0.0
  %3753 = vmatpush1.msra.mxu0 %v1144
  %3754 = vmatprep.subr.mxu0 0.0
  %3755 = vmatpush1.msra.mxu0 %v1145
  %3756 = vmatprep.subr.mxu0 0.0
  %3757 = vmatpush1.msra.mxu0 %v1146
  %3758 = vmatprep.subr.mxu0 0.0
  %3759 = vmatpush1.msra.mxu0 %v1147
  %3760 = vmatprep.subr.mxu0 0.0
  %3761 = vmatpush1.msra.mxu0 %v1148
  %3762 = vmatprep.subr.mxu0 0.0
  %3763 = vmatpush1.msra.mxu0 %v1149
  %3764 = vmatprep.subr.mxu0 0.0
  %3765 = vmatpush1.msra.mxu0 %v1150
  %3766 = vmatprep.subr.mxu0 0.0
  %3767 = vmatpush1.msra.mxu0 %v1151
  %3768 = vmatprep.subr.mxu0 0.0
  %3769 = vmatpush1.msra.mxu0 %v1152
  %3770 = vmatprep.subr.mxu0 0.0
  %3771 = vmatpush1.msra.mxu0 %v1153
  %3772 = vmatprep.subr.mxu0 0.0
  %3773 = vmatpush1.msra.mxu0 %v1154
  %3774 = vmatprep.subr.mxu0 0.0
  %3775 = vmatpush1.msra.mxu0 %v1155
  %3776 = vmatprep.subr.mxu0 0.0
  %3777 = vmatpush1.msra.mxu0 %v1156
  %3778 = vmatprep.subr.mxu0 0.0
  %3779 = vmatpush1.msra.mxu0 %v1157
  %3780 = vmatprep.subr.mxu0 0.0
  %3781 = vmatpush1.msra.mxu0 %v1158
  %3782 = vmatprep.subr.mxu0 0.0
  %3783 = vmatpush1.msra.mxu0 %v1159
  %3784 = vmatprep.subr.mxu0 0.0
  %3785 = vmatpush1.msra.mxu0 %v1160
  %3786 = vmatprep.subr.mxu0 0.0
  %3787 = vmatpush1.msra.mxu0 %v1161
  %3788 = vmatprep.subr.mxu0 0.0
  %3789 = vmatpush1.msra.mxu0 %v1162
  %3790 = vmatprep.subr.mxu0 0.0
  %3791 = vmatpush1.msra.mxu0 %v1163
  %3792 = vmatprep.subr.mxu0 0.0
  %3793 = vmatpush1.msra.mxu0 %v1164
  %3794 = vmatprep.subr.mxu0 0.0
  %3795 = vmatpush1.msra.mxu0 %v1165
  %3796 = vmatprep.subr.mxu0 0.0
  %3797 = vmatpush1.msra.mxu0 %v1166
  %3798 = vmatprep.subr.mxu0 0.0
  %3799 = vmatpush1.msra.mxu0 %v1167
  %3800 = vmatprep.subr.mxu0 0.0
  %3801 = vmatpush1.msra.mxu0 %v1168
  %3802 = vmatprep.subr.mxu0 0.0
  %3803 = vmatpush1.msra.mxu0 %v1169
  %3804 = vmatprep.mubr.f32.mxu0 %v93
  %3805 = vmatmul.mubr.f32.gmra.mrb[0].mxu0 %v92
  %v3806 = vpop.f32.mrb[0].mxu0
  %v3807 = vadd.f32 %v3737, %v3806
  %v3808 = vpop.f32.mrb[0].mxu0
  %3809 = vdwg.mxu0
  %3810 = vmatprep.subr.mxu0 0.0
  %3811 = vmatpush1.msra.mxu0 %v1170
  %3812 = vmatprep.subr.mxu0 0.0
  %3813 = vmatpush1.msra.mxu0 %v1171
  %3814 = vmatprep.subr.mxu0 0.0
  %3815 = vmatpush1.msra.mxu0 %v1172
  %3816 = vmatprep.subr.mxu0 0.0
  %3817 = vmatpush1.msra.mxu0 %v1173
  %3818 = vmatprep.subr.mxu0 0.0
  %3819 = vmatpush1.msra.mxu0 %v1174
  %3820 = vmatprep.subr.mxu0 0.0
  %3821 = vmatpush1.msra.mxu0 %v1175
  %3822 = vmatprep.subr.mxu0 0.0
  %3823 = vmatpush1.msra.mxu0 %v1176
  %3824 = vmatprep.subr.mxu0 0.0
  %3825 = vmatpush1.msra.mxu0 %v1177
  %3826 = vmatprep.subr.mxu0 0.0
  %3827 = vmatpush1.msra.mxu0 %v1178
  %3828 = vmatprep.subr.mxu0 0.0
  %3829 = vmatpush1.msra.mxu0 %v1179
  %3830 = vmatprep.subr.mxu0 0.0
  %3831 = vmatpush1.msra.mxu0 %v1180
  %3832 = vmatprep.subr.mxu0 0.0
  %3833 = vmatpush1.msra.mxu0 %v1181
  %3834 = vmatprep.subr.mxu0 0.0
  %3835 = vmatpush1.msra.mxu0 %v1182
  %3836 = vmatprep.subr.mxu0 0.0
  %3837 = vmatpush1.msra.mxu0 %v1183
  %3838 = vmatprep.subr.mxu0 0.0
  %3839 = vmatpush1.msra.mxu0 %v1184
  %3840 = vmatprep.subr.mxu0 0.0
  %3841 = vmatpush1.msra.mxu0 %v1185
  %3842 = vmatprep.subr.mxu0 0.0
  %3843 = vmatpush1.msra.mxu0 %v1186
  %3844 = vmatprep.subr.mxu0 0.0
  %3845 = vmatpush1.msra.mxu0 %v1187
  %3846 = vmatprep.subr.mxu0 0.0
  %3847 = vmatpush1.msra.mxu0 %v1188
  %3848 = vmatprep.subr.mxu0 0.0
  %3849 = vmatpush1.msra.mxu0 %v1189
  %3850 = vmatprep.subr.mxu0 0.0
  %3851 = vmatpush1.msra.mxu0 %v1190
  %3852 = vmatprep.subr.mxu0 0.0
  %3853 = vmatpush1.msra.mxu0 %v1191
  %3854 = vmatprep.subr.mxu0 0.0
  %3855 = vmatpush1.msra.mxu0 %v1192
  %3856 = vmatprep.subr.mxu0 0.0
  %3857 = vmatpush1.msra.mxu0 %v1193
  %3858 = vmatprep.subr.mxu0 0.0
  %3859 = vmatpush1.msra.mxu0 %v1194
  %3860 = vmatprep.subr.mxu0 0.0
  %3861 = vmatpush1.msra.mxu0 %v1195
  %3862 = vmatprep.subr.mxu0 0.0
  %3863 = vmatpush1.msra.mxu0 %v1196
  %3864 = vmatprep.subr.mxu0 0.0
  %3865 = vmatpush1.msra.mxu0 %v1197
  %3866 = vmatprep.subr.mxu0 0.0
  %3867 = vmatpush1.msra.mxu0 %v1198
  %3868 = vmatprep.subr.mxu0 0.0
  %3869 = vmatpush1.msra.mxu0 %v1199
  %3870 = vmatprep.subr.mxu0 0.0
  %3871 = vmatpush1.msra.mxu0 %v1200
  %3872 = vmatprep.subr.mxu0 0.0
  %3873 = vmatpush1.msra.mxu0 %v1201
  %3874 = vmatprep.mubr.f32.mxu0 %v95
  %3875 = vmatmul.mubr.f32.gmra.mrb[0].mxu0 %v94
  %v3876 = vpop.f32.mrb[0].mxu0
  %v3877 = vadd.f32 %v3807, %v3876
  %v3878 = vpop.f32.mrb[0].mxu0
  %3879 = vdwg.mxu0
  %3880 = vmatprep.subr.mxu0 0.0
  %3881 = vmatpush1.msra.mxu0 %v1202
  %3882 = vmatprep.subr.mxu0 0.0
  %3883 = vmatpush1.msra.mxu0 %v1203
  %3884 = vmatprep.subr.mxu0 0.0
  %3885 = vmatpush1.msra.mxu0 %v1204
  %3886 = vmatprep.subr.mxu0 0.0
  %3887 = vmatpush1.msra.mxu0 %v1205
  %3888 = vmatprep.subr.mxu0 0.0
  %3889 = vmatpush1.msra.mxu0 %v1206
  %3890 = vmatprep.subr.mxu0 0.0
  %3891 = vmatpush1.msra.mxu0 %v1207
  %3892 = vmatprep.subr.mxu0 0.0
  %3893 = vmatpush1.msra.mxu0 %v1208
  %3894 = vmatprep.subr.mxu0 0.0
  %3895 = vmatpush1.msra.mxu0 %v1209
  %3896 = vmatprep.subr.mxu0 0.0
  %3897 = vmatpush1.msra.mxu0 %v1210
  %3898 = vmatprep.subr.mxu0 0.0
  %3899 = vmatpush1.msra.mxu0 %v1211
  %3900 = vmatprep.subr.mxu0 0.0
  %3901 = vmatpush1.msra.mxu0 %v1212
  %3902 = vmatprep.subr.mxu0 0.0
  %3903 = vmatpush1.msra.mxu0 %v1213
  %3904 = vmatprep.subr.mxu0 0.0
  %3905 = vmatpush1.msra.mxu0 %v1214
  %3906 = vmatprep.subr.mxu0 0.0
  %3907 = vmatpush1.msra.mxu0 %v1215
  %3908 = vmatprep.subr.mxu0 0.0
  %3909 = vmatpush1.msra.mxu0 %v1216
  %3910 = vmatprep.subr.mxu0 0.0
  %3911 = vmatpush1.msra.mxu0 %v1217
  %3912 = vmatprep.subr.mxu0 0.0
  %3913 = vmatpush1.msra.mxu0 %v1218
  %3914 = vmatprep.subr.mxu0 0.0
  %3915 = vmatpush1.msra.mxu0 %v1219
  %3916 = vmatprep.subr.mxu0 0.0
  %3917 = vmatpush1.msra.mxu0 %v1220
  %3918 = vmatprep.subr.mxu0 0.0
  %3919 = vmatpush1.msra.mxu0 %v1221
  %3920 = vmatprep.subr.mxu0 0.0
  %3921 = vmatpush1.msra.mxu0 %v1222
  %3922 = vmatprep.subr.mxu0 0.0
  %3923 = vmatpush1.msra.mxu0 %v1223
  %3924 = vmatprep.subr.mxu0 0.0
  %3925 = vmatpush1.msra.mxu0 %v1224
  %3926 = vmatprep.subr.mxu0 0.0
  %3927 = vmatpush1.msra.mxu0 %v1225
  %3928 = vmatprep.subr.mxu0 0.0
  %3929 = vmatpush1.msra.mxu0 %v1226
  %3930 = vmatprep.subr.mxu0 0.0
  %3931 = vmatpush1.msra.mxu0 %v1227
  %3932 = vmatprep.subr.mxu0 0.0
  %3933 = vmatpush1.msra.mxu0 %v1228
  %3934 = vmatprep.subr.mxu0 0.0
  %3935 = vmatpush1.msra.mxu0 %v1229
  %3936 = vmatprep.subr.mxu0 0.0
  %3937 = vmatpush1.msra.mxu0 %v1230
  %3938 = vmatprep.subr.mxu0 0.0
  %3939 = vmatpush1.msra.mxu0 %v1231
  %3940 = vmatprep.subr.mxu0 0.0
  %3941 = vmatpush1.msra.mxu0 %v1232
  %3942 = vmatprep.subr.mxu0 0.0
  %3943 = vmatpush1.msra.mxu0 %v1233
  %3944 = vmatprep.mubr.f32.mxu0 %v97
  %3945 = vmatmul.mubr.f32.gmra.mrb[0].mxu0 %v96
  %v3946 = vpop.f32.mrb[0].mxu0
  %v3947 = vadd.f32 %v3877, %v3946
  %v3948 = vpop.f32.mrb[0].mxu0
  %3949 = vdwg.mxu0
  %3950 = vmatprep.subr.mxu0 0.0
  %3951 = vmatpush1.msra.mxu0 %v1234
  %3952 = vmatprep.subr.mxu0 0.0
  %3953 = vmatpush1.msra.mxu0 %v1235
  %3954 = vmatprep.subr.mxu0 0.0
  %3955 = vmatpush1.msra.mxu0 %v1236
  %3956 = vmatprep.subr.mxu0 0.0
  %3957 = vmatpush1.msra.mxu0 %v1237
  %3958 = vmatprep.subr.mxu0 0.0
  %3959 = vmatpush1.msra.mxu0 %v1238
  %3960 = vmatprep.subr.mxu0 0.0
  %3961 = vmatpush1.msra.mxu0 %v1239
  %3962 = vmatprep.subr.mxu0 0.0
  %3963 = vmatpush1.msra.mxu0 %v1240
  %3964 = vmatprep.subr.mxu0 0.0
  %3965 = vmatpush1.msra.mxu0 %v1241
  %3966 = vmatprep.subr.mxu0 0.0
  %3967 = vmatpush1.msra.mxu0 %v1242
  %3968 = vmatprep.subr.mxu0 0.0
  %3969 = vmatpush1.msra.mxu0 %v1243
  %3970 = vmatprep.subr.mxu0 0.0
  %3971 = vmatpush1.msra.mxu0 %v1244
  %3972 = vmatprep.subr.mxu0 0.0
  %3973 = vmatpush1.msra.mxu0 %v1245
  %3974 = vmatprep.subr.mxu0 0.0
  %3975 = vmatpush1.msra.mxu0 %v1246
  %3976 = vmatprep.subr.mxu0 0.0
  %3977 = vmatpush1.msra.mxu0 %v1247
  %3978 = vmatprep.subr.mxu0 0.0
  %3979 = vmatpush1.msra.mxu0 %v1248
  %3980 = vmatprep.subr.mxu0 0.0
  %3981 = vmatpush1.msra.mxu0 %v1249
  %3982 = vmatprep.subr.mxu0 0.0
  %3983 = vmatpush1.msra.mxu0 %v1250
  %3984 = vmatprep.subr.mxu0 0.0
  %3985 = vmatpush1.msra.mxu0 %v1251
  %3986 = vmatprep.subr.mxu0 0.0
  %3987 = vmatpush1.msra.mxu0 %v1252
  %3988 = vmatprep.subr.mxu0 0.0
  %3989 = vmatpush1.msra.mxu0 %v1253
  %3990 = vmatprep.subr.mxu0 0.0
  %3991 = vmatpush1.msra.mxu0 %v1254
  %3992 = vmatprep.subr.mxu0 0.0
  %3993 = vmatpush1.msra.mxu0 %v1255
  %3994 = vmatprep.subr.mxu0 0.0
  %3995 = vmatpush1.msra.mxu0 %v1256
  %3996 = vmatprep.subr.mxu0 0.0
  %3997 = vmatpush1.msra.mxu0 %v1257
  %3998 = vmatprep.subr.mxu0 0.0
  %3999 = vmatpush1.msra.mxu0 %v1258
  %4000 = vmatprep.subr.mxu0 0.0
  %4001 = vmatpush1.msra.mxu0 %v1259
  %4002 = vmatprep.subr.mxu0 0.0
  %4003 = vmatpush1.msra.mxu0 %v1260
  %4004 = vmatprep.subr.mxu0 0.0
  %4005 = vmatpush1.msra.mxu0 %v1261
  %4006 = vmatprep.subr.mxu0 0.0
  %4007 = vmatpush1.msra.mxu0 %v1262
  %4008 = vmatprep.subr.mxu0 0.0
  %4009 = vmatpush1.msra.mxu0 %v1263
  %4010 = vmatprep.subr.mxu0 0.0
  %4011 = vmatpush1.msra.mxu0 %v1264
  %4012 = vmatprep.subr.mxu0 0.0
  %4013 = vmatpush1.msra.mxu0 %v1265
  %4014 = vmatprep.mubr.f32.mxu0 %v99
  %4015 = vmatmul.mubr.f32.gmra.mrb[0].mxu0 %v98
  %v4016 = vpop.f32.mrb[0].mxu0
  %v4017 = vadd.f32 %v3947, %v4016
  %v4018 = vpop.f32.mrb[0].mxu0
  %4019 = vdwg.mxu0
  %4020 = vmatprep.subr.mxu0 0.0
  %4021 = vmatpush1.msra.mxu0 %v1266
  %4022 = vmatprep.subr.mxu0 0.0
  %4023 = vmatpush1.msra.mxu0 %v1267
  %4024 = vmatprep.subr.mxu0 0.0
  %4025 = vmatpush1.msra.mxu0 %v1268
  %4026 = vmatprep.subr.mxu0 0.0
  %4027 = vmatpush1.msra.mxu0 %v1269
  %4028 = vmatprep.subr.mxu0 0.0
  %4029 = vmatpush1.msra.mxu0 %v1270
  %4030 = vmatprep.subr.mxu0 0.0
  %4031 = vmatpush1.msra.mxu0 %v1271
  %4032 = vmatprep.subr.mxu0 0.0
  %4033 = vmatpush1.msra.mxu0 %v1272
  %4034 = vmatprep.subr.mxu0 0.0
  %4035 = vmatpush1.msra.mxu0 %v1273
  %4036 = vmatprep.subr.mxu0 0.0
  %4037 = vmatpush1.msra.mxu0 %v1274
  %4038 = vmatprep.subr.mxu0 0.0
  %4039 = vmatpush1.msra.mxu0 %v1275
  %4040 = vmatprep.subr.mxu0 0.0
  %4041 = vmatpush1.msra.mxu0 %v1276
  %4042 = vmatprep.subr.mxu0 0.0
  %4043 = vmatpush1.msra.mxu0 %v1277
  %4044 = vmatprep.subr.mxu0 0.0
  %4045 = vmatpush1.msra.mxu0 %v1278
  %4046 = vmatprep.subr.mxu0 0.0
  %4047 = vmatpush1.msra.mxu0 %v1279
  %4048 = vmatprep.subr.mxu0 0.0
  %4049 = vmatpush1.msra.mxu0 %v1280
  %4050 = vmatprep.subr.mxu0 0.0
  %4051 = vmatpush1.msra.mxu0 %v1281
  %4052 = vmatprep.subr.mxu0 0.0
  %4053 = vmatpush1.msra.mxu0 %v1282
  %4054 = vmatprep.subr.mxu0 0.0
  %4055 = vmatpush1.msra.mxu0 %v1283
  %4056 = vmatprep.subr.mxu0 0.0
  %4057 = vmatpush1.msra.mxu0 %v1284
  %4058 = vmatprep.subr.mxu0 0.0
  %4059 = vmatpush1.msra.mxu0 %v1285
  %4060 = vmatprep.subr.mxu0 0.0
  %4061 = vmatpush1.msra.mxu0 %v1286
  %4062 = vmatprep.subr.mxu0 0.0
  %4063 = vmatpush1.msra.mxu0 %v1287
  %4064 = vmatprep.subr.mxu0 0.0
  %4065 = vmatpush1.msra.mxu0 %v1288
  %4066 = vmatprep.subr.mxu0 0.0
  %4067 = vmatpush1.msra.mxu0 %v1289
  %4068 = vmatprep.subr.mxu0 0.0
  %4069 = vmatpush1.msra.mxu0 %v1290
  %4070 = vmatprep.subr.mxu0 0.0
  %4071 = vmatpush1.msra.mxu0 %v1291
  %4072 = vmatprep.subr.mxu0 0.0
  %4073 = vmatpush1.msra.mxu0 %v1292
  %4074 = vmatprep.subr.mxu0 0.0
  %4075 = vmatpush1.msra.mxu0 %v1293
  %4076 = vmatprep.subr.mxu0 0.0
  %4077 = vmatpush1.msra.mxu0 %v1294
  %4078 = vmatprep.subr.mxu0 0.0
  %4079 = vmatpush1.msra.mxu0 %v1295
  %4080 = vmatprep.subr.mxu0 0.0
  %4081 = vmatpush1.msra.mxu0 %v1296
  %4082 = vmatprep.subr.mxu0 0.0
  %4083 = vmatpush1.msra.mxu0 %v1297
  %4084 = vmatprep.mubr.f32.mxu0 %v101
  %4085 = vmatmul.mubr.f32.gmra.mrb[0].mxu0 %v100
  %v4086 = vpop.f32.mrb[0].mxu0
  %v4087 = vadd.f32 %v4017, %v4086
  %v4088 = vpop.f32.mrb[0].mxu0
  %4089 = vdwg.mxu0
  %4090 = vmatprep.subr.mxu0 0.0
  %4091 = vmatpush1.msra.mxu0 %v1298
  %4092 = vmatprep.subr.mxu0 0.0
  %4093 = vmatpush1.msra.mxu0 %v1299
  %4094 = vmatprep.subr.mxu0 0.0
  %4095 = vmatpush1.msra.mxu0 %v1300
  %4096 = vmatprep.subr.mxu0 0.0
  %4097 = vmatpush1.msra.mxu0 %v1301
  %4098 = vmatprep.subr.mxu0 0.0
  %4099 = vmatpush1.msra.mxu0 %v1302
  %4100 = vmatprep.subr.mxu0 0.0
  %4101 = vmatpush1.msra.mxu0 %v1303
  %4102 = vmatprep.subr.mxu0 0.0
  %4103 = vmatpush1.msra.mxu0 %v1304
  %4104 = vmatprep.subr.mxu0 0.0
  %4105 = vmatpush1.msra.mxu0 %v1305
  %4106 = vmatprep.subr.mxu0 0.0
  %4107 = vmatpush1.msra.mxu0 %v1306
  %4108 = vmatprep.subr.mxu0 0.0
  %4109 = vmatpush1.msra.mxu0 %v1307
  %4110 = vmatprep.subr.mxu0 0.0
  %4111 = vmatpush1.msra.mxu0 %v1308
  %4112 = vmatprep.subr.mxu0 0.0
  %4113 = vmatpush1.msra.mxu0 %v1309
  %4114 = vmatprep.subr.mxu0 0.0
  %4115 = vmatpush1.msra.mxu0 %v1310
  %4116 = vmatprep.subr.mxu0 0.0
  %4117 = vmatpush1.msra.mxu0 %v1311
  %4118 = vmatprep.subr.mxu0 0.0
  %4119 = vmatpush1.msra.mxu0 %v1312
  %4120 = vmatprep.subr.mxu0 0.0
  %4121 = vmatpush1.msra.mxu0 %v1313
  %4122 = vmatprep.subr.mxu0 0.0
  %4123 = vmatpush1.msra.mxu0 %v1314
  %4124 = vmatprep.subr.mxu0 0.0
  %4125 = vmatpush1.msra.mxu0 %v1315
  %4126 = vmatprep.subr.mxu0 0.0
  %4127 = vmatpush1.msra.mxu0 %v1316
  %4128 = vmatprep.subr.mxu0 0.0
  %4129 = vmatpush1.msra.mxu0 %v1317
  %4130 = vmatprep.subr.mxu0 0.0
  %4131 = vmatpush1.msra.mxu0 %v1318
  %4132 = vmatprep.subr.mxu0 0.0
  %4133 = vmatpush1.msra.mxu0 %v1319
  %4134 = vmatprep.subr.mxu0 0.0
  %4135 = vmatpush1.msra.mxu0 %v1320
  %4136 = vmatprep.subr.mxu0 0.0
  %4137 = vmatpush1.msra.mxu0 %v1321
  %4138 = vmatprep.subr.mxu0 0.0
  %4139 = vmatpush1.msra.mxu0 %v1322
  %4140 = vmatprep.subr.mxu0 0.0
  %4141 = vmatpush1.msra.mxu0 %v1323
  %4142 = vmatprep.subr.mxu0 0.0
  %4143 = vmatpush1.msra.mxu0 %v1324
  %4144 = vmatprep.subr.mxu0 0.0
  %4145 = vmatpush1.msra.mxu0 %v1325
  %4146 = vmatprep.subr.mxu0 0.0
  %4147 = vmatpush1.msra.mxu0 %v1326
  %4148 = vmatprep.subr.mxu0 0.0
  %4149 = vmatpush1.msra.mxu0 %v1327
  %4150 = vmatprep.subr.mxu0 0.0
  %4151 = vmatpush1.msra.mxu0 %v1328
  %4152 = vmatprep.subr.mxu0 0.0
  %4153 = vmatpush1.msra.mxu0 %v1329
  %4154 = vmatprep.mubr.f32.mxu0 %v103
  %4155 = vmatmul.mubr.f32.gmra.mrb[0].mxu0 %v102
  %v4156 = vpop.f32.mrb[0].mxu0
  %v4157 = vadd.f32 %v4087, %v4156
  %v4158 = vpop.f32.mrb[0].mxu0
  %4159 = vdwg.mxu0
  %4160 = vmatprep.subr.mxu0 0.0
  %4161 = vmatpush1.msra.mxu0 %v1330
  %4162 = vmatprep.subr.mxu0 0.0
  %4163 = vmatpush1.msra.mxu0 %v1331
  %4164 = vmatprep.subr.mxu0 0.0
  %4165 = vmatpush1.msra.mxu0 %v1332
  %4166 = vmatprep.subr.mxu0 0.0
  %4167 = vmatpush1.msra.mxu0 %v1333
  %4168 = vmatprep.subr.mxu0 0.0
  %4169 = vmatpush1.msra.mxu0 %v1334
  %4170 = vmatprep.subr.mxu0 0.0
  %4171 = vmatpush1.msra.mxu0 %v1335
  %4172 = vmatprep.subr.mxu0 0.0
  %4173 = vmatpush1.msra.mxu0 %v1336
  %4174 = vmatprep.subr.mxu0 0.0
  %4175 = vmatpush1.msra.mxu0 %v1337
  %4176 = vmatprep.subr.mxu0 0.0
  %4177 = vmatpush1.msra.mxu0 %v1338
  %4178 = vmatprep.subr.mxu0 0.0
  %4179 = vmatpush1.msra.mxu0 %v1339
  %4180 = vmatprep.subr.mxu0 0.0
  %4181 = vmatpush1.msra.mxu0 %v1340
  %4182 = vmatprep.subr.mxu0 0.0
  %4183 = vmatpush1.msra.mxu0 %v1341
  %4184 = vmatprep.subr.mxu0 0.0
  %4185 = vmatpush1.msra.mxu0 %v1342
  %4186 = vmatprep.subr.mxu0 0.0
  %4187 = vmatpush1.msra.mxu0 %v1343
  %4188 = vmatprep.subr.mxu0 0.0
  %4189 = vmatpush1.msra.mxu0 %v1344
  %4190 = vmatprep.subr.mxu0 0.0
  %4191 = vmatpush1.msra.mxu0 %v1345
  %4192 = vmatprep.subr.mxu0 0.0
  %4193 = vmatpush1.msra.mxu0 %v1346
  %4194 = vmatprep.subr.mxu0 0.0
  %4195 = vmatpush1.msra.mxu0 %v1347
  %4196 = vmatprep.subr.mxu0 0.0
  %4197 = vmatpush1.msra.mxu0 %v1348
  %4198 = vmatprep.subr.mxu0 0.0
  %4199 = vmatpush1.msra.mxu0 %v1349
  %4200 = vmatprep.subr.mxu0 0.0
  %4201 = vmatpush1.msra.mxu0 %v1350
  %4202 = vmatprep.subr.mxu0 0.0
  %4203 = vmatpush1.msra.mxu0 %v1351
  %4204 = vmatprep.subr.mxu0 0.0
  %4205 = vmatpush1.msra.mxu0 %v1352
  %4206 = vmatprep.subr.mxu0 0.0
  %4207 = vmatpush1.msra.mxu0 %v1353
  %4208 = vmatprep.subr.mxu0 0.0
  %4209 = vmatpush1.msra.mxu0 %v1354
  %4210 = vmatprep.subr.mxu0 0.0
  %4211 = vmatpush1.msra.mxu0 %v1355
  %4212 = vmatprep.subr.mxu0 0.0
  %4213 = vmatpush1.msra.mxu0 %v1356
  %4214 = vmatprep.subr.mxu0 0.0
  %4215 = vmatpush1.msra.mxu0 %v1357
  %4216 = vmatprep.subr.mxu0 0.0
  %4217 = vmatpush1.msra.mxu0 %v1358
  %4218 = vmatprep.subr.mxu0 0.0
  %4219 = vmatpush1.msra.mxu0 %v1359
  %4220 = vmatprep.subr.mxu0 0.0
  %4221 = vmatpush1.msra.mxu0 %v1360
  %4222 = vmatprep.subr.mxu0 0.0
  %4223 = vmatpush1.msra.mxu0 %v1361
  %4224 = vmatprep.mubr.f32.mxu0 %v105
  %4225 = vmatmul.mubr.f32.gmra.mrb[0].mxu0 %v104
  %v4226 = vpop.f32.mrb[0].mxu0
  %v4227 = vadd.f32 %v4157, %v4226
  %v4228 = vpop.f32.mrb[0].mxu0
  %4229 = vdwg.mxu0
  %4230 = vmatprep.subr.mxu0 0.0
  %4231 = vmatpush1.msra.mxu0 %v1362
  %4232 = vmatprep.subr.mxu0 0.0
  %4233 = vmatpush1.msra.mxu0 %v1363
  %4234 = vmatprep.subr.mxu0 0.0
  %4235 = vmatpush1.msra.mxu0 %v1364
  %4236 = vmatprep.subr.mxu0 0.0
  %4237 = vmatpush1.msra.mxu0 %v1365
  %4238 = vmatprep.subr.mxu0 0.0
  %4239 = vmatpush1.msra.mxu0 %v1366
  %4240 = vmatprep.subr.mxu0 0.0
  %4241 = vmatpush1.msra.mxu0 %v1367
  %4242 = vmatprep.subr.mxu0 0.0
  %4243 = vmatpush1.msra.mxu0 %v1368
  %4244 = vmatprep.subr.mxu0 0.0
  %4245 = vmatpush1.msra.mxu0 %v1369
  %4246 = vmatprep.subr.mxu0 0.0
  %4247 = vmatpush1.msra.mxu0 %v1370
  %4248 = vmatprep.subr.mxu0 0.0
  %4249 = vmatpush1.msra.mxu0 %v1371
  %4250 = vmatprep.subr.mxu0 0.0
  %4251 = vmatpush1.msra.mxu0 %v1372
  %4252 = vmatprep.subr.mxu0 0.0
  %4253 = vmatpush1.msra.mxu0 %v1373
  %4254 = vmatprep.subr.mxu0 0.0
  %4255 = vmatpush1.msra.mxu0 %v1374
  %4256 = vmatprep.subr.mxu0 0.0
  %4257 = vmatpush1.msra.mxu0 %v1375
  %4258 = vmatprep.subr.mxu0 0.0
  %4259 = vmatpush1.msra.mxu0 %v1376
  %4260 = vmatprep.subr.mxu0 0.0
  %4261 = vmatpush1.msra.mxu0 %v1377
  %4262 = vmatprep.subr.mxu0 0.0
  %4263 = vmatpush1.msra.mxu0 %v1378
  %4264 = vmatprep.subr.mxu0 0.0
  %4265 = vmatpush1.msra.mxu0 %v1379
  %4266 = vmatprep.subr.mxu0 0.0
  %4267 = vmatpush1.msra.mxu0 %v1380
  %4268 = vmatprep.subr.mxu0 0.0
  %4269 = vmatpush1.msra.mxu0 %v1381
  %4270 = vmatprep.subr.mxu0 0.0
  %4271 = vmatpush1.msra.mxu0 %v1382
  %4272 = vmatprep.subr.mxu0 0.0
  %4273 = vmatpush1.msra.mxu0 %v1383
  %4274 = vmatprep.subr.mxu0 0.0
  %4275 = vmatpush1.msra.mxu0 %v1384
  %4276 = vmatprep.subr.mxu0 0.0
  %4277 = vmatpush1.msra.mxu0 %v1385
  %4278 = vmatprep.subr.mxu0 0.0
  %4279 = vmatpush1.msra.mxu0 %v1386
  %4280 = vmatprep.subr.mxu0 0.0
  %4281 = vmatpush1.msra.mxu0 %v1387
  %4282 = vmatprep.subr.mxu0 0.0
  %4283 = vmatpush1.msra.mxu0 %v1388
  %4284 = vmatprep.subr.mxu0 0.0
  %4285 = vmatpush1.msra.mxu0 %v1389
  %4286 = vmatprep.subr.mxu0 0.0
  %4287 = vmatpush1.msra.mxu0 %v1390
  %4288 = vmatprep.subr.mxu0 0.0
  %4289 = vmatpush1.msra.mxu0 %v1391
  %4290 = vmatprep.subr.mxu0 0.0
  %4291 = vmatpush1.msra.mxu0 %v1392
  %4292 = vmatprep.subr.mxu0 0.0
  %4293 = vmatpush1.msra.mxu0 %v1393
  %4294 = vmatprep.mubr.f32.mxu0 %v107
  %4295 = vmatmul.mubr.f32.gmra.mrb[0].mxu0 %v106
  %v4296 = vpop.f32.mrb[0].mxu0
  %v4297 = vadd.f32 %v4227, %v4296
  %v4298 = vpop.f32.mrb[0].mxu0
  %4299 = vdwg.mxu0
  %4300 = vmatprep.subr.mxu0 0.0
  %4301 = vmatpush1.msra.mxu0 %v1394
  %4302 = vmatprep.subr.mxu0 0.0
  %4303 = vmatpush1.msra.mxu0 %v1395
  %4304 = vmatprep.subr.mxu0 0.0
  %4305 = vmatpush1.msra.mxu0 %v1396
  %4306 = vmatprep.subr.mxu0 0.0
  %4307 = vmatpush1.msra.mxu0 %v1397
  %4308 = vmatprep.subr.mxu0 0.0
  %4309 = vmatpush1.msra.mxu0 %v1398
  %4310 = vmatprep.subr.mxu0 0.0
  %4311 = vmatpush1.msra.mxu0 %v1399
  %4312 = vmatprep.subr.mxu0 0.0
  %4313 = vmatpush1.msra.mxu0 %v1400
  %4314 = vmatprep.subr.mxu0 0.0
  %4315 = vmatpush1.msra.mxu0 %v1401
  %4316 = vmatprep.subr.mxu0 0.0
  %4317 = vmatpush1.msra.mxu0 %v1402
  %4318 = vmatprep.subr.mxu0 0.0
  %4319 = vmatpush1.msra.mxu0 %v1403
  %4320 = vmatprep.subr.mxu0 0.0
  %4321 = vmatpush1.msra.mxu0 %v1404
  %4322 = vmatprep.subr.mxu0 0.0
  %4323 = vmatpush1.msra.mxu0 %v1405
  %4324 = vmatprep.subr.mxu0 0.0
  %4325 = vmatpush1.msra.mxu0 %v1406
  %4326 = vmatprep.subr.mxu0 0.0
  %4327 = vmatpush1.msra.mxu0 %v1407
  %4328 = vmatprep.subr.mxu0 0.0
  %4329 = vmatpush1.msra.mxu0 %v1408
  %4330 = vmatprep.subr.mxu0 0.0
  %4331 = vmatpush1.msra.mxu0 %v1409
  %4332 = vmatprep.subr.mxu0 0.0
  %4333 = vmatpush1.msra.mxu0 %v1410
  %4334 = vmatprep.subr.mxu0 0.0
  %4335 = vmatpush1.msra.mxu0 %v1411
  %4336 = vmatprep.subr.mxu0 0.0
  %4337 = vmatpush1.msra.mxu0 %v1412
  %4338 = vmatprep.subr.mxu0 0.0
  %4339 = vmatpush1.msra.mxu0 %v1413
  %4340 = vmatprep.subr.mxu0 0.0
  %4341 = vmatpush1.msra.mxu0 %v1414
  %4342 = vmatprep.subr.mxu0 0.0
  %4343 = vmatpush1.msra.mxu0 %v1415
  %4344 = vmatprep.subr.mxu0 0.0
  %4345 = vmatpush1.msra.mxu0 %v1416
  %4346 = vmatprep.subr.mxu0 0.0
  %4347 = vmatpush1.msra.mxu0 %v1417
  %4348 = vmatprep.subr.mxu0 0.0
  %4349 = vmatpush1.msra.mxu0 %v1418
  %4350 = vmatprep.subr.mxu0 0.0
  %4351 = vmatpush1.msra.mxu0 %v1419
  %4352 = vmatprep.subr.mxu0 0.0
  %4353 = vmatpush1.msra.mxu0 %v1420
  %4354 = vmatprep.subr.mxu0 0.0
  %4355 = vmatpush1.msra.mxu0 %v1421
  %4356 = vmatprep.subr.mxu0 0.0
  %4357 = vmatpush1.msra.mxu0 %v1422
  %4358 = vmatprep.subr.mxu0 0.0
  %4359 = vmatpush1.msra.mxu0 %v1423
  %4360 = vmatprep.subr.mxu0 0.0
  %4361 = vmatpush1.msra.mxu0 %v1424
  %4362 = vmatprep.subr.mxu0 0.0
  %4363 = vmatpush1.msra.mxu0 %v1425
  %4364 = vmatprep.mubr.f32.mxu0 %v109
  %4365 = vmatmul.mubr.f32.gmra.mrb[0].mxu0 %v108
  %v4366 = vpop.f32.mrb[0].mxu0
  %v4367 = vadd.f32 %v4297, %v4366
  %v4368 = vpop.f32.mrb[0].mxu0
  %4369 = vdwg.mxu0
  %4370 = vmatprep.subr.mxu0 0.0
  %4371 = vmatpush1.msra.mxu0 %v1426
  %4372 = vmatprep.subr.mxu0 0.0
  %4373 = vmatpush1.msra.mxu0 %v1427
  %4374 = vmatprep.subr.mxu0 0.0
  %4375 = vmatpush1.msra.mxu0 %v1428
  %4376 = vmatprep.subr.mxu0 0.0
  %4377 = vmatpush1.msra.mxu0 %v1429
  %4378 = vmatprep.subr.mxu0 0.0
  %4379 = vmatpush1.msra.mxu0 %v1430
  %4380 = vmatprep.subr.mxu0 0.0
  %4381 = vmatpush1.msra.mxu0 %v1431
  %4382 = vmatprep.subr.mxu0 0.0
  %4383 = vmatpush1.msra.mxu0 %v1432
  %4384 = vmatprep.subr.mxu0 0.0
  %4385 = vmatpush1.msra.mxu0 %v1433
  %4386 = vmatprep.subr.mxu0 0.0
  %4387 = vmatpush1.msra.mxu0 %v1434
  %4388 = vmatprep.subr.mxu0 0.0
  %4389 = vmatpush1.msra.mxu0 %v1435
  %4390 = vmatprep.subr.mxu0 0.0
  %4391 = vmatpush1.msra.mxu0 %v1436
  %4392 = vmatprep.subr.mxu0 0.0
  %4393 = vmatpush1.msra.mxu0 %v1437
  %4394 = vmatprep.subr.mxu0 0.0
  %4395 = vmatpush1.msra.mxu0 %v1438
  %4396 = vmatprep.subr.mxu0 0.0
  %4397 = vmatpush1.msra.mxu0 %v1439
  %4398 = vmatprep.subr.mxu0 0.0
  %4399 = vmatpush1.msra.mxu0 %v1440
  %4400 = vmatprep.subr.mxu0 0.0
  %4401 = vmatpush1.msra.mxu0 %v1441
  %4402 = vmatprep.subr.mxu0 0.0
  %4403 = vmatpush1.msra.mxu0 %v1442
  %4404 = vmatprep.subr.mxu0 0.0
  %4405 = vmatpush1.msra.mxu0 %v1443
  %4406 = vmatprep.subr.mxu0 0.0
  %4407 = vmatpush1.msra.mxu0 %v1444
  %4408 = vmatprep.subr.mxu0 0.0
  %4409 = vmatpush1.msra.mxu0 %v1445
  %4410 = vmatprep.subr.mxu0 0.0
  %4411 = vmatpush1.msra.mxu0 %v1446
  %4412 = vmatprep.subr.mxu0 0.0
  %4413 = vmatpush1.msra.mxu0 %v1447
  %4414 = vmatprep.subr.mxu0 0.0
  %4415 = vmatpush1.msra.mxu0 %v1448
  %4416 = vmatprep.subr.mxu0 0.0
  %4417 = vmatpush1.msra.mxu0 %v1449
  %4418 = vmatprep.subr.mxu0 0.0
  %4419 = vmatpush1.msra.mxu0 %v1450
  %4420 = vmatprep.subr.mxu0 0.0
  %4421 = vmatpush1.msra.mxu0 %v1451
  %4422 = vmatprep.subr.mxu0 0.0
  %4423 = vmatpush1.msra.mxu0 %v1452
  %4424 = vmatprep.subr.mxu0 0.0
  %4425 = vmatpush1.msra.mxu0 %v1453
  %4426 = vmatprep.subr.mxu0 0.0
  %4427 = vmatpush1.msra.mxu0 %v1454
  %4428 = vmatprep.subr.mxu0 0.0
  %4429 = vmatpush1.msra.mxu0 %v1455
  %4430 = vmatprep.subr.mxu0 0.0
  %4431 = vmatpush1.msra.mxu0 %v1456
  %4432 = vmatprep.subr.mxu0 0.0
  %4433 = vmatpush1.msra.mxu0 %v1457
  %4434 = vmatprep.mubr.f32.mxu0 %v111
  %4435 = vmatmul.mubr.f32.gmra.mrb[0].mxu0 %v110
  %v4436 = vpop.f32.mrb[0].mxu0
  %v4437 = vadd.f32 %v4367, %v4436
  %v4438 = vpop.f32.mrb[0].mxu0
  %4439 = vdwg.mxu0
  %4440 = vmatprep.subr.mxu0 0.0
  %4441 = vmatpush1.msra.mxu0 %v1458
  %4442 = vmatprep.subr.mxu0 0.0
  %4443 = vmatpush1.msra.mxu0 %v1459
  %4444 = vmatprep.subr.mxu0 0.0
  %4445 = vmatpush1.msra.mxu0 %v1460
  %4446 = vmatprep.subr.mxu0 0.0
  %4447 = vmatpush1.msra.mxu0 %v1461
  %4448 = vmatprep.subr.mxu0 0.0
  %4449 = vmatpush1.msra.mxu0 %v1462
  %4450 = vmatprep.subr.mxu0 0.0
  %4451 = vmatpush1.msra.mxu0 %v1463
  %4452 = vmatprep.subr.mxu0 0.0
  %4453 = vmatpush1.msra.mxu0 %v1464
  %4454 = vmatprep.subr.mxu0 0.0
  %4455 = vmatpush1.msra.mxu0 %v1465
  %4456 = vmatprep.subr.mxu0 0.0
  %4457 = vmatpush1.msra.mxu0 %v1466
  %4458 = vmatprep.subr.mxu0 0.0
  %4459 = vmatpush1.msra.mxu0 %v1467
  %4460 = vmatprep.subr.mxu0 0.0
  %4461 = vmatpush1.msra.mxu0 %v1468
  %4462 = vmatprep.subr.mxu0 0.0
  %4463 = vmatpush1.msra.mxu0 %v1469
  %4464 = vmatprep.subr.mxu0 0.0
  %4465 = vmatpush1.msra.mxu0 %v1470
  %4466 = vmatprep.subr.mxu0 0.0
  %4467 = vmatpush1.msra.mxu0 %v1471
  %4468 = vmatprep.subr.mxu0 0.0
  %4469 = vmatpush1.msra.mxu0 %v1472
  %4470 = vmatprep.subr.mxu0 0.0
  %4471 = vmatpush1.msra.mxu0 %v1473
  %4472 = vmatprep.subr.mxu0 0.0
  %4473 = vmatpush1.msra.mxu0 %v1474
  %4474 = vmatprep.subr.mxu0 0.0
  %4475 = vmatpush1.msra.mxu0 %v1475
  %4476 = vmatprep.subr.mxu0 0.0
  %4477 = vmatpush1.msra.mxu0 %v1476
  %4478 = vmatprep.subr.mxu0 0.0
  %4479 = vmatpush1.msra.mxu0 %v1477
  %4480 = vmatprep.subr.mxu0 0.0
  %4481 = vmatpush1.msra.mxu0 %v1478
  %4482 = vmatprep.subr.mxu0 0.0
  %4483 = vmatpush1.msra.mxu0 %v1479
  %4484 = vmatprep.subr.mxu0 0.0
  %4485 = vmatpush1.msra.mxu0 %v1480
  %4486 = vmatprep.subr.mxu0 0.0
  %4487 = vmatpush1.msra.mxu0 %v1481
  %4488 = vmatprep.subr.mxu0 0.0
  %4489 = vmatpush1.msra.mxu0 %v1482
  %4490 = vmatprep.subr.mxu0 0.0
  %4491 = vmatpush1.msra.mxu0 %v1483
  %4492 = vmatprep.subr.mxu0 0.0
  %4493 = vmatpush1.msra.mxu0 %v1484
  %4494 = vmatprep.subr.mxu0 0.0
  %4495 = vmatpush1.msra.mxu0 %v1485
  %4496 = vmatprep.subr.mxu0 0.0
  %4497 = vmatpush1.msra.mxu0 %v1486
  %4498 = vmatprep.subr.mxu0 0.0
  %4499 = vmatpush1.msra.mxu0 %v1487
  %4500 = vmatprep.subr.mxu0 0.0
  %4501 = vmatpush1.msra.mxu0 %v1488
  %4502 = vmatprep.subr.mxu0 0.0
  %4503 = vmatpush1.msra.mxu0 0.0
  %4504 = vmatprep.mubr.f32.mxu0 %v1498
  %4505 = vmatmul.mubr.f32.gmra.mrb[0].mxu0 %v112
  %v4506 = vpop.f32.mrb[0].mxu0
  %v4507 = vadd.f32 %v4437, %v4506
  %v4508 = vpop.f32.mrb[0].mxu0
  %4509 = vdwg.mxu0
  %v4510 = vmax.f32 %v4507, 0.0
  %v4511 = vld [vmem:[%s3] sm:$0xff]
  %v4512 = vld [vmem:[%s3 + $0x8] sm:$0xff]
  %v4513 = vld [vmem:[%s3 + $0x10] sm:$0xff]
  %v4514 = vld [vmem:[%s3 + $0x18] sm:$0xff]
  %v4515 = vld [vmem:[%s3 + $0x20] sm:$0xff]
  %v4516 = vld [vmem:[%s3 + $0x28] sm:$0xff]
  %v4517 = vld [vmem:[%s3 + $0x30] sm:$0xff]
  %v4518 = vld [vmem:[%s3 + $0x38] sm:$0xff]
  %v4519 = vld [vmem:[%s3 + $0x40] sm:$0xff]
  %v4520 = vld [vmem:[%s3 + $0x48] sm:$0xff]
  %v4521 = vld [vmem:[%s3 + $0x50] sm:$0xff]
  %v4522 = vld [vmem:[%s3 + $0x58] sm:$0xff]
  %v4523 = vld [vmem:[%s3 + $0x60] sm:$0xf]
  %v4524 = vld [vmem:[%s4] sm:$0x1]
  %v4526 = vlaneseq
  %v4527 = vshrl.u32 %v4526, 7
  %v4528 = vsub.s32 0, %v4527
  %v4529 = vrot.slane %v4524, %v4528
  %vm4531 = vcmask 818176
  %v4533 = vsel %vm4531, %v4510, 0
  %vm4535 = vcmask 1043456
  %v4537 = vsel %vm4535, %v4523, 0
  %4539 = vmatprep.subr.mxu0 0.0
  %4540 = vmatpush1.msra.mxu0 %v4511
  %4541 = vmatprep.subr.mxu0 0.0
  %4542 = vmatpush1.msra.mxu0 %v4512
  %4543 = vmatprep.subr.mxu0 0.0
  %4544 = vmatpush1.msra.mxu0 %v4513
  %4545 = vmatprep.subr.mxu0 0.0
  %4546 = vmatpush1.msra.mxu0 %v4514
  %4547 = vmatprep.subr.mxu0 0.0
  %4548 = vmatpush1.msra.mxu0 %v4515
  %4549 = vmatprep.subr.mxu0 0.0
  %4550 = vmatpush1.msra.mxu0 %v4516
  %4551 = vmatprep.subr.mxu0 0.0
  %4552 = vmatpush1.msra.mxu0 %v4517
  %4553 = vmatprep.subr.mxu0 0.0
  %4554 = vmatpush1.msra.mxu0 %v4518
  %4555 = vmatprep.subr.mxu0 0.0
  %4556 = vmatpush1.msra.mxu0 %v4519
  %4557 = vmatprep.subr.mxu0 0.0
  %4558 = vmatpush1.msra.mxu0 %v4520
  %4559 = vmatprep.subr.mxu0 0.0
  %4560 = vmatpush1.msra.mxu0 %v4521
  %4561 = vmatprep.subr.mxu0 0.0
  %4562 = vmatpush1.msra.mxu0 %v4522
  %4563 = vmatprep.subr.mxu0 0.0
  %4564 = vmatpush1.msra.mxu0 %v4537
  %4565 = vmatprep.subr.mxu0 0.0
  %4566 = vmatpush1.msra.mxu0 0.0
  %4567 = vmatprep.subr.mxu0 0.0
  %4568 = vmatpush1.msra.mxu0 0.0
  %4569 = vmatprep.subr.mxu0 0.0
  %4570 = vmatpush1.msra.mxu0 0.0
  %4571 = vmatprep.subr.mxu0 0.0
  %4572 = vmatpush1.msra.mxu0 0.0
  %4573 = vmatprep.subr.mxu0 0.0
  %4574 = vmatpush1.msra.mxu0 0.0
  %4575 = vmatprep.subr.mxu0 0.0
  %4576 = vmatpush1.msra.mxu0 0.0
  %4577 = vmatprep.subr.mxu0 0.0
  %4578 = vmatpush1.msra.mxu0 0.0
  %4579 = vmatprep.subr.mxu0 0.0
  %4580 = vmatpush1.msra.mxu0 0.0
  %4581 = vmatprep.subr.mxu0 0.0
  %4582 = vmatpush1.msra.mxu0 0.0
  %4583 = vmatprep.subr.mxu0 0.0
  %4584 = vmatpush1.msra.mxu0 0.0
  %4585 = vmatprep.subr.mxu0 0.0
  %4586 = vmatpush1.msra.mxu0 0.0
  %4587 = vmatprep.subr.mxu0 0.0
  %4588 = vmatpush1.msra.mxu0 0.0
  %4589 = vmatprep.subr.mxu0 0.0
  %4590 = vmatpush1.msra.mxu0 0.0
  %4591 = vmatprep.subr.mxu0 0.0
  %4592 = vmatpush1.msra.mxu0 0.0
  %4593 = vmatprep.subr.mxu0 0.0
  %4594 = vmatpush1.msra.mxu0 0.0
  %4595 = vmatprep.subr.mxu0 0.0
  %4596 = vmatpush1.msra.mxu0 0.0
  %4597 = vmatprep.subr.mxu0 0.0
  %4598 = vmatpush1.msra.mxu0 0.0
  %4599 = vmatprep.subr.mxu0 0.0
  %4600 = vmatpush1.msra.mxu0 0.0
  %4601 = vmatprep.subr.mxu0 0.0
  %4602 = vmatpush1.msra.mxu0 0.0
  %4603 = vmatprep.mubr.f32.mxu0 0.0
  %4604 = vmatmul.mubr.f32.gmra.mrb[0].mxu0 %v4533
  %v4605 = vpop.f32.mrb[0].mxu0
  %v4606 = vadd.f32 %v4529, %v4605
  %v4607 = vpop.f32.mrb[0].mxu0
  %4608 = vdwg.mxu0
  %v4609 = vmax.f32 %v4606, 0.0
  %v4610 = vld [vmem:[%s5] sm:$0xff]
  %v4611 = vld [vmem:[%s5 + $0x8] sm:$0xff]
  %v4612 = vld [vmem:[%s5 + $0x10] sm:$0xff]
  %v4613 = vld [vmem:[%s5 + $0x18] sm:$0xff]
  %v4614 = vld [vmem:[%s5 + $0x20] sm:$0xff]
  %v4615 = vld [vmem:[%s5 + $0x28] sm:$0xff]
  %v4616 = vld [vmem:[%s5 + $0x30] sm:$0x3]
  %v4617 = vld [vmem:[#allocation2] sm:$0x1]
  %v4619 = vlaneseq
  %v4620 = vshrl.u32 %v4619, 7
  %v4621 = vsub.s32 0, %v4620
  %v4622 = vrot.slane %v4617, %v4621
  %vm4624 = vcmask 408576
  %v4626 = vsel %vm4624, %v4609, 0
  %vm4628 = vcmask 1041408
  %v4630 = vsel %vm4628, %v4616, 0
  %4632 = vmatprep.subr.mxu0 0.0
  %4633 = vmatpush1.msra.mxu0 %v4610
  %4634 = vmatprep.subr.mxu0 0.0
  %4635 = vmatpush1.msra.mxu0 %v4611
  %4636 = vmatprep.subr.mxu0 0.0
  %4637 = vmatpush1.msra.mxu0 %v4612
  %4638 = vmatprep.subr.mxu0 0.0
  %4639 = vmatpush1.msra.mxu0 %v4613
  %4640 = vmatprep.subr.mxu0 0.0
  %4641 = vmatpush1.msra.mxu0 %v4614
  %4642 = vmatprep.subr.mxu0 0.0
  %4643 = vmatpush1.msra.mxu0 %v4615
  %4644 = vmatprep.subr.mxu0 0.0
  %4645 = vmatpush1.msra.mxu0 %v4630
  %4646 = vmatprep.subr.mxu0 0.0
  %4647 = vmatpush1.msra.mxu0 0.0
  %4648 = vmatprep.subr.mxu0 0.0
  %4649 = vmatpush1.msra.mxu0 0.0
  %4650 = vmatprep.subr.mxu0 0.0
  %4651 = vmatpush1.msra.mxu0 0.0
  %4652 = vmatprep.subr.mxu0 0.0
  %4653 = vmatpush1.msra.mxu0 0.0
  %4654 = vmatprep.subr.mxu0 0.0
  %4655 = vmatpush1.msra.mxu0 0.0
  %4656 = vmatprep.subr.mxu0 0.0
  %4657 = vmatpush1.msra.mxu0 0.0
  %4658 = vmatprep.subr.mxu0 0.0
  %4659 = vmatpush1.msra.mxu0 0.0
  %4660 = vmatprep.subr.mxu0 0.0
  %4661 = vmatpush1.msra.mxu0 0.0
  %4662 = vmatprep.subr.mxu0 0.0
  %4663 = vmatpush1.msra.mxu0 0.0
  %4664 = vmatprep.subr.mxu0 0.0
  %4665 = vmatpush1.msra.mxu0 0.0
  %4666 = vmatprep.subr.mxu0 0.0
  %4667 = vmatpush1.msra.mxu0 0.0
  %4668 = vmatprep.subr.mxu0 0.0
  %4669 = vmatpush1.msra.mxu0 0.0
  %4670 = vmatprep.subr.mxu0 0.0
  %4671 = vmatpush1.msra.mxu0 0.0
  %4672 = vmatprep.subr.mxu0 0.0
  %4673 = vmatpush1.msra.mxu0 0.0
  %4674 = vmatprep.subr.mxu0 0.0
  %4675 = vmatpush1.msra.mxu0 0.0
  %4676 = vmatprep.subr.mxu0 0.0
  %4677 = vmatpush1.msra.mxu0 0.0
  %4678 = vmatprep.subr.mxu0 0.0
  %4679 = vmatpush1.msra.mxu0 0.0
  %4680 = vmatprep.subr.mxu0 0.0
  %4681 = vmatpush1.msra.mxu0 0.0
  %4682 = vmatprep.subr.mxu0 0.0
  %4683 = vmatpush1.msra.mxu0 0.0
  %4684 = vmatprep.subr.mxu0 0.0
  %4685 = vmatpush1.msra.mxu0 0.0
  %4686 = vmatprep.subr.mxu0 0.0
  %4687 = vmatpush1.msra.mxu0 0.0
  %4688 = vmatprep.subr.mxu0 0.0
  %4689 = vmatpush1.msra.mxu0 0.0
  %4690 = vmatprep.subr.mxu0 0.0
  %4691 = vmatpush1.msra.mxu0 0.0
  %4692 = vmatprep.subr.mxu0 0.0
  %4693 = vmatpush1.msra.mxu0 0.0
  %4694 = vmatprep.subr.mxu0 0.0
  %4695 = vmatpush1.msra.mxu0 0.0
  %4696 = vmatprep.mubr.f32.mxu0 0.0
  %4697 = vmatmul.mubr.f32.gmra.mrb[0].mxu0 %v4626
  %v4698 = vpop.f32.mrb[0].mxu0
  %v4699 = vadd.f32 %v4622, %v4698
  %v4700 = vpop.f32.mrb[0].mxu0
  %4701 = vdwg.mxu0
  %v4702 = vxor.u32 %v4699, 2147483648
  %v4703 = vmul.f32 %v4702, 1.442695
  %v4704 = vpow.pop %v4703
  %v4705 = vadd.f32 %v4704, 1.0
  %v4706 = vrcp.pop %v4705
  %v4707 = vmul.f32 1.0, %v4706
  %vm4708 = vcmask 7168
  %4709 = vst.msk [vmem:[%s7] sm:$0xff] %vm4708, %v4707
  // Predicated region
  $region30: #{tpu_custom_call.1} parent=0 // pred_check
    _
  $region31: #{tpu_custom_call.1} parent=0 // pred_check_branch
    %4711 = sbr.rel (0) target = $region33
  $region32: #{tpu_custom_call.1} parent=0 // pred_region
    _
  $region33: #{tpu_custom_call.1} parent=0 // pred_fallthru
    _
  // Predicated region
  $region34: #{tpu_custom_call.1} parent=0 // pred_check
    _
  $region35: #{tpu_custom_call.1} parent=0 // pred_check_branch
    %4713 = sbr.rel (0) target = $region37
  $region36: #{tpu_custom_call.1} parent=0 // pred_region
    _
  $region37: #{tpu_custom_call.1} parent=0 // pred_fallthru
    _

</llo_original>
